<compile_context>
chip_gen: v6e
topology: v6e:2x2x1
jax: 0.10.0
libtpu: 0.0.40
codegen_flags: <defaults>
</compile_context>

<pallas_src>
import jax
import jax.numpy as jnp
from jax import lax
from jax.experimental import pallas as pl
from jax.experimental.pallas import tpu as pltpu


def _softplus(x):
    # Numerically-stable softplus, matching PyTorch BCEWithLogits:
    # max(x, 0) + log1p(exp(-|x|))
    return jnp.maximum(x, 0.0) + jnp.log1p(jnp.exp(-jnp.abs(x)))


def _make_kernel(B, D, K, tile_t, use_bf16):
    n_pos = B              # number of positive target rows
    n_valid = B + B * K    # number of valid (non-padding) target rows

    def kernel(idx_ref, table_ref, out_ref, src_buf, tgt_buf, sem):
        # idx_ref  : SMEM int32 (B + n_tiles*tile_t,)  [src | pos | neg_flat | pad]
        # table_ref: HBM (N, D) f32   (memory_space=pl.ANY, never fully loaded)
        # out_ref  : VMEM (8, 128) f32 partial-sum block for this tile
        t = pl.program_id(0)

        def start_row(dst_buf, dst_row, table_row, sem_ref):
            pltpu.make_async_copy(
                table_ref.at[pl.ds(table_row, 1)],
                dst_buf.at[pl.ds(dst_row, 1)],
                sem_ref).start()

        def wait_row(dst_buf, dst_row, sem_ref):
            pltpu.make_async_copy(
                table_ref.at[pl.ds(0, 1)],
                dst_buf.at[pl.ds(dst_row, 1)],
                sem_ref).wait()

        # Issue all row-gather DMAs for this tile (src rows + this tile's targets),
        # then wait for all of them before the matmul.
        for r in range(B):
            start_row(src_buf, r, idx_ref[r], sem.at[0])
        for r in range(tile_t):
            start_row(tgt_buf, r, idx_ref[B + t * tile_t + r], sem.at[1])
        for r in range(B):
            wait_row(src_buf, r, sem.at[0])
        for r in range(tile_t):
            wait_row(tgt_buf, r, sem.at[1])

        cdt = jnp.bfloat16 if use_bf16 else jnp.float32
        e_src = src_buf[...].astype(cdt)      # (B, D)
        e_tgt = tgt_buf[...].astype(cdt)      # (tile_t, D)

        # logits[i, j] = e_src[i] . e_tgt[j]  (contract on D; MXU, f32 accumulation)
        logits = lax.dot_general(
            e_src, e_tgt, (((1,), (1,)), ((), ())),
            preferred_element_type=jnp.float32)            # (B, tile_t)

        # Global target-column index: [0, n_pos) -> positives (label 1),
        # [n_pos, n_valid) -> negatives (label 0), >= n_valid -> padding (masked).
        g = t * tile_t + lax.broadcasted_iota(jnp.int32, (B, tile_t), 1)
        is_pos = g < n_pos
        is_valid = g < n_valid
        sp = _softplus(jnp.where(is_pos, -logits, logits))
        pos_part = jnp.sum(jnp.where(is_pos, sp, 0.0))
        neg_part = jnp.sum(jnp.where(is_valid & jnp.logical_not(is_pos), sp, 0.0))

        # Lane-dense (8,128) output block: [0,0]=pos partial sum, [0,1]=neg partial sum.
        rows = lax.broadcasted_iota(jnp.int32, (8, 128), 0)
        cols = lax.broadcasted_iota(jnp.int32, (8, 128), 1)
        out_ref[...] = jnp.where(
            (rows == 0) & (cols == 0), pos_part,
            jnp.where((rows == 0) & (cols == 1), neg_part, 0.0))

    return kernel


def skipgram_loss(table, src, pos, neg, *, tile_t=None, use_bf16=True):
    """table: (N, D) f32; src, pos: (B,) int; neg: (B, K) int -> scalar f32 loss."""
    table = table.astype(jnp.float32)
    N, D = table.shape
    B = int(src.shape[0])
    K = int(neg.shape[1])
    n_tgt = B + B * K                          # pos rows + flattened neg rows

    if tile_t is None:
        # Split targets into (at least) 2 tiles for the v7x second TensorCore;
        # keep the tile sublane-aligned.  At real scale use tile_t >= 256.
        tile_t = max(8, (((n_tgt + 1) // 2 + 7) // 8) * 8)
    n_tiles = (n_tgt + tile_t - 1) // tile_t
    padded_tgt = n_tiles * tile_t

    # Fused index vector: [src | pos | neg_flat | padding(0, masked in-kernel)].
    tgt_idx = jnp.concatenate(
        [pos.reshape(-1).astype(jnp.int32), neg.reshape(-1).astype(jnp.int32)])
    tgt_idx = jnp.pad(tgt_idx, (0, padded_tgt - n_tgt))
    idx_all = jnp.concatenate([src.reshape(-1).astype(jnp.int32), tgt_idx])

    kernel = _make_kernel(B, D, K, tile_t, use_bf16)

    cost = pl.CostEstimate(
        flops=2 * B * D * padded_tgt,
        transcendentals=2 * B * padded_tgt,                       # exp + log1p per logit
        bytes_accessed=(n_tiles * B + padded_tgt) * D * 4         # gathered rows
                       + idx_all.size * 4
                       + n_tiles * 8 * 128 * 4)

    partial = pl.pallas_call(
        kernel,
        out_shape=jax.ShapeDtypeStruct((n_tiles * 8, 128), jnp.float32),
        grid_spec=pltpu.PrefetchScalarGridSpec(
            num_scalar_prefetch=1,                                # idx_all -> SMEM
            grid=(n_tiles,),
            in_specs=[pl.BlockSpec(memory_space=pl.ANY)],         # table stays in HBM
            out_specs=pl.BlockSpec((8, 128), lambda t, idx: (t, 0)),
            scratch_shapes=[
                pltpu.VMEM((B, D), jnp.float32),                  # gathered src rows
                pltpu.VMEM((tile_t, D), jnp.float32),             # gathered target rows
                pltpu.SemaphoreType.DMA((2,)),                    # src / target gather sems
            ]),
        compiler_params=pltpu.CompilerParams(
            dimension_semantics=("parallel",)),
        cost_estimate=cost,
    )(idx_all, table)

    # Tiny scalar epilogue: combine per-tile partial sums into the BCE means.
    partial = partial.reshape(n_tiles, 8, 128)
    pos_sum = jnp.sum(partial[:, 0, 0])
    neg_sum = jnp.sum(partial[:, 0, 1])
    pos_loss = pos_sum / float(B * B)           # mean over (B, B) positive logits
    neg_loss = neg_sum / float(B * B * K)       # mean over (B, B, K) negative logits
    return 0.5 * (pos_loss + neg_loss)


def skipgram_loss_ref(table, src, pos, neg):
    # Pure-JAX reference mirroring the torch module.
    e_src = table[src]                                   # (B, D)
    e_pos = table[pos]                                   # (B, D)
    e_neg = table[neg]                                   # (B, K, D)
    pos_logits = e_src @ e_pos.T                         # (B, B)
    neg_logits = jnp.einsum('jd,ikd->ijk', e_src, e_neg)  # torch broadcast matmul
    pos_loss = jnp.mean(_softplus(-pos_logits))
    neg_loss = jnp.mean(_softplus(neg_logits))
    return 0.5 * (pos_loss + neg_loss)


if __name__ == "__main__":
    num_nodes, embed_dim = 64, 32
    batch, num_neg = 8, 4

    key = jax.random.PRNGKey(0)
    k_emb, k_src, k_pos, k_neg = jax.random.split(key, 4)

    # xavier_uniform_ on (num_nodes, embed_dim): bound = sqrt(6 / (fan_in + fan_out))
    bound = (6.0 / (num_nodes + embed_dim)) ** 0.5
    table = jax.random.uniform(k_emb, (num_nodes, embed_dim),
                               minval=-bound, maxval=bound, dtype=jnp.float32)

    src = jax.random.randint(k_src, (batch,), 0, num_nodes, dtype=jnp.int32)
    pos = jax.random.randint(k_pos, (batch,), 0, num_nodes, dtype=jnp.int32)
    neg = jax.random.randint(k_neg, (batch, num_neg), 0, num_nodes, dtype=jnp.int32)

    ref = jax.block_until_ready(skipgram_loss_ref(table, src, pos, neg))

    # f32 MXU path: should match the reference tightly.
    loss_f32 = jax.block_until_ready(
        skipgram_loss(table, src, pos, neg, use_bf16=False))
    assert jnp.allclose(loss_f32, ref, rtol=1e-5, atol=1e-5), (loss_f32, ref)

    # bf16 MXU path (f32 accumulation): small, bounded precision loss.
    loss_bf16 = jax.block_until_ready(
        skipgram_loss(table, src, pos, neg, use_bf16=True))
    assert jnp.allclose(loss_bf16, ref, rtol=1e-2, atol=1e-2), (loss_bf16, ref)

    print("KERNEL_OK")
</pallas_src>

<mosaic_0001>
module attributes {stable_mosaic.version = 11 : i64} {
  func.func @kernel(%arg0: i32, %arg1: memref<56xi32, #tpu.memory_space<smem>>, %arg2: memref<64x32xf32, #tpu.memory_space<any>>, %arg3: memref<8x128xf32, #tpu.memory_space<vmem>>, %arg4: memref<8x32xf32, #tpu.memory_space<vmem>>, %arg5: memref<24x32xf32, #tpu.memory_space<vmem>>, %arg6: memref<2x!tpu.dma_semaphore, #tpu.memory_space<semaphore_mem>>) attributes {dimension_semantics = [#tpu.dimension_semantics<parallel>], iteration_bounds = array<i64: 2>, scalar_prefetch = 1 : i64, scratch_operands = 3 : i64, tpu.core_type = #tpu.core_type<tc>, window_params = [{}, {transform_indices = @transform_1, window_bounds = array<i64: 8, 128>}]} {
    %c0 = arith.constant 0 : index
    %0 = memref.load %arg1[%c0] : memref<56xi32, #tpu.memory_space<smem>>
    %c0_i32 = arith.constant 0 : i32
    %c0_i32_0 = arith.constant 0 : i32
    %1 = tpu.memref_slice %arg2[%0, %c0_i32_0] : memref<64x32xf32, #tpu.memory_space<any>> -> memref<1x32xf32, #tpu.memory_space<any>>
    %c0_i32_1 = arith.constant 0 : i32
    %c0_i32_2 = arith.constant 0 : i32
    %2 = tpu.memref_slice %arg4[%c0_i32_1, %c0_i32_2] : memref<8x32xf32, #tpu.memory_space<vmem>> -> memref<1x32xf32, #tpu.memory_space<vmem>>
    %3 = tpu.memref_slice %arg6[%c0_i32] : memref<2x!tpu.dma_semaphore, #tpu.memory_space<semaphore_mem>> -> memref<1x!tpu.dma_semaphore, #tpu.memory_space<semaphore_mem>>
    %4 = tpu.memref_squeeze %3 : memref<1x!tpu.dma_semaphore, #tpu.memory_space<semaphore_mem>> -> memref<!tpu.dma_semaphore, #tpu.memory_space<semaphore_mem>>
    tpu.enqueue_dma source(%1 : memref<1x32xf32, #tpu.memory_space<any>>) target(%2 : memref<1x32xf32, #tpu.memory_space<vmem>>) target_semaphore(%4 : memref<!tpu.dma_semaphore, #tpu.memory_space<semaphore_mem>>)
    %c1 = arith.constant 1 : index
    %5 = memref.load %arg1[%c1] : memref<56xi32, #tpu.memory_space<smem>>
    %c0_i32_3 = arith.constant 0 : i32
    %c0_i32_4 = arith.constant 0 : i32
    %6 = tpu.memref_slice %arg2[%5, %c0_i32_4] : memref<64x32xf32, #tpu.memory_space<any>> -> memref<1x32xf32, #tpu.memory_space<any>>
    %c1_i32 = arith.constant 1 : i32
    %c0_i32_5 = arith.constant 0 : i32
    %7 = tpu.memref_slice %arg4[%c1_i32, %c0_i32_5] : memref<8x32xf32, #tpu.memory_space<vmem>> -> memref<1x32xf32, #tpu.memory_space<vmem>>
    %8 = tpu.memref_slice %arg6[%c0_i32_3] : memref<2x!tpu.dma_semaphore, #tpu.memory_space<semaphore_mem>> -> memref<1x!tpu.dma_semaphore, #tpu.memory_space<semaphore_mem>>
    %9 = tpu.memref_squeeze %8 : memref<1x!tpu.dma_semaphore, #tpu.memory_space<semaphore_mem>> -> memref<!tpu.dma_semaphore, #tpu.memory_space<semaphore_mem>>
    tpu.enqueue_dma source(%6 : memref<1x32xf32, #tpu.memory_space<any>>) target(%7 : memref<1x32xf32, #tpu.memory_space<vmem>>) target_semaphore(%9 : memref<!tpu.dma_semaphore, #tpu.memory_space<semaphore_mem>>)
    %c2 = arith.constant 2 : index
    %10 = memref.load %arg1[%c2] : memref<56xi32, #tpu.memory_space<smem>>
    %c0_i32_6 = arith.constant 0 : i32
    %c0_i32_7 = arith.constant 0 : i32
    %11 = tpu.memref_slice %arg2[%10, %c0_i32_7] : memref<64x32xf32, #tpu.memory_space<any>> -> memref<1x32xf32, #tpu.memory_space<any>>
    %c2_i32 = arith.constant 2 : i32
    %c0_i32_8 = arith.constant 0 : i32
    %12 = tpu.memref_slice %arg4[%c2_i32, %c0_i32_8] : memref<8x32xf32, #tpu.memory_space<vmem>> -> memref<1x32xf32, #tpu.memory_space<vmem>>
    %13 = tpu.memref_slice %arg6[%c0_i32_6] : memref<2x!tpu.dma_semaphore, #tpu.memory_space<semaphore_mem>> -> memref<1x!tpu.dma_semaphore, #tpu.memory_space<semaphore_mem>>
    %14 = tpu.memref_squeeze %13 : memref<1x!tpu.dma_semaphore, #tpu.memory_space<semaphore_mem>> -> memref<!tpu.dma_semaphore, #tpu.memory_space<semaphore_mem>>
    tpu.enqueue_dma source(%11 : memref<1x32xf32, #tpu.memory_space<any>>) target(%12 : memref<1x32xf32, #tpu.memory_space<vmem>>) target_semaphore(%14 : memref<!tpu.dma_semaphore, #tpu.memory_space<semaphore_mem>>)
    %c3 = arith.constant 3 : index
    %15 = memref.load %arg1[%c3] : memref<56xi32, #tpu.memory_space<smem>>
    %c0_i32_9 = arith.constant 0 : i32
    %c0_i32_10 = arith.constant 0 : i32
    %16 = tpu.memref_slice %arg2[%15, %c0_i32_10] : memref<64x32xf32, #tpu.memory_space<any>> -> memref<1x32xf32, #tpu.memory_space<any>>
    %c3_i32 = arith.constant 3 : i32
    %c0_i32_11 = arith.constant 0 : i32
    %17 = tpu.memref_slice %arg4[%c3_i32, %c0_i32_11] : memref<8x32xf32, #tpu.memory_space<vmem>> -> memref<1x32xf32, #tpu.memory_space<vmem>>
    %18 = tpu.memref_slice %arg6[%c0_i32_9] : memref<2x!tpu.dma_semaphore, #tpu.memory_space<semaphore_mem>> -> memref<1x!tpu.dma_semaphore, #tpu.memory_space<semaphore_mem>>
    %19 = tpu.memref_squeeze %18 : memref<1x!tpu.dma_semaphore, #tpu.memory_space<semaphore_mem>> -> memref<!tpu.dma_semaphore, #tpu.memory_space<semaphore_mem>>
    tpu.enqueue_dma source(%16 : memref<1x32xf32, #tpu.memory_space<any>>) target(%17 : memref<1x32xf32, #tpu.memory_space<vmem>>) target_semaphore(%19 : memref<!tpu.dma_semaphore, #tpu.memory_space<semaphore_mem>>)
    %c4 = arith.constant 4 : index
    %20 = memref.load %arg1[%c4] : memref<56xi32, #tpu.memory_space<smem>>
    %c0_i32_12 = arith.constant 0 : i32
    %c0_i32_13 = arith.constant 0 : i32
    %21 = tpu.memref_slice %arg2[%20, %c0_i32_13] : memref<64x32xf32, #tpu.memory_space<any>> -> memref<1x32xf32, #tpu.memory_space<any>>
    %c4_i32 = arith.constant 4 : i32
    %c0_i32_14 = arith.constant 0 : i32
    %22 = tpu.memref_slice %arg4[%c4_i32, %c0_i32_14] : memref<8x32xf32, #tpu.memory_space<vmem>> -> memref<1x32xf32, #tpu.memory_space<vmem>>
    %23 = tpu.memref_slice %arg6[%c0_i32_12] : memref<2x!tpu.dma_semaphore, #tpu.memory_space<semaphore_mem>> -> memref<1x!tpu.dma_semaphore, #tpu.memory_space<semaphore_mem>>
    %24 = tpu.memref_squeeze %23 : memref<1x!tpu.dma_semaphore, #tpu.memory_space<semaphore_mem>> -> memref<!tpu.dma_semaphore, #tpu.memory_space<semaphore_mem>>
    tpu.enqueue_dma source(%21 : memref<1x32xf32, #tpu.memory_space<any>>) target(%22 : memref<1x32xf32, #tpu.memory_space<vmem>>) target_semaphore(%24 : memref<!tpu.dma_semaphore, #tpu.memory_space<semaphore_mem>>)
    %c5 = arith.constant 5 : index
    %25 = memref.load %arg1[%c5] : memref<56xi32, #tpu.memory_space<smem>>
    %c0_i32_15 = arith.constant 0 : i32
    %c0_i32_16 = arith.constant 0 : i32
    %26 = tpu.memref_slice %arg2[%25, %c0_i32_16] : memref<64x32xf32, #tpu.memory_space<any>> -> memref<1x32xf32, #tpu.memory_space<any>>
    %c5_i32 = arith.constant 5 : i32
    %c0_i32_17 = arith.constant 0 : i32
    %27 = tpu.memref_slice %arg4[%c5_i32, %c0_i32_17] : memref<8x32xf32, #tpu.memory_space<vmem>> -> memref<1x32xf32, #tpu.memory_space<vmem>>
    %28 = tpu.memref_slice %arg6[%c0_i32_15] : memref<2x!tpu.dma_semaphore, #tpu.memory_space<semaphore_mem>> -> memref<1x!tpu.dma_semaphore, #tpu.memory_space<semaphore_mem>>
    %29 = tpu.memref_squeeze %28 : memref<1x!tpu.dma_semaphore, #tpu.memory_space<semaphore_mem>> -> memref<!tpu.dma_semaphore, #tpu.memory_space<semaphore_mem>>
    tpu.enqueue_dma source(%26 : memref<1x32xf32, #tpu.memory_space<any>>) target(%27 : memref<1x32xf32, #tpu.memory_space<vmem>>) target_semaphore(%29 : memref<!tpu.dma_semaphore, #tpu.memory_space<semaphore_mem>>)
    %c6 = arith.constant 6 : index
    %30 = memref.load %arg1[%c6] : memref<56xi32, #tpu.memory_space<smem>>
    %c0_i32_18 = arith.constant 0 : i32
    %c0_i32_19 = arith.constant 0 : i32
    %31 = tpu.memref_slice %arg2[%30, %c0_i32_19] : memref<64x32xf32, #tpu.memory_space<any>> -> memref<1x32xf32, #tpu.memory_space<any>>
    %c6_i32 = arith.constant 6 : i32
    %c0_i32_20 = arith.constant 0 : i32
    %32 = tpu.memref_slice %arg4[%c6_i32, %c0_i32_20] : memref<8x32xf32, #tpu.memory_space<vmem>> -> memref<1x32xf32, #tpu.memory_space<vmem>>
    %33 = tpu.memref_slice %arg6[%c0_i32_18] : memref<2x!tpu.dma_semaphore, #tpu.memory_space<semaphore_mem>> -> memref<1x!tpu.dma_semaphore, #tpu.memory_space<semaphore_mem>>
    %34 = tpu.memref_squeeze %33 : memref<1x!tpu.dma_semaphore, #tpu.memory_space<semaphore_mem>> -> memref<!tpu.dma_semaphore, #tpu.memory_space<semaphore_mem>>
    tpu.enqueue_dma source(%31 : memref<1x32xf32, #tpu.memory_space<any>>) target(%32 : memref<1x32xf32, #tpu.memory_space<vmem>>) target_semaphore(%34 : memref<!tpu.dma_semaphore, #tpu.memory_space<semaphore_mem>>)
    %c7 = arith.constant 7 : index
    %35 = memref.load %arg1[%c7] : memref<56xi32, #tpu.memory_space<smem>>
    %c0_i32_21 = arith.constant 0 : i32
    %c0_i32_22 = arith.constant 0 : i32
    %36 = tpu.memref_slice %arg2[%35, %c0_i32_22] : memref<64x32xf32, #tpu.memory_space<any>> -> memref<1x32xf32, #tpu.memory_space<any>>
    %c7_i32 = arith.constant 7 : i32
    %c0_i32_23 = arith.constant 0 : i32
    %37 = tpu.memref_slice %arg4[%c7_i32, %c0_i32_23] : memref<8x32xf32, #tpu.memory_space<vmem>> -> memref<1x32xf32, #tpu.memory_space<vmem>>
    %38 = tpu.memref_slice %arg6[%c0_i32_21] : memref<2x!tpu.dma_semaphore, #tpu.memory_space<semaphore_mem>> -> memref<1x!tpu.dma_semaphore, #tpu.memory_space<semaphore_mem>>
    %39 = tpu.memref_squeeze %38 : memref<1x!tpu.dma_semaphore, #tpu.memory_space<semaphore_mem>> -> memref<!tpu.dma_semaphore, #tpu.memory_space<semaphore_mem>>
    tpu.enqueue_dma source(%36 : memref<1x32xf32, #tpu.memory_space<any>>) target(%37 : memref<1x32xf32, #tpu.memory_space<vmem>>) target_semaphore(%39 : memref<!tpu.dma_semaphore, #tpu.memory_space<semaphore_mem>>)
    %c24_i32 = arith.constant 24 : i32
    %40 = arith.muli %arg0, %c24_i32 : i32
    %c8_i32 = arith.constant 8 : i32
    %41 = arith.addi %c8_i32, %40 : i32
    %c0_i32_24 = arith.constant 0 : i32
    %42 = arith.addi %41, %c0_i32_24 : i32
    %43 = arith.index_cast %42 : i32 to index
    %44 = memref.load %arg1[%43] : memref<56xi32, #tpu.memory_space<smem>>
    %c1_i32_25 = arith.constant 1 : i32
    %c0_i32_26 = arith.constant 0 : i32
    %45 = tpu.memref_slice %arg2[%44, %c0_i32_26] : memref<64x32xf32, #tpu.memory_space<any>> -> memref<1x32xf32, #tpu.memory_space<any>>
    %c0_i32_27 = arith.constant 0 : i32
    %c0_i32_28 = arith.constant 0 : i32
    %46 = tpu.memref_slice %arg5[%c0_i32_27, %c0_i32_28] : memref<24x32xf32, #tpu.memory_space<vmem>> -> memref<1x32xf32, #tpu.memory_space<vmem>>
    %47 = tpu.memref_slice %arg6[%c1_i32_25] : memref<2x!tpu.dma_semaphore, #tpu.memory_space<semaphore_mem>> -> memref<1x!tpu.dma_semaphore, #tpu.memory_space<semaphore_mem>>
    %48 = tpu.memref_squeeze %47 : memref<1x!tpu.dma_semaphore, #tpu.memory_space<semaphore_mem>> -> memref<!tpu.dma_semaphore, #tpu.memory_space<semaphore_mem>>
    tpu.enqueue_dma source(%45 : memref<1x32xf32, #tpu.memory_space<any>>) target(%46 : memref<1x32xf32, #tpu.memory_space<vmem>>) target_semaphore(%48 : memref<!tpu.dma_semaphore, #tpu.memory_space<semaphore_mem>>)
    %c24_i32_29 = arith.constant 24 : i32
    %49 = arith.muli %arg0, %c24_i32_29 : i32
    %c8_i32_30 = arith.constant 8 : i32
    %50 = arith.addi %c8_i32_30, %49 : i32
    %c1_i32_31 = arith.constant 1 : i32
    %51 = arith.addi %50, %c1_i32_31 : i32
    %52 = arith.index_cast %51 : i32 to index
    %53 = memref.load %arg1[%52] : memref<56xi32, #tpu.memory_space<smem>>
    %c1_i32_32 = arith.constant 1 : i32
    %c0_i32_33 = arith.constant 0 : i32
    %54 = tpu.memref_slice %arg2[%53, %c0_i32_33] : memref<64x32xf32, #tpu.memory_space<any>> -> memref<1x32xf32, #tpu.memory_space<any>>
    %c1_i32_34 = arith.constant 1 : i32
    %c0_i32_35 = arith.constant 0 : i32
    %55 = tpu.memref_slice %arg5[%c1_i32_34, %c0_i32_35] : memref<24x32xf32, #tpu.memory_space<vmem>> -> memref<1x32xf32, #tpu.memory_space<vmem>>
    %56 = tpu.memref_slice %arg6[%c1_i32_32] : memref<2x!tpu.dma_semaphore, #tpu.memory_space<semaphore_mem>> -> memref<1x!tpu.dma_semaphore, #tpu.memory_space<semaphore_mem>>
    %57 = tpu.memref_squeeze %56 : memref<1x!tpu.dma_semaphore, #tpu.memory_space<semaphore_mem>> -> memref<!tpu.dma_semaphore, #tpu.memory_space<semaphore_mem>>
    tpu.enqueue_dma source(%54 : memref<1x32xf32, #tpu.memory_space<any>>) target(%55 : memref<1x32xf32, #tpu.memory_space<vmem>>) target_semaphore(%57 : memref<!tpu.dma_semaphore, #tpu.memory_space<semaphore_mem>>)
    %c24_i32_36 = arith.constant 24 : i32
    %58 = arith.muli %arg0, %c24_i32_36 : i32
    %c8_i32_37 = arith.constant 8 : i32
    %59 = arith.addi %c8_i32_37, %58 : i32
    %c2_i32_38 = arith.constant 2 : i32
    %60 = arith.addi %59, %c2_i32_38 : i32
    %61 = arith.index_cast %60 : i32 to index
    %62 = memref.load %arg1[%61] : memref<56xi32, #tpu.memory_space<smem>>
    %c1_i32_39 = arith.constant 1 : i32
    %c0_i32_40 = arith.constant 0 : i32
    %63 = tpu.memref_slice %arg2[%62, %c0_i32_40] : memref<64x32xf32, #tpu.memory_space<any>> -> memref<1x32xf32, #tpu.memory_space<any>>
    %c2_i32_41 = arith.constant 2 : i32
    %c0_i32_42 = arith.constant 0 : i32
    %64 = tpu.memref_slice %arg5[%c2_i32_41, %c0_i32_42] : memref<24x32xf32, #tpu.memory_space<vmem>> -> memref<1x32xf32, #tpu.memory_space<vmem>>
    %65 = tpu.memref_slice %arg6[%c1_i32_39] : memref<2x!tpu.dma_semaphore, #tpu.memory_space<semaphore_mem>> -> memref<1x!tpu.dma_semaphore, #tpu.memory_space<semaphore_mem>>
    %66 = tpu.memref_squeeze %65 : memref<1x!tpu.dma_semaphore, #tpu.memory_space<semaphore_mem>> -> memref<!tpu.dma_semaphore, #tpu.memory_space<semaphore_mem>>
    tpu.enqueue_dma source(%63 : memref<1x32xf32, #tpu.memory_space<any>>) target(%64 : memref<1x32xf32, #tpu.memory_space<vmem>>) target_semaphore(%66 : memref<!tpu.dma_semaphore, #tpu.memory_space<semaphore_mem>>)
    %c24_i32_43 = arith.constant 24 : i32
    %67 = arith.muli %arg0, %c24_i32_43 : i32
    %c8_i32_44 = arith.constant 8 : i32
    %68 = arith.addi %c8_i32_44, %67 : i32
    %c3_i32_45 = arith.constant 3 : i32
    %69 = arith.addi %68, %c3_i32_45 : i32
    %70 = arith.index_cast %69 : i32 to index
    %71 = memref.load %arg1[%70] : memref<56xi32, #tpu.memory_space<smem>>
    %c1_i32_46 = arith.constant 1 : i32
    %c0_i32_47 = arith.constant 0 : i32
    %72 = tpu.memref_slice %arg2[%71, %c0_i32_47] : memref<64x32xf32, #tpu.memory_space<any>> -> memref<1x32xf32, #tpu.memory_space<any>>
    %c3_i32_48 = arith.constant 3 : i32
    %c0_i32_49 = arith.constant 0 : i32
    %73 = tpu.memref_slice %arg5[%c3_i32_48, %c0_i32_49] : memref<24x32xf32, #tpu.memory_space<vmem>> -> memref<1x32xf32, #tpu.memory_space<vmem>>
    %74 = tpu.memref_slice %arg6[%c1_i32_46] : memref<2x!tpu.dma_semaphore, #tpu.memory_space<semaphore_mem>> -> memref<1x!tpu.dma_semaphore, #tpu.memory_space<semaphore_mem>>
    %75 = tpu.memref_squeeze %74 : memref<1x!tpu.dma_semaphore, #tpu.memory_space<semaphore_mem>> -> memref<!tpu.dma_semaphore, #tpu.memory_space<semaphore_mem>>
    tpu.enqueue_dma source(%72 : memref<1x32xf32, #tpu.memory_space<any>>) target(%73 : memref<1x32xf32, #tpu.memory_space<vmem>>) target_semaphore(%75 : memref<!tpu.dma_semaphore, #tpu.memory_space<semaphore_mem>>)
    %c24_i32_50 = arith.constant 24 : i32
    %76 = arith.muli %arg0, %c24_i32_50 : i32
    %c8_i32_51 = arith.constant 8 : i32
    %77 = arith.addi %c8_i32_51, %76 : i32
    %c4_i32_52 = arith.constant 4 : i32
    %78 = arith.addi %77, %c4_i32_52 : i32
    %79 = arith.index_cast %78 : i32 to index
    %80 = memref.load %arg1[%79] : memref<56xi32, #tpu.memory_space<smem>>
    %c1_i32_53 = arith.constant 1 : i32
    %c0_i32_54 = arith.constant 0 : i32
    %81 = tpu.memref_slice %arg2[%80, %c0_i32_54] : memref<64x32xf32, #tpu.memory_space<any>> -> memref<1x32xf32, #tpu.memory_space<any>>
    %c4_i32_55 = arith.constant 4 : i32
    %c0_i32_56 = arith.constant 0 : i32
    %82 = tpu.memref_slice %arg5[%c4_i32_55, %c0_i32_56] : memref<24x32xf32, #tpu.memory_space<vmem>> -> memref<1x32xf32, #tpu.memory_space<vmem>>
    %83 = tpu.memref_slice %arg6[%c1_i32_53] : memref<2x!tpu.dma_semaphore, #tpu.memory_space<semaphore_mem>> -> memref<1x!tpu.dma_semaphore, #tpu.memory_space<semaphore_mem>>
    %84 = tpu.memref_squeeze %83 : memref<1x!tpu.dma_semaphore, #tpu.memory_space<semaphore_mem>> -> memref<!tpu.dma_semaphore, #tpu.memory_space<semaphore_mem>>
    tpu.enqueue_dma source(%81 : memref<1x32xf32, #tpu.memory_space<any>>) target(%82 : memref<1x32xf32, #tpu.memory_space<vmem>>) target_semaphore(%84 : memref<!tpu.dma_semaphore, #tpu.memory_space<semaphore_mem>>)
    %c24_i32_57 = arith.constant 24 : i32
    %85 = arith.muli %arg0, %c24_i32_57 : i32
    %c8_i32_58 = arith.constant 8 : i32
    %86 = arith.addi %c8_i32_58, %85 : i32
    %c5_i32_59 = arith.constant 5 : i32
    %87 = arith.addi %86, %c5_i32_59 : i32
    %88 = arith.index_cast %87 : i32 to index
    %89 = memref.load %arg1[%88] : memref<56xi32, #tpu.memory_space<smem>>
    %c1_i32_60 = arith.constant 1 : i32
    %c0_i32_61 = arith.constant 0 : i32
    %90 = tpu.memref_slice %arg2[%89, %c0_i32_61] : memref<64x32xf32, #tpu.memory_space<any>> -> memref<1x32xf32, #tpu.memory_space<any>>
    %c5_i32_62 = arith.constant 5 : i32
    %c0_i32_63 = arith.constant 0 : i32
    %91 = tpu.memref_slice %arg5[%c5_i32_62, %c0_i32_63] : memref<24x32xf32, #tpu.memory_space<vmem>> -> memref<1x32xf32, #tpu.memory_space<vmem>>
    %92 = tpu.memref_slice %arg6[%c1_i32_60] : memref<2x!tpu.dma_semaphore, #tpu.memory_space<semaphore_mem>> -> memref<1x!tpu.dma_semaphore, #tpu.memory_space<semaphore_mem>>
    %93 = tpu.memref_squeeze %92 : memref<1x!tpu.dma_semaphore, #tpu.memory_space<semaphore_mem>> -> memref<!tpu.dma_semaphore, #tpu.memory_space<semaphore_mem>>
    tpu.enqueue_dma source(%90 : memref<1x32xf32, #tpu.memory_space<any>>) target(%91 : memref<1x32xf32, #tpu.memory_space<vmem>>) target_semaphore(%93 : memref<!tpu.dma_semaphore, #tpu.memory_space<semaphore_mem>>)
    %c24_i32_64 = arith.constant 24 : i32
    %94 = arith.muli %arg0, %c24_i32_64 : i32
    %c8_i32_65 = arith.constant 8 : i32
    %95 = arith.addi %c8_i32_65, %94 : i32
    %c6_i32_66 = arith.constant 6 : i32
    %96 = arith.addi %95, %c6_i32_66 : i32
    %97 = arith.index_cast %96 : i32 to index
    %98 = memref.load %arg1[%97] : memref<56xi32, #tpu.memory_space<smem>>
    %c1_i32_67 = arith.constant 1 : i32
    %c0_i32_68 = arith.constant 0 : i32
    %99 = tpu.memref_slice %arg2[%98, %c0_i32_68] : memref<64x32xf32, #tpu.memory_space<any>> -> memref<1x32xf32, #tpu.memory_space<any>>
    %c6_i32_69 = arith.constant 6 : i32
    %c0_i32_70 = arith.constant 0 : i32
    %100 = tpu.memref_slice %arg5[%c6_i32_69, %c0_i32_70] : memref<24x32xf32, #tpu.memory_space<vmem>> -> memref<1x32xf32, #tpu.memory_space<vmem>>
    %101 = tpu.memref_slice %arg6[%c1_i32_67] : memref<2x!tpu.dma_semaphore, #tpu.memory_space<semaphore_mem>> -> memref<1x!tpu.dma_semaphore, #tpu.memory_space<semaphore_mem>>
    %102 = tpu.memref_squeeze %101 : memref<1x!tpu.dma_semaphore, #tpu.memory_space<semaphore_mem>> -> memref<!tpu.dma_semaphore, #tpu.memory_space<semaphore_mem>>
    tpu.enqueue_dma source(%99 : memref<1x32xf32, #tpu.memory_space<any>>) target(%100 : memref<1x32xf32, #tpu.memory_space<vmem>>) target_semaphore(%102 : memref<!tpu.dma_semaphore, #tpu.memory_space<semaphore_mem>>)
    %c24_i32_71 = arith.constant 24 : i32
    %103 = arith.muli %arg0, %c24_i32_71 : i32
    %c8_i32_72 = arith.constant 8 : i32
    %104 = arith.addi %c8_i32_72, %103 : i32
    %c7_i32_73 = arith.constant 7 : i32
    %105 = arith.addi %104, %c7_i32_73 : i32
    %106 = arith.index_cast %105 : i32 to index
    %107 = memref.load %arg1[%106] : memref<56xi32, #tpu.memory_space<smem>>
    %c1_i32_74 = arith.constant 1 : i32
    %c0_i32_75 = arith.constant 0 : i32
    %108 = tpu.memref_slice %arg2[%107, %c0_i32_75] : memref<64x32xf32, #tpu.memory_space<any>> -> memref<1x32xf32, #tpu.memory_space<any>>
    %c7_i32_76 = arith.constant 7 : i32
    %c0_i32_77 = arith.constant 0 : i32
    %109 = tpu.memref_slice %arg5[%c7_i32_76, %c0_i32_77] : memref<24x32xf32, #tpu.memory_space<vmem>> -> memref<1x32xf32, #tpu.memory_space<vmem>>
    %110 = tpu.memref_slice %arg6[%c1_i32_74] : memref<2x!tpu.dma_semaphore, #tpu.memory_space<semaphore_mem>> -> memref<1x!tpu.dma_semaphore, #tpu.memory_space<semaphore_mem>>
    %111 = tpu.memref_squeeze %110 : memref<1x!tpu.dma_semaphore, #tpu.memory_space<semaphore_mem>> -> memref<!tpu.dma_semaphore, #tpu.memory_space<semaphore_mem>>
    tpu.enqueue_dma source(%108 : memref<1x32xf32, #tpu.memory_space<any>>) target(%109 : memref<1x32xf32, #tpu.memory_space<vmem>>) target_semaphore(%111 : memref<!tpu.dma_semaphore, #tpu.memory_space<semaphore_mem>>)
    %c24_i32_78 = arith.constant 24 : i32
    %112 = arith.muli %arg0, %c24_i32_78 : i32
    %c8_i32_79 = arith.constant 8 : i32
    %113 = arith.addi %c8_i32_79, %112 : i32
    %c8_i32_80 = arith.constant 8 : i32
    %114 = arith.addi %113, %c8_i32_80 : i32
    %115 = arith.index_cast %114 : i32 to index
    %116 = memref.load %arg1[%115] : memref<56xi32, #tpu.memory_space<smem>>
    %c1_i32_81 = arith.constant 1 : i32
    %c0_i32_82 = arith.constant 0 : i32
    %117 = tpu.memref_slice %arg2[%116, %c0_i32_82] : memref<64x32xf32, #tpu.memory_space<any>> -> memref<1x32xf32, #tpu.memory_space<any>>
    %c8_i32_83 = arith.constant 8 : i32
    %c0_i32_84 = arith.constant 0 : i32
    %118 = tpu.memref_slice %arg5[%c8_i32_83, %c0_i32_84] : memref<24x32xf32, #tpu.memory_space<vmem>> -> memref<1x32xf32, #tpu.memory_space<vmem>>
    %119 = tpu.memref_slice %arg6[%c1_i32_81] : memref<2x!tpu.dma_semaphore, #tpu.memory_space<semaphore_mem>> -> memref<1x!tpu.dma_semaphore, #tpu.memory_space<semaphore_mem>>
    %120 = tpu.memref_squeeze %119 : memref<1x!tpu.dma_semaphore, #tpu.memory_space<semaphore_mem>> -> memref<!tpu.dma_semaphore, #tpu.memory_space<semaphore_mem>>
    tpu.enqueue_dma source(%117 : memref<1x32xf32, #tpu.memory_space<any>>) target(%118 : memref<1x32xf32, #tpu.memory_space<vmem>>) target_semaphore(%120 : memref<!tpu.dma_semaphore, #tpu.memory_space<semaphore_mem>>)
    %c24_i32_85 = arith.constant 24 : i32
    %121 = arith.muli %arg0, %c24_i32_85 : i32
    %c8_i32_86 = arith.constant 8 : i32
    %122 = arith.addi %c8_i32_86, %121 : i32
    %c9_i32 = arith.constant 9 : i32
    %123 = arith.addi %122, %c9_i32 : i32
    %124 = arith.index_cast %123 : i32 to index
    %125 = memref.load %arg1[%124] : memref<56xi32, #tpu.memory_space<smem>>
    %c1_i32_87 = arith.constant 1 : i32
    %c0_i32_88 = arith.constant 0 : i32
    %126 = tpu.memref_slice %arg2[%125, %c0_i32_88] : memref<64x32xf32, #tpu.memory_space<any>> -> memref<1x32xf32, #tpu.memory_space<any>>
    %c9_i32_89 = arith.constant 9 : i32
    %c0_i32_90 = arith.constant 0 : i32
    %127 = tpu.memref_slice %arg5[%c9_i32_89, %c0_i32_90] : memref<24x32xf32, #tpu.memory_space<vmem>> -> memref<1x32xf32, #tpu.memory_space<vmem>>
    %128 = tpu.memref_slice %arg6[%c1_i32_87] : memref<2x!tpu.dma_semaphore, #tpu.memory_space<semaphore_mem>> -> memref<1x!tpu.dma_semaphore, #tpu.memory_space<semaphore_mem>>
    %129 = tpu.memref_squeeze %128 : memref<1x!tpu.dma_semaphore, #tpu.memory_space<semaphore_mem>> -> memref<!tpu.dma_semaphore, #tpu.memory_space<semaphore_mem>>
    tpu.enqueue_dma source(%126 : memref<1x32xf32, #tpu.memory_space<any>>) target(%127 : memref<1x32xf32, #tpu.memory_space<vmem>>) target_semaphore(%129 : memref<!tpu.dma_semaphore, #tpu.memory_space<semaphore_mem>>)
    %c24_i32_91 = arith.constant 24 : i32
    %130 = arith.muli %arg0, %c24_i32_91 : i32
    %c8_i32_92 = arith.constant 8 : i32
    %131 = arith.addi %c8_i32_92, %130 : i32
    %c10_i32 = arith.constant 10 : i32
    %132 = arith.addi %131, %c10_i32 : i32
    %133 = arith.index_cast %132 : i32 to index
    %134 = memref.load %arg1[%133] : memref<56xi32, #tpu.memory_space<smem>>
    %c1_i32_93 = arith.constant 1 : i32
    %c0_i32_94 = arith.constant 0 : i32
    %135 = tpu.memref_slice %arg2[%134, %c0_i32_94] : memref<64x32xf32, #tpu.memory_space<any>> -> memref<1x32xf32, #tpu.memory_space<any>>
    %c10_i32_95 = arith.constant 10 : i32
    %c0_i32_96 = arith.constant 0 : i32
    %136 = tpu.memref_slice %arg5[%c10_i32_95, %c0_i32_96] : memref<24x32xf32, #tpu.memory_space<vmem>> -> memref<1x32xf32, #tpu.memory_space<vmem>>
    %137 = tpu.memref_slice %arg6[%c1_i32_93] : memref<2x!tpu.dma_semaphore, #tpu.memory_space<semaphore_mem>> -> memref<1x!tpu.dma_semaphore, #tpu.memory_space<semaphore_mem>>
    %138 = tpu.memref_squeeze %137 : memref<1x!tpu.dma_semaphore, #tpu.memory_space<semaphore_mem>> -> memref<!tpu.dma_semaphore, #tpu.memory_space<semaphore_mem>>
    tpu.enqueue_dma source(%135 : memref<1x32xf32, #tpu.memory_space<any>>) target(%136 : memref<1x32xf32, #tpu.memory_space<vmem>>) target_semaphore(%138 : memref<!tpu.dma_semaphore, #tpu.memory_space<semaphore_mem>>)
    %c24_i32_97 = arith.constant 24 : i32
    %139 = arith.muli %arg0, %c24_i32_97 : i32
    %c8_i32_98 = arith.constant 8 : i32
    %140 = arith.addi %c8_i32_98, %139 : i32
    %c11_i32 = arith.constant 11 : i32
    %141 = arith.addi %140, %c11_i32 : i32
    %142 = arith.index_cast %141 : i32 to index
    %143 = memref.load %arg1[%142] : memref<56xi32, #tpu.memory_space<smem>>
    %c1_i32_99 = arith.constant 1 : i32
    %c0_i32_100 = arith.constant 0 : i32
    %144 = tpu.memref_slice %arg2[%143, %c0_i32_100] : memref<64x32xf32, #tpu.memory_space<any>> -> memref<1x32xf32, #tpu.memory_space<any>>
    %c11_i32_101 = arith.constant 11 : i32
    %c0_i32_102 = arith.constant 0 : i32
    %145 = tpu.memref_slice %arg5[%c11_i32_101, %c0_i32_102] : memref<24x32xf32, #tpu.memory_space<vmem>> -> memref<1x32xf32, #tpu.memory_space<vmem>>
    %146 = tpu.memref_slice %arg6[%c1_i32_99] : memref<2x!tpu.dma_semaphore, #tpu.memory_space<semaphore_mem>> -> memref<1x!tpu.dma_semaphore, #tpu.memory_space<semaphore_mem>>
    %147 = tpu.memref_squeeze %146 : memref<1x!tpu.dma_semaphore, #tpu.memory_space<semaphore_mem>> -> memref<!tpu.dma_semaphore, #tpu.memory_space<semaphore_mem>>
    tpu.enqueue_dma source(%144 : memref<1x32xf32, #tpu.memory_space<any>>) target(%145 : memref<1x32xf32, #tpu.memory_space<vmem>>) target_semaphore(%147 : memref<!tpu.dma_semaphore, #tpu.memory_space<semaphore_mem>>)
    %c24_i32_103 = arith.constant 24 : i32
    %148 = arith.muli %arg0, %c24_i32_103 : i32
    %c8_i32_104 = arith.constant 8 : i32
    %149 = arith.addi %c8_i32_104, %148 : i32
    %c12_i32 = arith.constant 12 : i32
    %150 = arith.addi %149, %c12_i32 : i32
    %151 = arith.index_cast %150 : i32 to index
    %152 = memref.load %arg1[%151] : memref<56xi32, #tpu.memory_space<smem>>
    %c1_i32_105 = arith.constant 1 : i32
    %c0_i32_106 = arith.constant 0 : i32
    %153 = tpu.memref_slice %arg2[%152, %c0_i32_106] : memref<64x32xf32, #tpu.memory_space<any>> -> memref<1x32xf32, #tpu.memory_space<any>>
    %c12_i32_107 = arith.constant 12 : i32
    %c0_i32_108 = arith.constant 0 : i32
    %154 = tpu.memref_slice %arg5[%c12_i32_107, %c0_i32_108] : memref<24x32xf32, #tpu.memory_space<vmem>> -> memref<1x32xf32, #tpu.memory_space<vmem>>
    %155 = tpu.memref_slice %arg6[%c1_i32_105] : memref<2x!tpu.dma_semaphore, #tpu.memory_space<semaphore_mem>> -> memref<1x!tpu.dma_semaphore, #tpu.memory_space<semaphore_mem>>
    %156 = tpu.memref_squeeze %155 : memref<1x!tpu.dma_semaphore, #tpu.memory_space<semaphore_mem>> -> memref<!tpu.dma_semaphore, #tpu.memory_space<semaphore_mem>>
    tpu.enqueue_dma source(%153 : memref<1x32xf32, #tpu.memory_space<any>>) target(%154 : memref<1x32xf32, #tpu.memory_space<vmem>>) target_semaphore(%156 : memref<!tpu.dma_semaphore, #tpu.memory_space<semaphore_mem>>)
    %c24_i32_109 = arith.constant 24 : i32
    %157 = arith.muli %arg0, %c24_i32_109 : i32
    %c8_i32_110 = arith.constant 8 : i32
    %158 = arith.addi %c8_i32_110, %157 : i32
    %c13_i32 = arith.constant 13 : i32
    %159 = arith.addi %158, %c13_i32 : i32
    %160 = arith.index_cast %159 : i32 to index
    %161 = memref.load %arg1[%160] : memref<56xi32, #tpu.memory_space<smem>>
    %c1_i32_111 = arith.constant 1 : i32
    %c0_i32_112 = arith.constant 0 : i32
    %162 = tpu.memref_slice %arg2[%161, %c0_i32_112] : memref<64x32xf32, #tpu.memory_space<any>> -> memref<1x32xf32, #tpu.memory_space<any>>
    %c13_i32_113 = arith.constant 13 : i32
    %c0_i32_114 = arith.constant 0 : i32
    %163 = tpu.memref_slice %arg5[%c13_i32_113, %c0_i32_114] : memref<24x32xf32, #tpu.memory_space<vmem>> -> memref<1x32xf32, #tpu.memory_space<vmem>>
    %164 = tpu.memref_slice %arg6[%c1_i32_111] : memref<2x!tpu.dma_semaphore, #tpu.memory_space<semaphore_mem>> -> memref<1x!tpu.dma_semaphore, #tpu.memory_space<semaphore_mem>>
    %165 = tpu.memref_squeeze %164 : memref<1x!tpu.dma_semaphore, #tpu.memory_space<semaphore_mem>> -> memref<!tpu.dma_semaphore, #tpu.memory_space<semaphore_mem>>
    tpu.enqueue_dma source(%162 : memref<1x32xf32, #tpu.memory_space<any>>) target(%163 : memref<1x32xf32, #tpu.memory_space<vmem>>) target_semaphore(%165 : memref<!tpu.dma_semaphore, #tpu.memory_space<semaphore_mem>>)
    %c24_i32_115 = arith.constant 24 : i32
    %166 = arith.muli %arg0, %c24_i32_115 : i32
    %c8_i32_116 = arith.constant 8 : i32
    %167 = arith.addi %c8_i32_116, %166 : i32
    %c14_i32 = arith.constant 14 : i32
    %168 = arith.addi %167, %c14_i32 : i32
    %169 = arith.index_cast %168 : i32 to index
    %170 = memref.load %arg1[%169] : memref<56xi32, #tpu.memory_space<smem>>
    %c1_i32_117 = arith.constant 1 : i32
    %c0_i32_118 = arith.constant 0 : i32
    %171 = tpu.memref_slice %arg2[%170, %c0_i32_118] : memref<64x32xf32, #tpu.memory_space<any>> -> memref<1x32xf32, #tpu.memory_space<any>>
    %c14_i32_119 = arith.constant 14 : i32
    %c0_i32_120 = arith.constant 0 : i32
    %172 = tpu.memref_slice %arg5[%c14_i32_119, %c0_i32_120] : memref<24x32xf32, #tpu.memory_space<vmem>> -> memref<1x32xf32, #tpu.memory_space<vmem>>
    %173 = tpu.memref_slice %arg6[%c1_i32_117] : memref<2x!tpu.dma_semaphore, #tpu.memory_space<semaphore_mem>> -> memref<1x!tpu.dma_semaphore, #tpu.memory_space<semaphore_mem>>
    %174 = tpu.memref_squeeze %173 : memref<1x!tpu.dma_semaphore, #tpu.memory_space<semaphore_mem>> -> memref<!tpu.dma_semaphore, #tpu.memory_space<semaphore_mem>>
    tpu.enqueue_dma source(%171 : memref<1x32xf32, #tpu.memory_space<any>>) target(%172 : memref<1x32xf32, #tpu.memory_space<vmem>>) target_semaphore(%174 : memref<!tpu.dma_semaphore, #tpu.memory_space<semaphore_mem>>)
    %c24_i32_121 = arith.constant 24 : i32
    %175 = arith.muli %arg0, %c24_i32_121 : i32
    %c8_i32_122 = arith.constant 8 : i32
    %176 = arith.addi %c8_i32_122, %175 : i32
    %c15_i32 = arith.constant 15 : i32
    %177 = arith.addi %176, %c15_i32 : i32
    %178 = arith.index_cast %177 : i32 to index
    %179 = memref.load %arg1[%178] : memref<56xi32, #tpu.memory_space<smem>>
    %c1_i32_123 = arith.constant 1 : i32
    %c0_i32_124 = arith.constant 0 : i32
    %180 = tpu.memref_slice %arg2[%179, %c0_i32_124] : memref<64x32xf32, #tpu.memory_space<any>> -> memref<1x32xf32, #tpu.memory_space<any>>
    %c15_i32_125 = arith.constant 15 : i32
    %c0_i32_126 = arith.constant 0 : i32
    %181 = tpu.memref_slice %arg5[%c15_i32_125, %c0_i32_126] : memref<24x32xf32, #tpu.memory_space<vmem>> -> memref<1x32xf32, #tpu.memory_space<vmem>>
    %182 = tpu.memref_slice %arg6[%c1_i32_123] : memref<2x!tpu.dma_semaphore, #tpu.memory_space<semaphore_mem>> -> memref<1x!tpu.dma_semaphore, #tpu.memory_space<semaphore_mem>>
    %183 = tpu.memref_squeeze %182 : memref<1x!tpu.dma_semaphore, #tpu.memory_space<semaphore_mem>> -> memref<!tpu.dma_semaphore, #tpu.memory_space<semaphore_mem>>
    tpu.enqueue_dma source(%180 : memref<1x32xf32, #tpu.memory_space<any>>) target(%181 : memref<1x32xf32, #tpu.memory_space<vmem>>) target_semaphore(%183 : memref<!tpu.dma_semaphore, #tpu.memory_space<semaphore_mem>>)
    %c24_i32_127 = arith.constant 24 : i32
    %184 = arith.muli %arg0, %c24_i32_127 : i32
    %c8_i32_128 = arith.constant 8 : i32
    %185 = arith.addi %c8_i32_128, %184 : i32
    %c16_i32 = arith.constant 16 : i32
    %186 = arith.addi %185, %c16_i32 : i32
    %187 = arith.index_cast %186 : i32 to index
    %188 = memref.load %arg1[%187] : memref<56xi32, #tpu.memory_space<smem>>
    %c1_i32_129 = arith.constant 1 : i32
    %c0_i32_130 = arith.constant 0 : i32
    %189 = tpu.memref_slice %arg2[%188, %c0_i32_130] : memref<64x32xf32, #tpu.memory_space<any>> -> memref<1x32xf32, #tpu.memory_space<any>>
    %c16_i32_131 = arith.constant 16 : i32
    %c0_i32_132 = arith.constant 0 : i32
    %190 = tpu.memref_slice %arg5[%c16_i32_131, %c0_i32_132] : memref<24x32xf32, #tpu.memory_space<vmem>> -> memref<1x32xf32, #tpu.memory_space<vmem>>
    %191 = tpu.memref_slice %arg6[%c1_i32_129] : memref<2x!tpu.dma_semaphore, #tpu.memory_space<semaphore_mem>> -> memref<1x!tpu.dma_semaphore, #tpu.memory_space<semaphore_mem>>
    %192 = tpu.memref_squeeze %191 : memref<1x!tpu.dma_semaphore, #tpu.memory_space<semaphore_mem>> -> memref<!tpu.dma_semaphore, #tpu.memory_space<semaphore_mem>>
    tpu.enqueue_dma source(%189 : memref<1x32xf32, #tpu.memory_space<any>>) target(%190 : memref<1x32xf32, #tpu.memory_space<vmem>>) target_semaphore(%192 : memref<!tpu.dma_semaphore, #tpu.memory_space<semaphore_mem>>)
    %c24_i32_133 = arith.constant 24 : i32
    %193 = arith.muli %arg0, %c24_i32_133 : i32
    %c8_i32_134 = arith.constant 8 : i32
    %194 = arith.addi %c8_i32_134, %193 : i32
    %c17_i32 = arith.constant 17 : i32
    %195 = arith.addi %194, %c17_i32 : i32
    %196 = arith.index_cast %195 : i32 to index
    %197 = memref.load %arg1[%196] : memref<56xi32, #tpu.memory_space<smem>>
    %c1_i32_135 = arith.constant 1 : i32
    %c0_i32_136 = arith.constant 0 : i32
    %198 = tpu.memref_slice %arg2[%197, %c0_i32_136] : memref<64x32xf32, #tpu.memory_space<any>> -> memref<1x32xf32, #tpu.memory_space<any>>
    %c17_i32_137 = arith.constant 17 : i32
    %c0_i32_138 = arith.constant 0 : i32
    %199 = tpu.memref_slice %arg5[%c17_i32_137, %c0_i32_138] : memref<24x32xf32, #tpu.memory_space<vmem>> -> memref<1x32xf32, #tpu.memory_space<vmem>>
    %200 = tpu.memref_slice %arg6[%c1_i32_135] : memref<2x!tpu.dma_semaphore, #tpu.memory_space<semaphore_mem>> -> memref<1x!tpu.dma_semaphore, #tpu.memory_space<semaphore_mem>>
    %201 = tpu.memref_squeeze %200 : memref<1x!tpu.dma_semaphore, #tpu.memory_space<semaphore_mem>> -> memref<!tpu.dma_semaphore, #tpu.memory_space<semaphore_mem>>
    tpu.enqueue_dma source(%198 : memref<1x32xf32, #tpu.memory_space<any>>) target(%199 : memref<1x32xf32, #tpu.memory_space<vmem>>) target_semaphore(%201 : memref<!tpu.dma_semaphore, #tpu.memory_space<semaphore_mem>>)
    %c24_i32_139 = arith.constant 24 : i32
    %202 = arith.muli %arg0, %c24_i32_139 : i32
    %c8_i32_140 = arith.constant 8 : i32
    %203 = arith.addi %c8_i32_140, %202 : i32
    %c18_i32 = arith.constant 18 : i32
    %204 = arith.addi %203, %c18_i32 : i32
    %205 = arith.index_cast %204 : i32 to index
    %206 = memref.load %arg1[%205] : memref<56xi32, #tpu.memory_space<smem>>
    %c1_i32_141 = arith.constant 1 : i32
    %c0_i32_142 = arith.constant 0 : i32
    %207 = tpu.memref_slice %arg2[%206, %c0_i32_142] : memref<64x32xf32, #tpu.memory_space<any>> -> memref<1x32xf32, #tpu.memory_space<any>>
    %c18_i32_143 = arith.constant 18 : i32
    %c0_i32_144 = arith.constant 0 : i32
    %208 = tpu.memref_slice %arg5[%c18_i32_143, %c0_i32_144] : memref<24x32xf32, #tpu.memory_space<vmem>> -> memref<1x32xf32, #tpu.memory_space<vmem>>
    %209 = tpu.memref_slice %arg6[%c1_i32_141] : memref<2x!tpu.dma_semaphore, #tpu.memory_space<semaphore_mem>> -> memref<1x!tpu.dma_semaphore, #tpu.memory_space<semaphore_mem>>
    %210 = tpu.memref_squeeze %209 : memref<1x!tpu.dma_semaphore, #tpu.memory_space<semaphore_mem>> -> memref<!tpu.dma_semaphore, #tpu.memory_space<semaphore_mem>>
    tpu.enqueue_dma source(%207 : memref<1x32xf32, #tpu.memory_space<any>>) target(%208 : memref<1x32xf32, #tpu.memory_space<vmem>>) target_semaphore(%210 : memref<!tpu.dma_semaphore, #tpu.memory_space<semaphore_mem>>)
    %c24_i32_145 = arith.constant 24 : i32
    %211 = arith.muli %arg0, %c24_i32_145 : i32
    %c8_i32_146 = arith.constant 8 : i32
    %212 = arith.addi %c8_i32_146, %211 : i32
    %c19_i32 = arith.constant 19 : i32
    %213 = arith.addi %212, %c19_i32 : i32
    %214 = arith.index_cast %213 : i32 to index
    %215 = memref.load %arg1[%214] : memref<56xi32, #tpu.memory_space<smem>>
    %c1_i32_147 = arith.constant 1 : i32
    %c0_i32_148 = arith.constant 0 : i32
    %216 = tpu.memref_slice %arg2[%215, %c0_i32_148] : memref<64x32xf32, #tpu.memory_space<any>> -> memref<1x32xf32, #tpu.memory_space<any>>
    %c19_i32_149 = arith.constant 19 : i32
    %c0_i32_150 = arith.constant 0 : i32
    %217 = tpu.memref_slice %arg5[%c19_i32_149, %c0_i32_150] : memref<24x32xf32, #tpu.memory_space<vmem>> -> memref<1x32xf32, #tpu.memory_space<vmem>>
    %218 = tpu.memref_slice %arg6[%c1_i32_147] : memref<2x!tpu.dma_semaphore, #tpu.memory_space<semaphore_mem>> -> memref<1x!tpu.dma_semaphore, #tpu.memory_space<semaphore_mem>>
    %219 = tpu.memref_squeeze %218 : memref<1x!tpu.dma_semaphore, #tpu.memory_space<semaphore_mem>> -> memref<!tpu.dma_semaphore, #tpu.memory_space<semaphore_mem>>
    tpu.enqueue_dma source(%216 : memref<1x32xf32, #tpu.memory_space<any>>) target(%217 : memref<1x32xf32, #tpu.memory_space<vmem>>) target_semaphore(%219 : memref<!tpu.dma_semaphore, #tpu.memory_space<semaphore_mem>>)
    %c24_i32_151 = arith.constant 24 : i32
    %220 = arith.muli %arg0, %c24_i32_151 : i32
    %c8_i32_152 = arith.constant 8 : i32
    %221 = arith.addi %c8_i32_152, %220 : i32
    %c20_i32 = arith.constant 20 : i32
    %222 = arith.addi %221, %c20_i32 : i32
    %223 = arith.index_cast %222 : i32 to index
    %224 = memref.load %arg1[%223] : memref<56xi32, #tpu.memory_space<smem>>
    %c1_i32_153 = arith.constant 1 : i32
    %c0_i32_154 = arith.constant 0 : i32
    %225 = tpu.memref_slice %arg2[%224, %c0_i32_154] : memref<64x32xf32, #tpu.memory_space<any>> -> memref<1x32xf32, #tpu.memory_space<any>>
    %c20_i32_155 = arith.constant 20 : i32
    %c0_i32_156 = arith.constant 0 : i32
    %226 = tpu.memref_slice %arg5[%c20_i32_155, %c0_i32_156] : memref<24x32xf32, #tpu.memory_space<vmem>> -> memref<1x32xf32, #tpu.memory_space<vmem>>
    %227 = tpu.memref_slice %arg6[%c1_i32_153] : memref<2x!tpu.dma_semaphore, #tpu.memory_space<semaphore_mem>> -> memref<1x!tpu.dma_semaphore, #tpu.memory_space<semaphore_mem>>
    %228 = tpu.memref_squeeze %227 : memref<1x!tpu.dma_semaphore, #tpu.memory_space<semaphore_mem>> -> memref<!tpu.dma_semaphore, #tpu.memory_space<semaphore_mem>>
    tpu.enqueue_dma source(%225 : memref<1x32xf32, #tpu.memory_space<any>>) target(%226 : memref<1x32xf32, #tpu.memory_space<vmem>>) target_semaphore(%228 : memref<!tpu.dma_semaphore, #tpu.memory_space<semaphore_mem>>)
    %c24_i32_157 = arith.constant 24 : i32
    %229 = arith.muli %arg0, %c24_i32_157 : i32
    %c8_i32_158 = arith.constant 8 : i32
    %230 = arith.addi %c8_i32_158, %229 : i32
    %c21_i32 = arith.constant 21 : i32
    %231 = arith.addi %230, %c21_i32 : i32
    %232 = arith.index_cast %231 : i32 to index
    %233 = memref.load %arg1[%232] : memref<56xi32, #tpu.memory_space<smem>>
    %c1_i32_159 = arith.constant 1 : i32
    %c0_i32_160 = arith.constant 0 : i32
    %234 = tpu.memref_slice %arg2[%233, %c0_i32_160] : memref<64x32xf32, #tpu.memory_space<any>> -> memref<1x32xf32, #tpu.memory_space<any>>
    %c21_i32_161 = arith.constant 21 : i32
    %c0_i32_162 = arith.constant 0 : i32
    %235 = tpu.memref_slice %arg5[%c21_i32_161, %c0_i32_162] : memref<24x32xf32, #tpu.memory_space<vmem>> -> memref<1x32xf32, #tpu.memory_space<vmem>>
    %236 = tpu.memref_slice %arg6[%c1_i32_159] : memref<2x!tpu.dma_semaphore, #tpu.memory_space<semaphore_mem>> -> memref<1x!tpu.dma_semaphore, #tpu.memory_space<semaphore_mem>>
    %237 = tpu.memref_squeeze %236 : memref<1x!tpu.dma_semaphore, #tpu.memory_space<semaphore_mem>> -> memref<!tpu.dma_semaphore, #tpu.memory_space<semaphore_mem>>
    tpu.enqueue_dma source(%234 : memref<1x32xf32, #tpu.memory_space<any>>) target(%235 : memref<1x32xf32, #tpu.memory_space<vmem>>) target_semaphore(%237 : memref<!tpu.dma_semaphore, #tpu.memory_space<semaphore_mem>>)
    %c24_i32_163 = arith.constant 24 : i32
    %238 = arith.muli %arg0, %c24_i32_163 : i32
    %c8_i32_164 = arith.constant 8 : i32
    %239 = arith.addi %c8_i32_164, %238 : i32
    %c22_i32 = arith.constant 22 : i32
    %240 = arith.addi %239, %c22_i32 : i32
    %241 = arith.index_cast %240 : i32 to index
    %242 = memref.load %arg1[%241] : memref<56xi32, #tpu.memory_space<smem>>
    %c1_i32_165 = arith.constant 1 : i32
    %c0_i32_166 = arith.constant 0 : i32
    %243 = tpu.memref_slice %arg2[%242, %c0_i32_166] : memref<64x32xf32, #tpu.memory_space<any>> -> memref<1x32xf32, #tpu.memory_space<any>>
    %c22_i32_167 = arith.constant 22 : i32
    %c0_i32_168 = arith.constant 0 : i32
    %244 = tpu.memref_slice %arg5[%c22_i32_167, %c0_i32_168] : memref<24x32xf32, #tpu.memory_space<vmem>> -> memref<1x32xf32, #tpu.memory_space<vmem>>
    %245 = tpu.memref_slice %arg6[%c1_i32_165] : memref<2x!tpu.dma_semaphore, #tpu.memory_space<semaphore_mem>> -> memref<1x!tpu.dma_semaphore, #tpu.memory_space<semaphore_mem>>
    %246 = tpu.memref_squeeze %245 : memref<1x!tpu.dma_semaphore, #tpu.memory_space<semaphore_mem>> -> memref<!tpu.dma_semaphore, #tpu.memory_space<semaphore_mem>>
    tpu.enqueue_dma source(%243 : memref<1x32xf32, #tpu.memory_space<any>>) target(%244 : memref<1x32xf32, #tpu.memory_space<vmem>>) target_semaphore(%246 : memref<!tpu.dma_semaphore, #tpu.memory_space<semaphore_mem>>)
    %c24_i32_169 = arith.constant 24 : i32
    %247 = arith.muli %arg0, %c24_i32_169 : i32
    %c8_i32_170 = arith.constant 8 : i32
    %248 = arith.addi %c8_i32_170, %247 : i32
    %c23_i32 = arith.constant 23 : i32
    %249 = arith.addi %248, %c23_i32 : i32
    %250 = arith.index_cast %249 : i32 to index
    %251 = memref.load %arg1[%250] : memref<56xi32, #tpu.memory_space<smem>>
    %c1_i32_171 = arith.constant 1 : i32
    %c0_i32_172 = arith.constant 0 : i32
    %252 = tpu.memref_slice %arg2[%251, %c0_i32_172] : memref<64x32xf32, #tpu.memory_space<any>> -> memref<1x32xf32, #tpu.memory_space<any>>
    %c23_i32_173 = arith.constant 23 : i32
    %c0_i32_174 = arith.constant 0 : i32
    %253 = tpu.memref_slice %arg5[%c23_i32_173, %c0_i32_174] : memref<24x32xf32, #tpu.memory_space<vmem>> -> memref<1x32xf32, #tpu.memory_space<vmem>>
    %254 = tpu.memref_slice %arg6[%c1_i32_171] : memref<2x!tpu.dma_semaphore, #tpu.memory_space<semaphore_mem>> -> memref<1x!tpu.dma_semaphore, #tpu.memory_space<semaphore_mem>>
    %255 = tpu.memref_squeeze %254 : memref<1x!tpu.dma_semaphore, #tpu.memory_space<semaphore_mem>> -> memref<!tpu.dma_semaphore, #tpu.memory_space<semaphore_mem>>
    tpu.enqueue_dma source(%252 : memref<1x32xf32, #tpu.memory_space<any>>) target(%253 : memref<1x32xf32, #tpu.memory_space<vmem>>) target_semaphore(%255 : memref<!tpu.dma_semaphore, #tpu.memory_space<semaphore_mem>>)
    %c0_i32_175 = arith.constant 0 : i32
    %c0_i32_176 = arith.constant 0 : i32
    %c0_i32_177 = arith.constant 0 : i32
    %256 = tpu.memref_slice %arg2[%c0_i32_176, %c0_i32_177] : memref<64x32xf32, #tpu.memory_space<any>> -> memref<1x32xf32, #tpu.memory_space<any>>
    %c0_i32_178 = arith.constant 0 : i32
    %c0_i32_179 = arith.constant 0 : i32
    %257 = tpu.memref_slice %arg4[%c0_i32_178, %c0_i32_179] : memref<8x32xf32, #tpu.memory_space<vmem>> -> memref<1x32xf32, #tpu.memory_space<vmem>>
    %258 = tpu.memref_slice %arg6[%c0_i32_175] : memref<2x!tpu.dma_semaphore, #tpu.memory_space<semaphore_mem>> -> memref<1x!tpu.dma_semaphore, #tpu.memory_space<semaphore_mem>>
    %259 = tpu.memref_squeeze %258 : memref<1x!tpu.dma_semaphore, #tpu.memory_space<semaphore_mem>> -> memref<!tpu.dma_semaphore, #tpu.memory_space<semaphore_mem>>
    tpu.wait_dma2 semaphore(%259 : memref<!tpu.dma_semaphore, #tpu.memory_space<semaphore_mem>>) src(%256 : memref<1x32xf32, #tpu.memory_space<any>>) dst(%257 : memref<1x32xf32, #tpu.memory_space<vmem>>)
    %c0_i32_180 = arith.constant 0 : i32
    %c0_i32_181 = arith.constant 0 : i32
    %c0_i32_182 = arith.constant 0 : i32
    %260 = tpu.memref_slice %arg2[%c0_i32_181, %c0_i32_182] : memref<64x32xf32, #tpu.memory_space<any>> -> memref<1x32xf32, #tpu.memory_space<any>>
    %c1_i32_183 = arith.constant 1 : i32
    %c0_i32_184 = arith.constant 0 : i32
    %261 = tpu.memref_slice %arg4[%c1_i32_183, %c0_i32_184] : memref<8x32xf32, #tpu.memory_space<vmem>> -> memref<1x32xf32, #tpu.memory_space<vmem>>
    %262 = tpu.memref_slice %arg6[%c0_i32_180] : memref<2x!tpu.dma_semaphore, #tpu.memory_space<semaphore_mem>> -> memref<1x!tpu.dma_semaphore, #tpu.memory_space<semaphore_mem>>
    %263 = tpu.memref_squeeze %262 : memref<1x!tpu.dma_semaphore, #tpu.memory_space<semaphore_mem>> -> memref<!tpu.dma_semaphore, #tpu.memory_space<semaphore_mem>>
    tpu.wait_dma2 semaphore(%263 : memref<!tpu.dma_semaphore, #tpu.memory_space<semaphore_mem>>) src(%260 : memref<1x32xf32, #tpu.memory_space<any>>) dst(%261 : memref<1x32xf32, #tpu.memory_space<vmem>>)
    %c0_i32_185 = arith.constant 0 : i32
    %c0_i32_186 = arith.constant 0 : i32
    %c0_i32_187 = arith.constant 0 : i32
    %264 = tpu.memref_slice %arg2[%c0_i32_186, %c0_i32_187] : memref<64x32xf32, #tpu.memory_space<any>> -> memref<1x32xf32, #tpu.memory_space<any>>
    %c2_i32_188 = arith.constant 2 : i32
    %c0_i32_189 = arith.constant 0 : i32
    %265 = tpu.memref_slice %arg4[%c2_i32_188, %c0_i32_189] : memref<8x32xf32, #tpu.memory_space<vmem>> -> memref<1x32xf32, #tpu.memory_space<vmem>>
    %266 = tpu.memref_slice %arg6[%c0_i32_185] : memref<2x!tpu.dma_semaphore, #tpu.memory_space<semaphore_mem>> -> memref<1x!tpu.dma_semaphore, #tpu.memory_space<semaphore_mem>>
    %267 = tpu.memref_squeeze %266 : memref<1x!tpu.dma_semaphore, #tpu.memory_space<semaphore_mem>> -> memref<!tpu.dma_semaphore, #tpu.memory_space<semaphore_mem>>
    tpu.wait_dma2 semaphore(%267 : memref<!tpu.dma_semaphore, #tpu.memory_space<semaphore_mem>>) src(%264 : memref<1x32xf32, #tpu.memory_space<any>>) dst(%265 : memref<1x32xf32, #tpu.memory_space<vmem>>)
    %c0_i32_190 = arith.constant 0 : i32
    %c0_i32_191 = arith.constant 0 : i32
    %c0_i32_192 = arith.constant 0 : i32
    %268 = tpu.memref_slice %arg2[%c0_i32_191, %c0_i32_192] : memref<64x32xf32, #tpu.memory_space<any>> -> memref<1x32xf32, #tpu.memory_space<any>>
    %c3_i32_193 = arith.constant 3 : i32
    %c0_i32_194 = arith.constant 0 : i32
    %269 = tpu.memref_slice %arg4[%c3_i32_193, %c0_i32_194] : memref<8x32xf32, #tpu.memory_space<vmem>> -> memref<1x32xf32, #tpu.memory_space<vmem>>
    %270 = tpu.memref_slice %arg6[%c0_i32_190] : memref<2x!tpu.dma_semaphore, #tpu.memory_space<semaphore_mem>> -> memref<1x!tpu.dma_semaphore, #tpu.memory_space<semaphore_mem>>
    %271 = tpu.memref_squeeze %270 : memref<1x!tpu.dma_semaphore, #tpu.memory_space<semaphore_mem>> -> memref<!tpu.dma_semaphore, #tpu.memory_space<semaphore_mem>>
    tpu.wait_dma2 semaphore(%271 : memref<!tpu.dma_semaphore, #tpu.memory_space<semaphore_mem>>) src(%268 : memref<1x32xf32, #tpu.memory_space<any>>) dst(%269 : memref<1x32xf32, #tpu.memory_space<vmem>>)
    %c0_i32_195 = arith.constant 0 : i32
    %c0_i32_196 = arith.constant 0 : i32
    %c0_i32_197 = arith.constant 0 : i32
    %272 = tpu.memref_slice %arg2[%c0_i32_196, %c0_i32_197] : memref<64x32xf32, #tpu.memory_space<any>> -> memref<1x32xf32, #tpu.memory_space<any>>
    %c4_i32_198 = arith.constant 4 : i32
    %c0_i32_199 = arith.constant 0 : i32
    %273 = tpu.memref_slice %arg4[%c4_i32_198, %c0_i32_199] : memref<8x32xf32, #tpu.memory_space<vmem>> -> memref<1x32xf32, #tpu.memory_space<vmem>>
    %274 = tpu.memref_slice %arg6[%c0_i32_195] : memref<2x!tpu.dma_semaphore, #tpu.memory_space<semaphore_mem>> -> memref<1x!tpu.dma_semaphore, #tpu.memory_space<semaphore_mem>>
    %275 = tpu.memref_squeeze %274 : memref<1x!tpu.dma_semaphore, #tpu.memory_space<semaphore_mem>> -> memref<!tpu.dma_semaphore, #tpu.memory_space<semaphore_mem>>
    tpu.wait_dma2 semaphore(%275 : memref<!tpu.dma_semaphore, #tpu.memory_space<semaphore_mem>>) src(%272 : memref<1x32xf32, #tpu.memory_space<any>>) dst(%273 : memref<1x32xf32, #tpu.memory_space<vmem>>)
    %c0_i32_200 = arith.constant 0 : i32
    %c0_i32_201 = arith.constant 0 : i32
    %c0_i32_202 = arith.constant 0 : i32
    %276 = tpu.memref_slice %arg2[%c0_i32_201, %c0_i32_202] : memref<64x32xf32, #tpu.memory_space<any>> -> memref<1x32xf32, #tpu.memory_space<any>>
    %c5_i32_203 = arith.constant 5 : i32
    %c0_i32_204 = arith.constant 0 : i32
    %277 = tpu.memref_slice %arg4[%c5_i32_203, %c0_i32_204] : memref<8x32xf32, #tpu.memory_space<vmem>> -> memref<1x32xf32, #tpu.memory_space<vmem>>
    %278 = tpu.memref_slice %arg6[%c0_i32_200] : memref<2x!tpu.dma_semaphore, #tpu.memory_space<semaphore_mem>> -> memref<1x!tpu.dma_semaphore, #tpu.memory_space<semaphore_mem>>
    %279 = tpu.memref_squeeze %278 : memref<1x!tpu.dma_semaphore, #tpu.memory_space<semaphore_mem>> -> memref<!tpu.dma_semaphore, #tpu.memory_space<semaphore_mem>>
    tpu.wait_dma2 semaphore(%279 : memref<!tpu.dma_semaphore, #tpu.memory_space<semaphore_mem>>) src(%276 : memref<1x32xf32, #tpu.memory_space<any>>) dst(%277 : memref<1x32xf32, #tpu.memory_space<vmem>>)
    %c0_i32_205 = arith.constant 0 : i32
    %c0_i32_206 = arith.constant 0 : i32
    %c0_i32_207 = arith.constant 0 : i32
    %280 = tpu.memref_slice %arg2[%c0_i32_206, %c0_i32_207] : memref<64x32xf32, #tpu.memory_space<any>> -> memref<1x32xf32, #tpu.memory_space<any>>
    %c6_i32_208 = arith.constant 6 : i32
    %c0_i32_209 = arith.constant 0 : i32
    %281 = tpu.memref_slice %arg4[%c6_i32_208, %c0_i32_209] : memref<8x32xf32, #tpu.memory_space<vmem>> -> memref<1x32xf32, #tpu.memory_space<vmem>>
    %282 = tpu.memref_slice %arg6[%c0_i32_205] : memref<2x!tpu.dma_semaphore, #tpu.memory_space<semaphore_mem>> -> memref<1x!tpu.dma_semaphore, #tpu.memory_space<semaphore_mem>>
    %283 = tpu.memref_squeeze %282 : memref<1x!tpu.dma_semaphore, #tpu.memory_space<semaphore_mem>> -> memref<!tpu.dma_semaphore, #tpu.memory_space<semaphore_mem>>
    tpu.wait_dma2 semaphore(%283 : memref<!tpu.dma_semaphore, #tpu.memory_space<semaphore_mem>>) src(%280 : memref<1x32xf32, #tpu.memory_space<any>>) dst(%281 : memref<1x32xf32, #tpu.memory_space<vmem>>)
    %c0_i32_210 = arith.constant 0 : i32
    %c0_i32_211 = arith.constant 0 : i32
    %c0_i32_212 = arith.constant 0 : i32
    %284 = tpu.memref_slice %arg2[%c0_i32_211, %c0_i32_212] : memref<64x32xf32, #tpu.memory_space<any>> -> memref<1x32xf32, #tpu.memory_space<any>>
    %c7_i32_213 = arith.constant 7 : i32
    %c0_i32_214 = arith.constant 0 : i32
    %285 = tpu.memref_slice %arg4[%c7_i32_213, %c0_i32_214] : memref<8x32xf32, #tpu.memory_space<vmem>> -> memref<1x32xf32, #tpu.memory_space<vmem>>
    %286 = tpu.memref_slice %arg6[%c0_i32_210] : memref<2x!tpu.dma_semaphore, #tpu.memory_space<semaphore_mem>> -> memref<1x!tpu.dma_semaphore, #tpu.memory_space<semaphore_mem>>
    %287 = tpu.memref_squeeze %286 : memref<1x!tpu.dma_semaphore, #tpu.memory_space<semaphore_mem>> -> memref<!tpu.dma_semaphore, #tpu.memory_space<semaphore_mem>>
    tpu.wait_dma2 semaphore(%287 : memref<!tpu.dma_semaphore, #tpu.memory_space<semaphore_mem>>) src(%284 : memref<1x32xf32, #tpu.memory_space<any>>) dst(%285 : memref<1x32xf32, #tpu.memory_space<vmem>>)
    %c1_i32_215 = arith.constant 1 : i32
    %c0_i32_216 = arith.constant 0 : i32
    %c0_i32_217 = arith.constant 0 : i32
    %288 = tpu.memref_slice %arg2[%c0_i32_216, %c0_i32_217] : memref<64x32xf32, #tpu.memory_space<any>> -> memref<1x32xf32, #tpu.memory_space<any>>
    %c0_i32_218 = arith.constant 0 : i32
    %c0_i32_219 = arith.constant 0 : i32
    %289 = tpu.memref_slice %arg5[%c0_i32_218, %c0_i32_219] : memref<24x32xf32, #tpu.memory_space<vmem>> -> memref<1x32xf32, #tpu.memory_space<vmem>>
    %290 = tpu.memref_slice %arg6[%c1_i32_215] : memref<2x!tpu.dma_semaphore, #tpu.memory_space<semaphore_mem>> -> memref<1x!tpu.dma_semaphore, #tpu.memory_space<semaphore_mem>>
    %291 = tpu.memref_squeeze %290 : memref<1x!tpu.dma_semaphore, #tpu.memory_space<semaphore_mem>> -> memref<!tpu.dma_semaphore, #tpu.memory_space<semaphore_mem>>
    tpu.wait_dma2 semaphore(%291 : memref<!tpu.dma_semaphore, #tpu.memory_space<semaphore_mem>>) src(%288 : memref<1x32xf32, #tpu.memory_space<any>>) dst(%289 : memref<1x32xf32, #tpu.memory_space<vmem>>)
    %c1_i32_220 = arith.constant 1 : i32
    %c0_i32_221 = arith.constant 0 : i32
    %c0_i32_222 = arith.constant 0 : i32
    %292 = tpu.memref_slice %arg2[%c0_i32_221, %c0_i32_222] : memref<64x32xf32, #tpu.memory_space<any>> -> memref<1x32xf32, #tpu.memory_space<any>>
    %c1_i32_223 = arith.constant 1 : i32
    %c0_i32_224 = arith.constant 0 : i32
    %293 = tpu.memref_slice %arg5[%c1_i32_223, %c0_i32_224] : memref<24x32xf32, #tpu.memory_space<vmem>> -> memref<1x32xf32, #tpu.memory_space<vmem>>
    %294 = tpu.memref_slice %arg6[%c1_i32_220] : memref<2x!tpu.dma_semaphore, #tpu.memory_space<semaphore_mem>> -> memref<1x!tpu.dma_semaphore, #tpu.memory_space<semaphore_mem>>
    %295 = tpu.memref_squeeze %294 : memref<1x!tpu.dma_semaphore, #tpu.memory_space<semaphore_mem>> -> memref<!tpu.dma_semaphore, #tpu.memory_space<semaphore_mem>>
    tpu.wait_dma2 semaphore(%295 : memref<!tpu.dma_semaphore, #tpu.memory_space<semaphore_mem>>) src(%292 : memref<1x32xf32, #tpu.memory_space<any>>) dst(%293 : memref<1x32xf32, #tpu.memory_space<vmem>>)
    %c1_i32_225 = arith.constant 1 : i32
    %c0_i32_226 = arith.constant 0 : i32
    %c0_i32_227 = arith.constant 0 : i32
    %296 = tpu.memref_slice %arg2[%c0_i32_226, %c0_i32_227] : memref<64x32xf32, #tpu.memory_space<any>> -> memref<1x32xf32, #tpu.memory_space<any>>
    %c2_i32_228 = arith.constant 2 : i32
    %c0_i32_229 = arith.constant 0 : i32
    %297 = tpu.memref_slice %arg5[%c2_i32_228, %c0_i32_229] : memref<24x32xf32, #tpu.memory_space<vmem>> -> memref<1x32xf32, #tpu.memory_space<vmem>>
    %298 = tpu.memref_slice %arg6[%c1_i32_225] : memref<2x!tpu.dma_semaphore, #tpu.memory_space<semaphore_mem>> -> memref<1x!tpu.dma_semaphore, #tpu.memory_space<semaphore_mem>>
    %299 = tpu.memref_squeeze %298 : memref<1x!tpu.dma_semaphore, #tpu.memory_space<semaphore_mem>> -> memref<!tpu.dma_semaphore, #tpu.memory_space<semaphore_mem>>
    tpu.wait_dma2 semaphore(%299 : memref<!tpu.dma_semaphore, #tpu.memory_space<semaphore_mem>>) src(%296 : memref<1x32xf32, #tpu.memory_space<any>>) dst(%297 : memref<1x32xf32, #tpu.memory_space<vmem>>)
    %c1_i32_230 = arith.constant 1 : i32
    %c0_i32_231 = arith.constant 0 : i32
    %c0_i32_232 = arith.constant 0 : i32
    %300 = tpu.memref_slice %arg2[%c0_i32_231, %c0_i32_232] : memref<64x32xf32, #tpu.memory_space<any>> -> memref<1x32xf32, #tpu.memory_space<any>>
    %c3_i32_233 = arith.constant 3 : i32
    %c0_i32_234 = arith.constant 0 : i32
    %301 = tpu.memref_slice %arg5[%c3_i32_233, %c0_i32_234] : memref<24x32xf32, #tpu.memory_space<vmem>> -> memref<1x32xf32, #tpu.memory_space<vmem>>
    %302 = tpu.memref_slice %arg6[%c1_i32_230] : memref<2x!tpu.dma_semaphore, #tpu.memory_space<semaphore_mem>> -> memref<1x!tpu.dma_semaphore, #tpu.memory_space<semaphore_mem>>
    %303 = tpu.memref_squeeze %302 : memref<1x!tpu.dma_semaphore, #tpu.memory_space<semaphore_mem>> -> memref<!tpu.dma_semaphore, #tpu.memory_space<semaphore_mem>>
    tpu.wait_dma2 semaphore(%303 : memref<!tpu.dma_semaphore, #tpu.memory_space<semaphore_mem>>) src(%300 : memref<1x32xf32, #tpu.memory_space<any>>) dst(%301 : memref<1x32xf32, #tpu.memory_space<vmem>>)
    %c1_i32_235 = arith.constant 1 : i32
    %c0_i32_236 = arith.constant 0 : i32
    %c0_i32_237 = arith.constant 0 : i32
    %304 = tpu.memref_slice %arg2[%c0_i32_236, %c0_i32_237] : memref<64x32xf32, #tpu.memory_space<any>> -> memref<1x32xf32, #tpu.memory_space<any>>
    %c4_i32_238 = arith.constant 4 : i32
    %c0_i32_239 = arith.constant 0 : i32
    %305 = tpu.memref_slice %arg5[%c4_i32_238, %c0_i32_239] : memref<24x32xf32, #tpu.memory_space<vmem>> -> memref<1x32xf32, #tpu.memory_space<vmem>>
    %306 = tpu.memref_slice %arg6[%c1_i32_235] : memref<2x!tpu.dma_semaphore, #tpu.memory_space<semaphore_mem>> -> memref<1x!tpu.dma_semaphore, #tpu.memory_space<semaphore_mem>>
    %307 = tpu.memref_squeeze %306 : memref<1x!tpu.dma_semaphore, #tpu.memory_space<semaphore_mem>> -> memref<!tpu.dma_semaphore, #tpu.memory_space<semaphore_mem>>
    tpu.wait_dma2 semaphore(%307 : memref<!tpu.dma_semaphore, #tpu.memory_space<semaphore_mem>>) src(%304 : memref<1x32xf32, #tpu.memory_space<any>>) dst(%305 : memref<1x32xf32, #tpu.memory_space<vmem>>)
    %c1_i32_240 = arith.constant 1 : i32
    %c0_i32_241 = arith.constant 0 : i32
    %c0_i32_242 = arith.constant 0 : i32
    %308 = tpu.memref_slice %arg2[%c0_i32_241, %c0_i32_242] : memref<64x32xf32, #tpu.memory_space<any>> -> memref<1x32xf32, #tpu.memory_space<any>>
    %c5_i32_243 = arith.constant 5 : i32
    %c0_i32_244 = arith.constant 0 : i32
    %309 = tpu.memref_slice %arg5[%c5_i32_243, %c0_i32_244] : memref<24x32xf32, #tpu.memory_space<vmem>> -> memref<1x32xf32, #tpu.memory_space<vmem>>
    %310 = tpu.memref_slice %arg6[%c1_i32_240] : memref<2x!tpu.dma_semaphore, #tpu.memory_space<semaphore_mem>> -> memref<1x!tpu.dma_semaphore, #tpu.memory_space<semaphore_mem>>
    %311 = tpu.memref_squeeze %310 : memref<1x!tpu.dma_semaphore, #tpu.memory_space<semaphore_mem>> -> memref<!tpu.dma_semaphore, #tpu.memory_space<semaphore_mem>>
    tpu.wait_dma2 semaphore(%311 : memref<!tpu.dma_semaphore, #tpu.memory_space<semaphore_mem>>) src(%308 : memref<1x32xf32, #tpu.memory_space<any>>) dst(%309 : memref<1x32xf32, #tpu.memory_space<vmem>>)
    %c1_i32_245 = arith.constant 1 : i32
    %c0_i32_246 = arith.constant 0 : i32
    %c0_i32_247 = arith.constant 0 : i32
    %312 = tpu.memref_slice %arg2[%c0_i32_246, %c0_i32_247] : memref<64x32xf32, #tpu.memory_space<any>> -> memref<1x32xf32, #tpu.memory_space<any>>
    %c6_i32_248 = arith.constant 6 : i32
    %c0_i32_249 = arith.constant 0 : i32
    %313 = tpu.memref_slice %arg5[%c6_i32_248, %c0_i32_249] : memref<24x32xf32, #tpu.memory_space<vmem>> -> memref<1x32xf32, #tpu.memory_space<vmem>>
    %314 = tpu.memref_slice %arg6[%c1_i32_245] : memref<2x!tpu.dma_semaphore, #tpu.memory_space<semaphore_mem>> -> memref<1x!tpu.dma_semaphore, #tpu.memory_space<semaphore_mem>>
    %315 = tpu.memref_squeeze %314 : memref<1x!tpu.dma_semaphore, #tpu.memory_space<semaphore_mem>> -> memref<!tpu.dma_semaphore, #tpu.memory_space<semaphore_mem>>
    tpu.wait_dma2 semaphore(%315 : memref<!tpu.dma_semaphore, #tpu.memory_space<semaphore_mem>>) src(%312 : memref<1x32xf32, #tpu.memory_space<any>>) dst(%313 : memref<1x32xf32, #tpu.memory_space<vmem>>)
    %c1_i32_250 = arith.constant 1 : i32
    %c0_i32_251 = arith.constant 0 : i32
    %c0_i32_252 = arith.constant 0 : i32
    %316 = tpu.memref_slice %arg2[%c0_i32_251, %c0_i32_252] : memref<64x32xf32, #tpu.memory_space<any>> -> memref<1x32xf32, #tpu.memory_space<any>>
    %c7_i32_253 = arith.constant 7 : i32
    %c0_i32_254 = arith.constant 0 : i32
    %317 = tpu.memref_slice %arg5[%c7_i32_253, %c0_i32_254] : memref<24x32xf32, #tpu.memory_space<vmem>> -> memref<1x32xf32, #tpu.memory_space<vmem>>
    %318 = tpu.memref_slice %arg6[%c1_i32_250] : memref<2x!tpu.dma_semaphore, #tpu.memory_space<semaphore_mem>> -> memref<1x!tpu.dma_semaphore, #tpu.memory_space<semaphore_mem>>
    %319 = tpu.memref_squeeze %318 : memref<1x!tpu.dma_semaphore, #tpu.memory_space<semaphore_mem>> -> memref<!tpu.dma_semaphore, #tpu.memory_space<semaphore_mem>>
    tpu.wait_dma2 semaphore(%319 : memref<!tpu.dma_semaphore, #tpu.memory_space<semaphore_mem>>) src(%316 : memref<1x32xf32, #tpu.memory_space<any>>) dst(%317 : memref<1x32xf32, #tpu.memory_space<vmem>>)
    %c1_i32_255 = arith.constant 1 : i32
    %c0_i32_256 = arith.constant 0 : i32
    %c0_i32_257 = arith.constant 0 : i32
    %320 = tpu.memref_slice %arg2[%c0_i32_256, %c0_i32_257] : memref<64x32xf32, #tpu.memory_space<any>> -> memref<1x32xf32, #tpu.memory_space<any>>
    %c8_i32_258 = arith.constant 8 : i32
    %c0_i32_259 = arith.constant 0 : i32
    %321 = tpu.memref_slice %arg5[%c8_i32_258, %c0_i32_259] : memref<24x32xf32, #tpu.memory_space<vmem>> -> memref<1x32xf32, #tpu.memory_space<vmem>>
    %322 = tpu.memref_slice %arg6[%c1_i32_255] : memref<2x!tpu.dma_semaphore, #tpu.memory_space<semaphore_mem>> -> memref<1x!tpu.dma_semaphore, #tpu.memory_space<semaphore_mem>>
    %323 = tpu.memref_squeeze %322 : memref<1x!tpu.dma_semaphore, #tpu.memory_space<semaphore_mem>> -> memref<!tpu.dma_semaphore, #tpu.memory_space<semaphore_mem>>
    tpu.wait_dma2 semaphore(%323 : memref<!tpu.dma_semaphore, #tpu.memory_space<semaphore_mem>>) src(%320 : memref<1x32xf32, #tpu.memory_space<any>>) dst(%321 : memref<1x32xf32, #tpu.memory_space<vmem>>)
    %c1_i32_260 = arith.constant 1 : i32
    %c0_i32_261 = arith.constant 0 : i32
    %c0_i32_262 = arith.constant 0 : i32
    %324 = tpu.memref_slice %arg2[%c0_i32_261, %c0_i32_262] : memref<64x32xf32, #tpu.memory_space<any>> -> memref<1x32xf32, #tpu.memory_space<any>>
    %c9_i32_263 = arith.constant 9 : i32
    %c0_i32_264 = arith.constant 0 : i32
    %325 = tpu.memref_slice %arg5[%c9_i32_263, %c0_i32_264] : memref<24x32xf32, #tpu.memory_space<vmem>> -> memref<1x32xf32, #tpu.memory_space<vmem>>
    %326 = tpu.memref_slice %arg6[%c1_i32_260] : memref<2x!tpu.dma_semaphore, #tpu.memory_space<semaphore_mem>> -> memref<1x!tpu.dma_semaphore, #tpu.memory_space<semaphore_mem>>
    %327 = tpu.memref_squeeze %326 : memref<1x!tpu.dma_semaphore, #tpu.memory_space<semaphore_mem>> -> memref<!tpu.dma_semaphore, #tpu.memory_space<semaphore_mem>>
    tpu.wait_dma2 semaphore(%327 : memref<!tpu.dma_semaphore, #tpu.memory_space<semaphore_mem>>) src(%324 : memref<1x32xf32, #tpu.memory_space<any>>) dst(%325 : memref<1x32xf32, #tpu.memory_space<vmem>>)
    %c1_i32_265 = arith.constant 1 : i32
    %c0_i32_266 = arith.constant 0 : i32
    %c0_i32_267 = arith.constant 0 : i32
    %328 = tpu.memref_slice %arg2[%c0_i32_266, %c0_i32_267] : memref<64x32xf32, #tpu.memory_space<any>> -> memref<1x32xf32, #tpu.memory_space<any>>
    %c10_i32_268 = arith.constant 10 : i32
    %c0_i32_269 = arith.constant 0 : i32
    %329 = tpu.memref_slice %arg5[%c10_i32_268, %c0_i32_269] : memref<24x32xf32, #tpu.memory_space<vmem>> -> memref<1x32xf32, #tpu.memory_space<vmem>>
    %330 = tpu.memref_slice %arg6[%c1_i32_265] : memref<2x!tpu.dma_semaphore, #tpu.memory_space<semaphore_mem>> -> memref<1x!tpu.dma_semaphore, #tpu.memory_space<semaphore_mem>>
    %331 = tpu.memref_squeeze %330 : memref<1x!tpu.dma_semaphore, #tpu.memory_space<semaphore_mem>> -> memref<!tpu.dma_semaphore, #tpu.memory_space<semaphore_mem>>
    tpu.wait_dma2 semaphore(%331 : memref<!tpu.dma_semaphore, #tpu.memory_space<semaphore_mem>>) src(%328 : memref<1x32xf32, #tpu.memory_space<any>>) dst(%329 : memref<1x32xf32, #tpu.memory_space<vmem>>)
    %c1_i32_270 = arith.constant 1 : i32
    %c0_i32_271 = arith.constant 0 : i32
    %c0_i32_272 = arith.constant 0 : i32
    %332 = tpu.memref_slice %arg2[%c0_i32_271, %c0_i32_272] : memref<64x32xf32, #tpu.memory_space<any>> -> memref<1x32xf32, #tpu.memory_space<any>>
    %c11_i32_273 = arith.constant 11 : i32
    %c0_i32_274 = arith.constant 0 : i32
    %333 = tpu.memref_slice %arg5[%c11_i32_273, %c0_i32_274] : memref<24x32xf32, #tpu.memory_space<vmem>> -> memref<1x32xf32, #tpu.memory_space<vmem>>
    %334 = tpu.memref_slice %arg6[%c1_i32_270] : memref<2x!tpu.dma_semaphore, #tpu.memory_space<semaphore_mem>> -> memref<1x!tpu.dma_semaphore, #tpu.memory_space<semaphore_mem>>
    %335 = tpu.memref_squeeze %334 : memref<1x!tpu.dma_semaphore, #tpu.memory_space<semaphore_mem>> -> memref<!tpu.dma_semaphore, #tpu.memory_space<semaphore_mem>>
    tpu.wait_dma2 semaphore(%335 : memref<!tpu.dma_semaphore, #tpu.memory_space<semaphore_mem>>) src(%332 : memref<1x32xf32, #tpu.memory_space<any>>) dst(%333 : memref<1x32xf32, #tpu.memory_space<vmem>>)
    %c1_i32_275 = arith.constant 1 : i32
    %c0_i32_276 = arith.constant 0 : i32
    %c0_i32_277 = arith.constant 0 : i32
    %336 = tpu.memref_slice %arg2[%c0_i32_276, %c0_i32_277] : memref<64x32xf32, #tpu.memory_space<any>> -> memref<1x32xf32, #tpu.memory_space<any>>
    %c12_i32_278 = arith.constant 12 : i32
    %c0_i32_279 = arith.constant 0 : i32
    %337 = tpu.memref_slice %arg5[%c12_i32_278, %c0_i32_279] : memref<24x32xf32, #tpu.memory_space<vmem>> -> memref<1x32xf32, #tpu.memory_space<vmem>>
    %338 = tpu.memref_slice %arg6[%c1_i32_275] : memref<2x!tpu.dma_semaphore, #tpu.memory_space<semaphore_mem>> -> memref<1x!tpu.dma_semaphore, #tpu.memory_space<semaphore_mem>>
    %339 = tpu.memref_squeeze %338 : memref<1x!tpu.dma_semaphore, #tpu.memory_space<semaphore_mem>> -> memref<!tpu.dma_semaphore, #tpu.memory_space<semaphore_mem>>
    tpu.wait_dma2 semaphore(%339 : memref<!tpu.dma_semaphore, #tpu.memory_space<semaphore_mem>>) src(%336 : memref<1x32xf32, #tpu.memory_space<any>>) dst(%337 : memref<1x32xf32, #tpu.memory_space<vmem>>)
    %c1_i32_280 = arith.constant 1 : i32
    %c0_i32_281 = arith.constant 0 : i32
    %c0_i32_282 = arith.constant 0 : i32
    %340 = tpu.memref_slice %arg2[%c0_i32_281, %c0_i32_282] : memref<64x32xf32, #tpu.memory_space<any>> -> memref<1x32xf32, #tpu.memory_space<any>>
    %c13_i32_283 = arith.constant 13 : i32
    %c0_i32_284 = arith.constant 0 : i32
    %341 = tpu.memref_slice %arg5[%c13_i32_283, %c0_i32_284] : memref<24x32xf32, #tpu.memory_space<vmem>> -> memref<1x32xf32, #tpu.memory_space<vmem>>
    %342 = tpu.memref_slice %arg6[%c1_i32_280] : memref<2x!tpu.dma_semaphore, #tpu.memory_space<semaphore_mem>> -> memref<1x!tpu.dma_semaphore, #tpu.memory_space<semaphore_mem>>
    %343 = tpu.memref_squeeze %342 : memref<1x!tpu.dma_semaphore, #tpu.memory_space<semaphore_mem>> -> memref<!tpu.dma_semaphore, #tpu.memory_space<semaphore_mem>>
    tpu.wait_dma2 semaphore(%343 : memref<!tpu.dma_semaphore, #tpu.memory_space<semaphore_mem>>) src(%340 : memref<1x32xf32, #tpu.memory_space<any>>) dst(%341 : memref<1x32xf32, #tpu.memory_space<vmem>>)
    %c1_i32_285 = arith.constant 1 : i32
    %c0_i32_286 = arith.constant 0 : i32
    %c0_i32_287 = arith.constant 0 : i32
    %344 = tpu.memref_slice %arg2[%c0_i32_286, %c0_i32_287] : memref<64x32xf32, #tpu.memory_space<any>> -> memref<1x32xf32, #tpu.memory_space<any>>
    %c14_i32_288 = arith.constant 14 : i32
    %c0_i32_289 = arith.constant 0 : i32
    %345 = tpu.memref_slice %arg5[%c14_i32_288, %c0_i32_289] : memref<24x32xf32, #tpu.memory_space<vmem>> -> memref<1x32xf32, #tpu.memory_space<vmem>>
    %346 = tpu.memref_slice %arg6[%c1_i32_285] : memref<2x!tpu.dma_semaphore, #tpu.memory_space<semaphore_mem>> -> memref<1x!tpu.dma_semaphore, #tpu.memory_space<semaphore_mem>>
    %347 = tpu.memref_squeeze %346 : memref<1x!tpu.dma_semaphore, #tpu.memory_space<semaphore_mem>> -> memref<!tpu.dma_semaphore, #tpu.memory_space<semaphore_mem>>
    tpu.wait_dma2 semaphore(%347 : memref<!tpu.dma_semaphore, #tpu.memory_space<semaphore_mem>>) src(%344 : memref<1x32xf32, #tpu.memory_space<any>>) dst(%345 : memref<1x32xf32, #tpu.memory_space<vmem>>)
    %c1_i32_290 = arith.constant 1 : i32
    %c0_i32_291 = arith.constant 0 : i32
    %c0_i32_292 = arith.constant 0 : i32
    %348 = tpu.memref_slice %arg2[%c0_i32_291, %c0_i32_292] : memref<64x32xf32, #tpu.memory_space<any>> -> memref<1x32xf32, #tpu.memory_space<any>>
    %c15_i32_293 = arith.constant 15 : i32
    %c0_i32_294 = arith.constant 0 : i32
    %349 = tpu.memref_slice %arg5[%c15_i32_293, %c0_i32_294] : memref<24x32xf32, #tpu.memory_space<vmem>> -> memref<1x32xf32, #tpu.memory_space<vmem>>
    %350 = tpu.memref_slice %arg6[%c1_i32_290] : memref<2x!tpu.dma_semaphore, #tpu.memory_space<semaphore_mem>> -> memref<1x!tpu.dma_semaphore, #tpu.memory_space<semaphore_mem>>
    %351 = tpu.memref_squeeze %350 : memref<1x!tpu.dma_semaphore, #tpu.memory_space<semaphore_mem>> -> memref<!tpu.dma_semaphore, #tpu.memory_space<semaphore_mem>>
    tpu.wait_dma2 semaphore(%351 : memref<!tpu.dma_semaphore, #tpu.memory_space<semaphore_mem>>) src(%348 : memref<1x32xf32, #tpu.memory_space<any>>) dst(%349 : memref<1x32xf32, #tpu.memory_space<vmem>>)
    %c1_i32_295 = arith.constant 1 : i32
    %c0_i32_296 = arith.constant 0 : i32
    %c0_i32_297 = arith.constant 0 : i32
    %352 = tpu.memref_slice %arg2[%c0_i32_296, %c0_i32_297] : memref<64x32xf32, #tpu.memory_space<any>> -> memref<1x32xf32, #tpu.memory_space<any>>
    %c16_i32_298 = arith.constant 16 : i32
    %c0_i32_299 = arith.constant 0 : i32
    %353 = tpu.memref_slice %arg5[%c16_i32_298, %c0_i32_299] : memref<24x32xf32, #tpu.memory_space<vmem>> -> memref<1x32xf32, #tpu.memory_space<vmem>>
    %354 = tpu.memref_slice %arg6[%c1_i32_295] : memref<2x!tpu.dma_semaphore, #tpu.memory_space<semaphore_mem>> -> memref<1x!tpu.dma_semaphore, #tpu.memory_space<semaphore_mem>>
    %355 = tpu.memref_squeeze %354 : memref<1x!tpu.dma_semaphore, #tpu.memory_space<semaphore_mem>> -> memref<!tpu.dma_semaphore, #tpu.memory_space<semaphore_mem>>
    tpu.wait_dma2 semaphore(%355 : memref<!tpu.dma_semaphore, #tpu.memory_space<semaphore_mem>>) src(%352 : memref<1x32xf32, #tpu.memory_space<any>>) dst(%353 : memref<1x32xf32, #tpu.memory_space<vmem>>)
    %c1_i32_300 = arith.constant 1 : i32
    %c0_i32_301 = arith.constant 0 : i32
    %c0_i32_302 = arith.constant 0 : i32
    %356 = tpu.memref_slice %arg2[%c0_i32_301, %c0_i32_302] : memref<64x32xf32, #tpu.memory_space<any>> -> memref<1x32xf32, #tpu.memory_space<any>>
    %c17_i32_303 = arith.constant 17 : i32
    %c0_i32_304 = arith.constant 0 : i32
    %357 = tpu.memref_slice %arg5[%c17_i32_303, %c0_i32_304] : memref<24x32xf32, #tpu.memory_space<vmem>> -> memref<1x32xf32, #tpu.memory_space<vmem>>
    %358 = tpu.memref_slice %arg6[%c1_i32_300] : memref<2x!tpu.dma_semaphore, #tpu.memory_space<semaphore_mem>> -> memref<1x!tpu.dma_semaphore, #tpu.memory_space<semaphore_mem>>
    %359 = tpu.memref_squeeze %358 : memref<1x!tpu.dma_semaphore, #tpu.memory_space<semaphore_mem>> -> memref<!tpu.dma_semaphore, #tpu.memory_space<semaphore_mem>>
    tpu.wait_dma2 semaphore(%359 : memref<!tpu.dma_semaphore, #tpu.memory_space<semaphore_mem>>) src(%356 : memref<1x32xf32, #tpu.memory_space<any>>) dst(%357 : memref<1x32xf32, #tpu.memory_space<vmem>>)
    %c1_i32_305 = arith.constant 1 : i32
    %c0_i32_306 = arith.constant 0 : i32
    %c0_i32_307 = arith.constant 0 : i32
    %360 = tpu.memref_slice %arg2[%c0_i32_306, %c0_i32_307] : memref<64x32xf32, #tpu.memory_space<any>> -> memref<1x32xf32, #tpu.memory_space<any>>
    %c18_i32_308 = arith.constant 18 : i32
    %c0_i32_309 = arith.constant 0 : i32
    %361 = tpu.memref_slice %arg5[%c18_i32_308, %c0_i32_309] : memref<24x32xf32, #tpu.memory_space<vmem>> -> memref<1x32xf32, #tpu.memory_space<vmem>>
    %362 = tpu.memref_slice %arg6[%c1_i32_305] : memref<2x!tpu.dma_semaphore, #tpu.memory_space<semaphore_mem>> -> memref<1x!tpu.dma_semaphore, #tpu.memory_space<semaphore_mem>>
    %363 = tpu.memref_squeeze %362 : memref<1x!tpu.dma_semaphore, #tpu.memory_space<semaphore_mem>> -> memref<!tpu.dma_semaphore, #tpu.memory_space<semaphore_mem>>
    tpu.wait_dma2 semaphore(%363 : memref<!tpu.dma_semaphore, #tpu.memory_space<semaphore_mem>>) src(%360 : memref<1x32xf32, #tpu.memory_space<any>>) dst(%361 : memref<1x32xf32, #tpu.memory_space<vmem>>)
    %c1_i32_310 = arith.constant 1 : i32
    %c0_i32_311 = arith.constant 0 : i32
    %c0_i32_312 = arith.constant 0 : i32
    %364 = tpu.memref_slice %arg2[%c0_i32_311, %c0_i32_312] : memref<64x32xf32, #tpu.memory_space<any>> -> memref<1x32xf32, #tpu.memory_space<any>>
    %c19_i32_313 = arith.constant 19 : i32
    %c0_i32_314 = arith.constant 0 : i32
    %365 = tpu.memref_slice %arg5[%c19_i32_313, %c0_i32_314] : memref<24x32xf32, #tpu.memory_space<vmem>> -> memref<1x32xf32, #tpu.memory_space<vmem>>
    %366 = tpu.memref_slice %arg6[%c1_i32_310] : memref<2x!tpu.dma_semaphore, #tpu.memory_space<semaphore_mem>> -> memref<1x!tpu.dma_semaphore, #tpu.memory_space<semaphore_mem>>
    %367 = tpu.memref_squeeze %366 : memref<1x!tpu.dma_semaphore, #tpu.memory_space<semaphore_mem>> -> memref<!tpu.dma_semaphore, #tpu.memory_space<semaphore_mem>>
    tpu.wait_dma2 semaphore(%367 : memref<!tpu.dma_semaphore, #tpu.memory_space<semaphore_mem>>) src(%364 : memref<1x32xf32, #tpu.memory_space<any>>) dst(%365 : memref<1x32xf32, #tpu.memory_space<vmem>>)
    %c1_i32_315 = arith.constant 1 : i32
    %c0_i32_316 = arith.constant 0 : i32
    %c0_i32_317 = arith.constant 0 : i32
    %368 = tpu.memref_slice %arg2[%c0_i32_316, %c0_i32_317] : memref<64x32xf32, #tpu.memory_space<any>> -> memref<1x32xf32, #tpu.memory_space<any>>
    %c20_i32_318 = arith.constant 20 : i32
    %c0_i32_319 = arith.constant 0 : i32
    %369 = tpu.memref_slice %arg5[%c20_i32_318, %c0_i32_319] : memref<24x32xf32, #tpu.memory_space<vmem>> -> memref<1x32xf32, #tpu.memory_space<vmem>>
    %370 = tpu.memref_slice %arg6[%c1_i32_315] : memref<2x!tpu.dma_semaphore, #tpu.memory_space<semaphore_mem>> -> memref<1x!tpu.dma_semaphore, #tpu.memory_space<semaphore_mem>>
    %371 = tpu.memref_squeeze %370 : memref<1x!tpu.dma_semaphore, #tpu.memory_space<semaphore_mem>> -> memref<!tpu.dma_semaphore, #tpu.memory_space<semaphore_mem>>
    tpu.wait_dma2 semaphore(%371 : memref<!tpu.dma_semaphore, #tpu.memory_space<semaphore_mem>>) src(%368 : memref<1x32xf32, #tpu.memory_space<any>>) dst(%369 : memref<1x32xf32, #tpu.memory_space<vmem>>)
    %c1_i32_320 = arith.constant 1 : i32
    %c0_i32_321 = arith.constant 0 : i32
    %c0_i32_322 = arith.constant 0 : i32
    %372 = tpu.memref_slice %arg2[%c0_i32_321, %c0_i32_322] : memref<64x32xf32, #tpu.memory_space<any>> -> memref<1x32xf32, #tpu.memory_space<any>>
    %c21_i32_323 = arith.constant 21 : i32
    %c0_i32_324 = arith.constant 0 : i32
    %373 = tpu.memref_slice %arg5[%c21_i32_323, %c0_i32_324] : memref<24x32xf32, #tpu.memory_space<vmem>> -> memref<1x32xf32, #tpu.memory_space<vmem>>
    %374 = tpu.memref_slice %arg6[%c1_i32_320] : memref<2x!tpu.dma_semaphore, #tpu.memory_space<semaphore_mem>> -> memref<1x!tpu.dma_semaphore, #tpu.memory_space<semaphore_mem>>
    %375 = tpu.memref_squeeze %374 : memref<1x!tpu.dma_semaphore, #tpu.memory_space<semaphore_mem>> -> memref<!tpu.dma_semaphore, #tpu.memory_space<semaphore_mem>>
    tpu.wait_dma2 semaphore(%375 : memref<!tpu.dma_semaphore, #tpu.memory_space<semaphore_mem>>) src(%372 : memref<1x32xf32, #tpu.memory_space<any>>) dst(%373 : memref<1x32xf32, #tpu.memory_space<vmem>>)
    %c1_i32_325 = arith.constant 1 : i32
    %c0_i32_326 = arith.constant 0 : i32
    %c0_i32_327 = arith.constant 0 : i32
    %376 = tpu.memref_slice %arg2[%c0_i32_326, %c0_i32_327] : memref<64x32xf32, #tpu.memory_space<any>> -> memref<1x32xf32, #tpu.memory_space<any>>
    %c22_i32_328 = arith.constant 22 : i32
    %c0_i32_329 = arith.constant 0 : i32
    %377 = tpu.memref_slice %arg5[%c22_i32_328, %c0_i32_329] : memref<24x32xf32, #tpu.memory_space<vmem>> -> memref<1x32xf32, #tpu.memory_space<vmem>>
    %378 = tpu.memref_slice %arg6[%c1_i32_325] : memref<2x!tpu.dma_semaphore, #tpu.memory_space<semaphore_mem>> -> memref<1x!tpu.dma_semaphore, #tpu.memory_space<semaphore_mem>>
    %379 = tpu.memref_squeeze %378 : memref<1x!tpu.dma_semaphore, #tpu.memory_space<semaphore_mem>> -> memref<!tpu.dma_semaphore, #tpu.memory_space<semaphore_mem>>
    tpu.wait_dma2 semaphore(%379 : memref<!tpu.dma_semaphore, #tpu.memory_space<semaphore_mem>>) src(%376 : memref<1x32xf32, #tpu.memory_space<any>>) dst(%377 : memref<1x32xf32, #tpu.memory_space<vmem>>)
    %c1_i32_330 = arith.constant 1 : i32
    %c0_i32_331 = arith.constant 0 : i32
    %c0_i32_332 = arith.constant 0 : i32
    %380 = tpu.memref_slice %arg2[%c0_i32_331, %c0_i32_332] : memref<64x32xf32, #tpu.memory_space<any>> -> memref<1x32xf32, #tpu.memory_space<any>>
    %c23_i32_333 = arith.constant 23 : i32
    %c0_i32_334 = arith.constant 0 : i32
    %381 = tpu.memref_slice %arg5[%c23_i32_333, %c0_i32_334] : memref<24x32xf32, #tpu.memory_space<vmem>> -> memref<1x32xf32, #tpu.memory_space<vmem>>
    %382 = tpu.memref_slice %arg6[%c1_i32_330] : memref<2x!tpu.dma_semaphore, #tpu.memory_space<semaphore_mem>> -> memref<1x!tpu.dma_semaphore, #tpu.memory_space<semaphore_mem>>
    %383 = tpu.memref_squeeze %382 : memref<1x!tpu.dma_semaphore, #tpu.memory_space<semaphore_mem>> -> memref<!tpu.dma_semaphore, #tpu.memory_space<semaphore_mem>>
    tpu.wait_dma2 semaphore(%383 : memref<!tpu.dma_semaphore, #tpu.memory_space<semaphore_mem>>) src(%380 : memref<1x32xf32, #tpu.memory_space<any>>) dst(%381 : memref<1x32xf32, #tpu.memory_space<vmem>>)
    %c0_335 = arith.constant 0 : index
    %c0_336 = arith.constant 0 : index
    %384 = vector.load %arg4[%c0_335, %c0_336] : memref<8x32xf32, #tpu.memory_space<vmem>>, vector<8x32xf32>
    %c0_337 = arith.constant 0 : index
    %c0_338 = arith.constant 0 : index
    %385 = vector.load %arg5[%c0_337, %c0_338] : memref<24x32xf32, #tpu.memory_space<vmem>>, vector<24x32xf32>
    %cst = arith.constant dense<0.000000e+00> : vector<8x24xf32>
    %386 = tpu.matmul %384, %385, %cst {dimension_numbers = #tpu.dot_dimension_numbers<[1], [1], [0], [0], [0, 0, 1, 0], [], []>} : vector<8x32xf32>, vector<24x32xf32>, vector<8x24xf32> -> vector<8x24xf32>
    %c24_i32_339 = arith.constant 24 : i32
    %387 = arith.muli %arg0, %c24_i32_339 : i32
    %388 = tpu.iota {dimensions = array<i32: 1>} : vector<8x24xi32>
    %389 = vector.broadcast %387 : i32 to vector<8x24xi32>
    %390 = arith.addi %389, %388 : vector<8x24xi32>
    %c8_i32_340 = arith.constant 8 : i32
    %391 = vector.broadcast %c8_i32_340 : i32 to vector<8x24xi32>
    %392 = arith.cmpi slt, %390, %391 : vector<8x24xi32>
    %c40_i32 = arith.constant 40 : i32
    %393 = vector.broadcast %c40_i32 : i32 to vector<8x24xi32>
    %394 = arith.cmpi slt, %390, %393 : vector<8x24xi32>
    %cst_341 = arith.constant 0.000000e+00 : f32
    %395 = vector.broadcast %cst_341 : f32 to vector<8x24xf32>
    %396 = arith.subf %395, %386 : vector<8x24xf32>
    %397 = arith.select %392, %396, %386 : vector<8x24xi1>, vector<8x24xf32>
    %cst_342 = arith.constant 0.000000e+00 : f32
    %398 = vector.broadcast %cst_342 : f32 to vector<8x24xf32>
    %399 = arith.maximumf %397, %398 : vector<8x24xf32>
    %400 = math.absf %397 : vector<8x24xf32>
    %cst_343 = arith.constant 0.000000e+00 : f32
    %401 = vector.broadcast %cst_343 : f32 to vector<8x24xf32>
    %402 = arith.subf %401, %400 : vector<8x24xf32>
    %403 = math.exp %402 : vector<8x24xf32>
    %404 = math.log1p %403 : vector<8x24xf32>
    %405 = arith.addf %399, %404 : vector<8x24xf32>
    %cst_344 = arith.constant 0.000000e+00 : f32
    %406 = vector.broadcast %cst_344 : f32 to vector<8x24xf32>
    %407 = arith.select %392, %405, %406 : vector<8x24xi1>, vector<8x24xf32>
    %408 = vector.shape_cast %407 : vector<8x24xf32> to vector<1x8x24xf32>
    %cst_345 = arith.constant dense<0.000000e+00> : vector<1xf32>
    %409 = vector.multi_reduction <add>, %408, %cst_345 [1, 2] : vector<1x8x24xf32> to vector<1xf32>
    %410 = vector.shape_cast %409 : vector<1xf32> to vector<1x1x1xf32>
    %411 = vector.extract %410[0, 0, 0] : f32 from vector<1x1x1xf32>
    %cst_346 = arith.constant dense<true> : vector<8x24xi1>
    %412 = arith.xori %392, %cst_346 : vector<8x24xi1>
    %413 = arith.andi %394, %412 : vector<8x24xi1>
    %cst_347 = arith.constant 0.000000e+00 : f32
    %414 = vector.broadcast %cst_347 : f32 to vector<8x24xf32>
    %415 = arith.select %413, %405, %414 : vector<8x24xi1>, vector<8x24xf32>
    %416 = vector.shape_cast %415 : vector<8x24xf32> to vector<1x8x24xf32>
    %cst_348 = arith.constant dense<0.000000e+00> : vector<1xf32>
    %417 = vector.multi_reduction <add>, %416, %cst_348 [1, 2] : vector<1x8x24xf32> to vector<1xf32>
    %418 = vector.shape_cast %417 : vector<1xf32> to vector<1x1x1xf32>
    %419 = vector.extract %418[0, 0, 0] : f32 from vector<1x1x1xf32>
    %420 = tpu.iota {dimensions = array<i32: 0>} : vector<8x128xi32>
    %421 = tpu.iota {dimensions = array<i32: 1>} : vector<8x128xi32>
    %c0_i32_349 = arith.constant 0 : i32
    %422 = vector.broadcast %c0_i32_349 : i32 to vector<8x128xi32>
    %423 = arith.cmpi eq, %420, %422 : vector<8x128xi32>
    %c0_i32_350 = arith.constant 0 : i32
    %424 = vector.broadcast %c0_i32_350 : i32 to vector<8x128xi32>
    %425 = arith.cmpi eq, %421, %424 : vector<8x128xi32>
    %426 = arith.andi %423, %425 : vector<8x128xi1>
    %c0_i32_351 = arith.constant 0 : i32
    %427 = vector.broadcast %c0_i32_351 : i32 to vector<8x128xi32>
    %428 = arith.cmpi eq, %420, %427 : vector<8x128xi32>
    %c1_i32_352 = arith.constant 1 : i32
    %429 = vector.broadcast %c1_i32_352 : i32 to vector<8x128xi32>
    %430 = arith.cmpi eq, %421, %429 : vector<8x128xi32>
    %431 = arith.andi %428, %430 : vector<8x128xi1>
    %cst_353 = arith.constant 0.000000e+00 : f32
    %432 = vector.broadcast %419 : f32 to vector<8x128xf32>
    %433 = vector.broadcast %cst_353 : f32 to vector<8x128xf32>
    %434 = arith.select %431, %432, %433 : vector<8x128xi1>, vector<8x128xf32>
    %435 = vector.broadcast %411 : f32 to vector<8x128xf32>
    %436 = arith.select %426, %435, %434 : vector<8x128xi1>, vector<8x128xf32>
    %c0_354 = arith.constant 0 : index
    %c0_355 = arith.constant 0 : index
    %437 = vector.load %arg3[%c0_354, %c0_355] : memref<8x128xf32, #tpu.memory_space<vmem>>, vector<8x128xf32>
    tpu.vector_store %arg3[%c0_354, %c0_355], %436 {strides = array<i32>} : memref<8x128xf32, #tpu.memory_space<vmem>>, vector<8x128xf32>,
    return
  }
  func.func @transform_1(%arg0: i32, %arg1: memref<56xi32, #tpu.memory_space<smem>>) -> (i32, i32) {
    %c0_i32 = arith.constant 0 : i32
    %c0_i32_0 = arith.constant 0 : i32
    return %arg0, %c0_i32 : i32, i32
  }
}

</mosaic_0001>

<llo_original>
// kernel: tpu_custom_call.1
$region0: #{tpu_custom_call.1}
  #allocation0 [shape = 'u32[]', space=smem, size = 0x4, offset = 0x4, fixed_abs, tag = 'smem constant byte address 0x4 - core index']
  #allocation1 [shape = 'u32[144,128]{1,0:T(1,128)}', space=vmem, size = 0x12000, scoped, tag = 'internal scratch']
  #allocation2 [shape = 'f32[8,32]{1,0:T(8,128)}', space=vmem, size = 0x1000, scoped, tag = 'scratch operand']
  #allocation3 [shape = 'f32[24,32]{1,0:T(8,128)}', space=vmem, size = 0x3000, scoped, tag = 'scratch operand']
  #allocation4 [shape = 's32[2]{0}', space=sflag, size = 0x8, scoped, tag = 'scratch operand']
  #allocation5 [shape = 's32[1]{0}', space=sflag, size = 0x4, scoped, tag = 'scoped memory for tpu_custom_call.1']
  #allocation6 [shape = 'u8[512]{0}', space=smem, size = 0x200, scoped, tag = 'prefetched SMEM operand 0']
  #allocation9 [shape = 's32[]', space=sflag, size = 0x4, offset = 0, fixed_abs, tag = 'sflag constant byte address 0x0 - dummy sync flag']
  #allocation10 [shape = 's32[]', space=sflag, size = 0x4, offset = 0, fixed_abs, tag = 'sflag constant byte address 0x0 - dummy sync flag']
  #allocation11 [shape = 's32[]', space=sflag, size = 0x4, offset = 0, fixed_abs, tag = 'sflag constant byte address 0x0 - dummy sync flag']
  #allocation12 [shape = 's32[]', space=sflag, size = 0x4, offset = 0, fixed_abs, tag = 'sflag constant byte address 0x0 - dummy sync flag']
  #allocation13 [shape = 's32[]', space=sflag, size = 0x4, offset = 0, fixed_abs, tag = 'sflag constant byte address 0x0 - dummy sync flag']
  #allocation14 [shape = 's32[]', space=sflag, size = 0x4, offset = 0, fixed_abs, tag = 'sflag constant byte address 0x0 - dummy sync flag']
  #allocation15 [shape = 's32[]', space=sflag, size = 0x4, offset = 0, fixed_abs, tag = 'sflag constant byte address 0x0 - dummy sync flag']
  #allocation16 [shape = 's32[]', space=sflag, size = 0x4, offset = 0, fixed_abs, tag = 'sflag constant byte address 0x0 - dummy sync flag']
  #allocation17 [shape = 's32[]', space=sflag, size = 0x4, offset = 0, fixed_abs, tag = 'sflag constant byte address 0x0 - dummy sync flag']
  #allocation18 [shape = 's32[]', space=sflag, size = 0x4, offset = 0, fixed_abs, tag = 'sflag constant byte address 0x0 - dummy sync flag']
  #allocation19 [shape = 's32[]', space=sflag, size = 0x4, offset = 0, fixed_abs, tag = 'sflag constant byte address 0x0 - dummy sync flag']
  #allocation20 [shape = 's32[]', space=sflag, size = 0x4, offset = 0, fixed_abs, tag = 'sflag constant byte address 0x0 - dummy sync flag']
  #allocation21 [shape = 's32[]', space=sflag, size = 0x4, offset = 0, fixed_abs, tag = 'sflag constant byte address 0x0 - dummy sync flag']
  #allocation22 [shape = 's32[]', space=sflag, size = 0x4, offset = 0, fixed_abs, tag = 'sflag constant byte address 0x0 - dummy sync flag']
  #allocation23 [shape = 's32[]', space=sflag, size = 0x4, offset = 0, fixed_abs, tag = 'sflag constant byte address 0x0 - dummy sync flag']
  #allocation24 [shape = 's32[]', space=sflag, size = 0x4, offset = 0, fixed_abs, tag = 'sflag constant byte address 0x0 - dummy sync flag']
  #allocation25 [shape = 's32[]', space=sflag, size = 0x4, offset = 0, fixed_abs, tag = 'sflag constant byte address 0x0 - dummy sync flag']
  #allocation26 [shape = 's32[]', space=sflag, size = 0x4, offset = 0, fixed_abs, tag = 'sflag constant byte address 0x0 - dummy sync flag']
  #allocation27 [shape = 's32[]', space=sflag, size = 0x4, offset = 0, fixed_abs, tag = 'sflag constant byte address 0x0 - dummy sync flag']
  #allocation28 [shape = 's32[]', space=sflag, size = 0x4, offset = 0, fixed_abs, tag = 'sflag constant byte address 0x0 - dummy sync flag']
  #allocation29 [shape = 's32[]', space=sflag, size = 0x4, offset = 0, fixed_abs, tag = 'sflag constant byte address 0x0 - dummy sync flag']
  #allocation30 [shape = 's32[]', space=sflag, size = 0x4, offset = 0, fixed_abs, tag = 'sflag constant byte address 0x0 - dummy sync flag']
  #allocation31 [shape = 's32[]', space=sflag, size = 0x4, offset = 0, fixed_abs, tag = 'sflag constant byte address 0x0 - dummy sync flag']
  #allocation32 [shape = 's32[]', space=sflag, size = 0x4, offset = 0, fixed_abs, tag = 'sflag constant byte address 0x0 - dummy sync flag']
  #allocation33 [shape = 's32[]', space=sflag, size = 0x4, offset = 0, fixed_abs, tag = 'sflag constant byte address 0x0 - dummy sync flag']
  #allocation34 [shape = 's32[]', space=sflag, size = 0x4, offset = 0, fixed_abs, tag = 'sflag constant byte address 0x0 - dummy sync flag']
  #allocation35 [shape = 's32[]', space=sflag, size = 0x4, offset = 0, fixed_abs, tag = 'sflag constant byte address 0x0 - dummy sync flag']
  #allocation36 [shape = 's32[]', space=sflag, size = 0x4, offset = 0, fixed_abs, tag = 'sflag constant byte address 0x0 - dummy sync flag']
  #allocation37 [shape = 's32[]', space=sflag, size = 0x4, offset = 0, fixed_abs, tag = 'sflag constant byte address 0x0 - dummy sync flag']
  #allocation38 [shape = 's32[]', space=sflag, size = 0x4, offset = 0, fixed_abs, tag = 'sflag constant byte address 0x0 - dummy sync flag']
  #allocation39 [shape = 's32[]', space=sflag, size = 0x4, offset = 0, fixed_abs, tag = 'sflag constant byte address 0x0 - dummy sync flag']
  #allocation40 [shape = 's32[]', space=sflag, size = 0x4, offset = 0, fixed_abs, tag = 'sflag constant byte address 0x0 - dummy sync flag']
  %s0 = inlined_call_operand.vmem [shape: s32[56], index: 0, kind: input, shape index: {}]
  %s1 = inlined_call_operand.vmem [shape: f32[64,32], index: 1, kind: input, shape index: {}]
  %s2 = inlined_call_operand.hbm [shape: f32[16,128], index: 2, kind: output, shape index: {}]
  %s3 = sld [smem:[#allocation0]]
  $region985: #{tpu_custom_call.1} parent=0
    _
  %s5 = ssub.s32 1, %s3
  %s6 = scalar_select 0, %s5, %s3
  %s7 = sshll.u32 %s0, 4
  %s8 = int_to_ptr.vmem [resolvable:$true] %s7
  %10 = dma.vmem_to_smem %s8, 16, [#allocation6], [#allocation5]
  %11 = dma.done [#allocation5], 16
  %12 = sfence
  $region1: #{tpu_custom_call.1} parent=0
    #allocation7 [shape = 'u8[8192]{0}', space=vmem, size = 0x2000, scoped, tag = 'output window, operand 0']
    #allocation8 [shape = 's32[2]{0}', space=sflag, size = 0x8, scoped, tag = 'scoped memory for tpu_custom_call.1']
    %13 = vsyncpa [#allocation8], 0
    %s14 = scalar_lea.sflag [#allocation8], 1
    %15 = vsyncpa %s14, 0
    loop: start=0, step=1, limit=3
    $region2: #{tpu_custom_call.1} parent=1 // loop_pre_header
      _
    $region3: #{tpu_custom_call.1} parent=1 // loop_header
      %s17 = sphi 0, %s21
      %p18 = scmp.ge.s32.totalorder %s17, 3
      %s26 = sphi 0, %s28
      %s29 = sphi 0, %s26
      %s39 = sphi 0, %s29
    $region4: #{tpu_custom_call.1} parent=1 // loop_header_branch
      %20 = sbr.rel (%p18) target = $region8
    $region5: #{tpu_custom_call.1} parent=1 // loop_body
      %s22 = ssub.s32 %s17, 1
      %s23 = sadd.s32 %s17, 1
      %s24 = ssub.s32 %s17, %s23
      %p25 = scmp.eq.s32.totalorder %s24, 0
      %s27 = sadd.s32 %s26, 1
      %s28 = scalar_select %p25, %s26, %s27
      %p30 = pneg %p25
      %p31 = scmp.eq.s32.totalorder %s17, 1
      %p32 = por %p30, %p31
      %p33 = scmp.ne.s32.totalorder %s26, %s29
      %p34 = scmp.eq.s32.totalorder %s17, 0
      %p35 = por %p33, %p34
      %p36 = scmp.ne.s32.totalorder %s26, %s29
      %p37 = scmp.eq.s32.totalorder %s22, 1
      %p38 = por %p36, %p37
      %p40 = scmp.ne.s32.totalorder %s29, %s39
      %p41 = scmp.eq.s32.totalorder %s22, 0
      %p42 = por %p40, %p41
      %p43 = scmp.lt.s32.totalorder %s17, 2
      // Predicated region
      $region9: #{tpu_custom_call.1} parent=5 // pred_check
        %p44 = pneg %p43
      $region10: #{tpu_custom_call.1} parent=5 // pred_check_branch
        %46 = sbr.rel (%p44) target = $region12
      $region11: #{tpu_custom_call.1} parent=5 // pred_region
        %p47 = pneg %p35
        %p48 = pneg %p32
        %s49 = sand.u32 %s26, 1
        %s50 = scalar_lea.sflag [#allocation8], %s49
        %s51 = sand.u32 %s26, 1
        %s52 = smul.addr %s51, 8
        %s53 = scalar_lea.vmem [#allocation7], %s52
        %s54 = sld [smem:[#allocation6]]
        %s55 = scalar_lea.vmem %s1, %s54
        %p57 = scmp.lt.u32.totalorder 1, 8
        %p58 = pneg %p57
        // Predicated region
        $region13: #{tpu_custom_call.1} parent=11 // pred_check
          _
        $region14: #{tpu_custom_call.1} parent=11 // pred_check_branch
          %60 = sbr.rel (%p57) target = $region16
        $region15: #{tpu_custom_call.1} parent=11 // pred_region
          %s76 = sand.u32 1, 7
          %p77 = scmp.eq.s32.totalorder %s76, 0
          %p78 = pneg %p77
          // Predicated region
          $region28: #{tpu_custom_call.1} parent=15 // pred_check
            _
          $region29: #{tpu_custom_call.1} parent=15 // pred_check_branch
            %80 = sbr.rel (%p77) target = $region31
          $region30: #{tpu_custom_call.1} parent=15 // pred_region
            %s81 = sand.u32 1, 7
            %s82 = ssub.s32 1, %s81
            %s83 = scalar_lea.vmem %s55, %s82
            %s84 = ssub.s32 1, %s81
            %s85 = scalar_lea.vmem [#allocation2], %s84
            %s86 = sshll.u32 1, %s81
            %s87 = ssub.s32 %s86, 1
            loop: start=0, step=1, limit=1
            $region32: #{tpu_custom_call.1} parent=30 // loop_pre_header
              _
            $region33: #{tpu_custom_call.1} parent=30 // loop_header
              %s89 = sphi 0, %s93
              %p90 = scmp.ge.s32.totalorder %s89, 1
              %s94 = sphi %s83, %s83
              %s95 = sphi %s85, %s85
            $region34: #{tpu_custom_call.1} parent=30 // loop_header_branch
              %92 = sbr.rel (%p90) target = $region38
            $region35: #{tpu_custom_call.1} parent=30 // loop_body
              %v96 = vld [vmem:[%s94] sm:%s87]
              %97 = vst [vmem:[%s95] sm:%s87] %v96
            $region36: #{tpu_custom_call.1} parent=30 // loop_footer
              %s93 = sadd.s32 1, %s89
            $region37: #{tpu_custom_call.1} parent=30 // loop_footer_branch
              %88 = sbr.rel target = $region33
            $region38: #{tpu_custom_call.1} parent=30 // loop_exit
              _
          $region31: #{tpu_custom_call.1} parent=15 // pred_fallthru
            _
        $region16: #{tpu_custom_call.1} parent=11 // pred_fallthru
          _
        // Predicated region
        $region17: #{tpu_custom_call.1} parent=11 // pred_check
          %p61 = pneg %p57
        $region18: #{tpu_custom_call.1} parent=11 // pred_check_branch
          %63 = sbr.rel (%p61) target = $region20
        $region19: #{tpu_custom_call.1} parent=11 // pred_region
          %s64 = sshll.u32 1, 1
          %s65 = ssub.s32 %s64, 1
          loop: start=0, step=1, limit=1
          $region21: #{tpu_custom_call.1} parent=19 // loop_pre_header
            _
          $region22: #{tpu_custom_call.1} parent=19 // loop_header
            %s67 = sphi 0, %s71
            %p68 = scmp.ge.s32.totalorder %s67, 1
            %s72 = sphi %s55, %s55
            %s73 = sphi [#allocation2], [#allocation2]
          $region23: #{tpu_custom_call.1} parent=19 // loop_header_branch
            %70 = sbr.rel (%p68) target = $region27
          $region24: #{tpu_custom_call.1} parent=19 // loop_body
            %v74 = vld [vmem:[%s72] sm:%s65]
            %75 = vst [vmem:[%s73] sm:%s65] %v74
          $region25: #{tpu_custom_call.1} parent=19 // loop_footer
            %s71 = sadd.s32 1, %s67
          $region26: #{tpu_custom_call.1} parent=19 // loop_footer_branch
            %66 = sbr.rel target = $region22
          $region27: #{tpu_custom_call.1} parent=19 // loop_exit
            _
        $region20: #{tpu_custom_call.1} parent=11 // pred_fallthru
          _
        // Predicated region
        $region39: #{tpu_custom_call.1} parent=11 // pred_check
          _
        $region40: #{tpu_custom_call.1} parent=11 // pred_check_branch
          %100 = sbr.rel (0) target = $region42
        $region41: #{tpu_custom_call.1} parent=11 // pred_region
          %101 = vsyncadd [#allocation4], 16
        $region42: #{tpu_custom_call.1} parent=11 // pred_fallthru
          _
        %s102 = sld [smem:[#allocation6 + $0x1]]
        %s103 = scalar_lea.vmem %s1, %s102
        %s104 = scalar_lea.vmem [#allocation2], 1
        %p106 = scmp.lt.u32.totalorder 1, 8
        %p107 = pneg %p106
        // Predicated region
        $region43: #{tpu_custom_call.1} parent=11 // pred_check
          _
        $region44: #{tpu_custom_call.1} parent=11 // pred_check_branch
          %109 = sbr.rel (%p106) target = $region46
        $region45: #{tpu_custom_call.1} parent=11 // pred_region
          %s125 = sand.u32 1, 7
          %p126 = scmp.eq.s32.totalorder %s125, 0
          %p127 = pneg %p126
          // Predicated region
          $region58: #{tpu_custom_call.1} parent=45 // pred_check
            _
          $region59: #{tpu_custom_call.1} parent=45 // pred_check_branch
            %129 = sbr.rel (%p126) target = $region61
          $region60: #{tpu_custom_call.1} parent=45 // pred_region
            %s130 = sand.u32 1, 7
            %s131 = ssub.s32 1, %s130
            %s132 = scalar_lea.vmem %s103, %s131
            %s133 = ssub.s32 1, %s130
            %s134 = scalar_lea.vmem %s104, %s133 [#allocation2]
            %s135 = sshll.u32 1, %s130
            %s136 = ssub.s32 %s135, 1
            loop: start=0, step=1, limit=1
            $region62: #{tpu_custom_call.1} parent=60 // loop_pre_header
              _
            $region63: #{tpu_custom_call.1} parent=60 // loop_header
              %s138 = sphi 0, %s142
              %p139 = scmp.ge.s32.totalorder %s138, 1
              %s143 = sphi %s132, %s132
              %s144 = sphi %s134, %s134
            $region64: #{tpu_custom_call.1} parent=60 // loop_header_branch
              %141 = sbr.rel (%p139) target = $region68
            $region65: #{tpu_custom_call.1} parent=60 // loop_body
              %v145 = vld [vmem:[%s143] sm:%s136]
              %146 = vst [vmem:[%s144] sm:%s136] %v145
            $region66: #{tpu_custom_call.1} parent=60 // loop_footer
              %s142 = sadd.s32 1, %s138
            $region67: #{tpu_custom_call.1} parent=60 // loop_footer_branch
              %137 = sbr.rel target = $region63
            $region68: #{tpu_custom_call.1} parent=60 // loop_exit
              _
          $region61: #{tpu_custom_call.1} parent=45 // pred_fallthru
            _
        $region46: #{tpu_custom_call.1} parent=11 // pred_fallthru
          _
        // Predicated region
        $region47: #{tpu_custom_call.1} parent=11 // pred_check
          %p110 = pneg %p106
        $region48: #{tpu_custom_call.1} parent=11 // pred_check_branch
          %112 = sbr.rel (%p110) target = $region50
        $region49: #{tpu_custom_call.1} parent=11 // pred_region
          %s113 = sshll.u32 1, 1
          %s114 = ssub.s32 %s113, 1
          loop: start=0, step=1, limit=1
          $region51: #{tpu_custom_call.1} parent=49 // loop_pre_header
            _
          $region52: #{tpu_custom_call.1} parent=49 // loop_header
            %s116 = sphi 0, %s120
            %p117 = scmp.ge.s32.totalorder %s116, 1
            %s121 = sphi %s103, %s103
            %s122 = sphi %s104, %s104
          $region53: #{tpu_custom_call.1} parent=49 // loop_header_branch
            %119 = sbr.rel (%p117) target = $region57
          $region54: #{tpu_custom_call.1} parent=49 // loop_body
            %v123 = vld [vmem:[%s121] sm:%s114]
            %124 = vst [vmem:[%s122] sm:%s114] %v123
          $region55: #{tpu_custom_call.1} parent=49 // loop_footer
            %s120 = sadd.s32 1, %s116
          $region56: #{tpu_custom_call.1} parent=49 // loop_footer_branch
            %115 = sbr.rel target = $region52
          $region57: #{tpu_custom_call.1} parent=49 // loop_exit
            _
        $region50: #{tpu_custom_call.1} parent=11 // pred_fallthru
          _
        // Predicated region
        $region69: #{tpu_custom_call.1} parent=11 // pred_check
          _
        $region70: #{tpu_custom_call.1} parent=11 // pred_check_branch
          %149 = sbr.rel (0) target = $region72
        $region71: #{tpu_custom_call.1} parent=11 // pred_region
          %150 = vsyncadd [#allocation4], 16
        $region72: #{tpu_custom_call.1} parent=11 // pred_fallthru
          _
        %s151 = sld [smem:[#allocation6 + $0x2]]
        %s152 = scalar_lea.vmem %s1, %s151
        %s153 = scalar_lea.vmem [#allocation2], 2
        %p155 = scmp.lt.u32.totalorder 1, 8
        %p156 = pneg %p155
        // Predicated region
        $region73: #{tpu_custom_call.1} parent=11 // pred_check
          _
        $region74: #{tpu_custom_call.1} parent=11 // pred_check_branch
          %158 = sbr.rel (%p155) target = $region76
        $region75: #{tpu_custom_call.1} parent=11 // pred_region
          %s174 = sand.u32 1, 7
          %p175 = scmp.eq.s32.totalorder %s174, 0
          %p176 = pneg %p175
          // Predicated region
          $region88: #{tpu_custom_call.1} parent=75 // pred_check
            _
          $region89: #{tpu_custom_call.1} parent=75 // pred_check_branch
            %178 = sbr.rel (%p175) target = $region91
          $region90: #{tpu_custom_call.1} parent=75 // pred_region
            %s179 = sand.u32 1, 7
            %s180 = ssub.s32 1, %s179
            %s181 = scalar_lea.vmem %s152, %s180
            %s182 = ssub.s32 1, %s179
            %s183 = scalar_lea.vmem %s153, %s182 [#allocation2]
            %s184 = sshll.u32 1, %s179
            %s185 = ssub.s32 %s184, 1
            loop: start=0, step=1, limit=1
            $region92: #{tpu_custom_call.1} parent=90 // loop_pre_header
              _
            $region93: #{tpu_custom_call.1} parent=90 // loop_header
              %s187 = sphi 0, %s191
              %p188 = scmp.ge.s32.totalorder %s187, 1
              %s192 = sphi %s181, %s181
              %s193 = sphi %s183, %s183
            $region94: #{tpu_custom_call.1} parent=90 // loop_header_branch
              %190 = sbr.rel (%p188) target = $region98
            $region95: #{tpu_custom_call.1} parent=90 // loop_body
              %v194 = vld [vmem:[%s192] sm:%s185]
              %195 = vst [vmem:[%s193] sm:%s185] %v194
            $region96: #{tpu_custom_call.1} parent=90 // loop_footer
              %s191 = sadd.s32 1, %s187
            $region97: #{tpu_custom_call.1} parent=90 // loop_footer_branch
              %186 = sbr.rel target = $region93
            $region98: #{tpu_custom_call.1} parent=90 // loop_exit
              _
          $region91: #{tpu_custom_call.1} parent=75 // pred_fallthru
            _
        $region76: #{tpu_custom_call.1} parent=11 // pred_fallthru
          _
        // Predicated region
        $region77: #{tpu_custom_call.1} parent=11 // pred_check
          %p159 = pneg %p155
        $region78: #{tpu_custom_call.1} parent=11 // pred_check_branch
          %161 = sbr.rel (%p159) target = $region80
        $region79: #{tpu_custom_call.1} parent=11 // pred_region
          %s162 = sshll.u32 1, 1
          %s163 = ssub.s32 %s162, 1
          loop: start=0, step=1, limit=1
          $region81: #{tpu_custom_call.1} parent=79 // loop_pre_header
            _
          $region82: #{tpu_custom_call.1} parent=79 // loop_header
            %s165 = sphi 0, %s169
            %p166 = scmp.ge.s32.totalorder %s165, 1
            %s170 = sphi %s152, %s152
            %s171 = sphi %s153, %s153
          $region83: #{tpu_custom_call.1} parent=79 // loop_header_branch
            %168 = sbr.rel (%p166) target = $region87
          $region84: #{tpu_custom_call.1} parent=79 // loop_body
            %v172 = vld [vmem:[%s170] sm:%s163]
            %173 = vst [vmem:[%s171] sm:%s163] %v172
          $region85: #{tpu_custom_call.1} parent=79 // loop_footer
            %s169 = sadd.s32 1, %s165
          $region86: #{tpu_custom_call.1} parent=79 // loop_footer_branch
            %164 = sbr.rel target = $region82
          $region87: #{tpu_custom_call.1} parent=79 // loop_exit
            _
        $region80: #{tpu_custom_call.1} parent=11 // pred_fallthru
          _
        // Predicated region
        $region99: #{tpu_custom_call.1} parent=11 // pred_check
          _
        $region100: #{tpu_custom_call.1} parent=11 // pred_check_branch
          %198 = sbr.rel (0) target = $region102
        $region101: #{tpu_custom_call.1} parent=11 // pred_region
          %199 = vsyncadd [#allocation4], 16
        $region102: #{tpu_custom_call.1} parent=11 // pred_fallthru
          _
        %s200 = sld [smem:[#allocation6 + $0x3]]
        %s201 = scalar_lea.vmem %s1, %s200
        %s202 = scalar_lea.vmem [#allocation2], 3
        %p204 = scmp.lt.u32.totalorder 1, 8
        %p205 = pneg %p204
        // Predicated region
        $region103: #{tpu_custom_call.1} parent=11 // pred_check
          _
        $region104: #{tpu_custom_call.1} parent=11 // pred_check_branch
          %207 = sbr.rel (%p204) target = $region106
        $region105: #{tpu_custom_call.1} parent=11 // pred_region
          %s223 = sand.u32 1, 7
          %p224 = scmp.eq.s32.totalorder %s223, 0
          %p225 = pneg %p224
          // Predicated region
          $region118: #{tpu_custom_call.1} parent=105 // pred_check
            _
          $region119: #{tpu_custom_call.1} parent=105 // pred_check_branch
            %227 = sbr.rel (%p224) target = $region121
          $region120: #{tpu_custom_call.1} parent=105 // pred_region
            %s228 = sand.u32 1, 7
            %s229 = ssub.s32 1, %s228
            %s230 = scalar_lea.vmem %s201, %s229
            %s231 = ssub.s32 1, %s228
            %s232 = scalar_lea.vmem %s202, %s231 [#allocation2]
            %s233 = sshll.u32 1, %s228
            %s234 = ssub.s32 %s233, 1
            loop: start=0, step=1, limit=1
            $region122: #{tpu_custom_call.1} parent=120 // loop_pre_header
              _
            $region123: #{tpu_custom_call.1} parent=120 // loop_header
              %s236 = sphi 0, %s240
              %p237 = scmp.ge.s32.totalorder %s236, 1
              %s241 = sphi %s230, %s230
              %s242 = sphi %s232, %s232
            $region124: #{tpu_custom_call.1} parent=120 // loop_header_branch
              %239 = sbr.rel (%p237) target = $region128
            $region125: #{tpu_custom_call.1} parent=120 // loop_body
              %v243 = vld [vmem:[%s241] sm:%s234]
              %244 = vst [vmem:[%s242] sm:%s234] %v243
            $region126: #{tpu_custom_call.1} parent=120 // loop_footer
              %s240 = sadd.s32 1, %s236
            $region127: #{tpu_custom_call.1} parent=120 // loop_footer_branch
              %235 = sbr.rel target = $region123
            $region128: #{tpu_custom_call.1} parent=120 // loop_exit
              _
          $region121: #{tpu_custom_call.1} parent=105 // pred_fallthru
            _
        $region106: #{tpu_custom_call.1} parent=11 // pred_fallthru
          _
        // Predicated region
        $region107: #{tpu_custom_call.1} parent=11 // pred_check
          %p208 = pneg %p204
        $region108: #{tpu_custom_call.1} parent=11 // pred_check_branch
          %210 = sbr.rel (%p208) target = $region110
        $region109: #{tpu_custom_call.1} parent=11 // pred_region
          %s211 = sshll.u32 1, 1
          %s212 = ssub.s32 %s211, 1
          loop: start=0, step=1, limit=1
          $region111: #{tpu_custom_call.1} parent=109 // loop_pre_header
            _
          $region112: #{tpu_custom_call.1} parent=109 // loop_header
            %s214 = sphi 0, %s218
            %p215 = scmp.ge.s32.totalorder %s214, 1
            %s219 = sphi %s201, %s201
            %s220 = sphi %s202, %s202
          $region113: #{tpu_custom_call.1} parent=109 // loop_header_branch
            %217 = sbr.rel (%p215) target = $region117
          $region114: #{tpu_custom_call.1} parent=109 // loop_body
            %v221 = vld [vmem:[%s219] sm:%s212]
            %222 = vst [vmem:[%s220] sm:%s212] %v221
          $region115: #{tpu_custom_call.1} parent=109 // loop_footer
            %s218 = sadd.s32 1, %s214
          $region116: #{tpu_custom_call.1} parent=109 // loop_footer_branch
            %213 = sbr.rel target = $region112
          $region117: #{tpu_custom_call.1} parent=109 // loop_exit
            _
        $region110: #{tpu_custom_call.1} parent=11 // pred_fallthru
          _
        // Predicated region
        $region129: #{tpu_custom_call.1} parent=11 // pred_check
          _
        $region130: #{tpu_custom_call.1} parent=11 // pred_check_branch
          %247 = sbr.rel (0) target = $region132
        $region131: #{tpu_custom_call.1} parent=11 // pred_region
          %248 = vsyncadd [#allocation4], 16
        $region132: #{tpu_custom_call.1} parent=11 // pred_fallthru
          _
        %s249 = sld [smem:[#allocation6 + $0x4]]
        %s250 = scalar_lea.vmem %s1, %s249
        %s251 = scalar_lea.vmem [#allocation2], 4
        %p253 = scmp.lt.u32.totalorder 1, 8
        %p254 = pneg %p253
        // Predicated region
        $region133: #{tpu_custom_call.1} parent=11 // pred_check
          _
        $region134: #{tpu_custom_call.1} parent=11 // pred_check_branch
          %256 = sbr.rel (%p253) target = $region136
        $region135: #{tpu_custom_call.1} parent=11 // pred_region
          %s272 = sand.u32 1, 7
          %p273 = scmp.eq.s32.totalorder %s272, 0
          %p274 = pneg %p273
          // Predicated region
          $region148: #{tpu_custom_call.1} parent=135 // pred_check
            _
          $region149: #{tpu_custom_call.1} parent=135 // pred_check_branch
            %276 = sbr.rel (%p273) target = $region151
          $region150: #{tpu_custom_call.1} parent=135 // pred_region
            %s277 = sand.u32 1, 7
            %s278 = ssub.s32 1, %s277
            %s279 = scalar_lea.vmem %s250, %s278
            %s280 = ssub.s32 1, %s277
            %s281 = scalar_lea.vmem %s251, %s280 [#allocation2]
            %s282 = sshll.u32 1, %s277
            %s283 = ssub.s32 %s282, 1
            loop: start=0, step=1, limit=1
            $region152: #{tpu_custom_call.1} parent=150 // loop_pre_header
              _
            $region153: #{tpu_custom_call.1} parent=150 // loop_header
              %s285 = sphi 0, %s289
              %p286 = scmp.ge.s32.totalorder %s285, 1
              %s290 = sphi %s279, %s279
              %s291 = sphi %s281, %s281
            $region154: #{tpu_custom_call.1} parent=150 // loop_header_branch
              %288 = sbr.rel (%p286) target = $region158
            $region155: #{tpu_custom_call.1} parent=150 // loop_body
              %v292 = vld [vmem:[%s290] sm:%s283]
              %293 = vst [vmem:[%s291] sm:%s283] %v292
            $region156: #{tpu_custom_call.1} parent=150 // loop_footer
              %s289 = sadd.s32 1, %s285
            $region157: #{tpu_custom_call.1} parent=150 // loop_footer_branch
              %284 = sbr.rel target = $region153
            $region158: #{tpu_custom_call.1} parent=150 // loop_exit
              _
          $region151: #{tpu_custom_call.1} parent=135 // pred_fallthru
            _
        $region136: #{tpu_custom_call.1} parent=11 // pred_fallthru
          _
        // Predicated region
        $region137: #{tpu_custom_call.1} parent=11 // pred_check
          %p257 = pneg %p253
        $region138: #{tpu_custom_call.1} parent=11 // pred_check_branch
          %259 = sbr.rel (%p257) target = $region140
        $region139: #{tpu_custom_call.1} parent=11 // pred_region
          %s260 = sshll.u32 1, 1
          %s261 = ssub.s32 %s260, 1
          loop: start=0, step=1, limit=1
          $region141: #{tpu_custom_call.1} parent=139 // loop_pre_header
            _
          $region142: #{tpu_custom_call.1} parent=139 // loop_header
            %s263 = sphi 0, %s267
            %p264 = scmp.ge.s32.totalorder %s263, 1
            %s268 = sphi %s250, %s250
            %s269 = sphi %s251, %s251
          $region143: #{tpu_custom_call.1} parent=139 // loop_header_branch
            %266 = sbr.rel (%p264) target = $region147
          $region144: #{tpu_custom_call.1} parent=139 // loop_body
            %v270 = vld [vmem:[%s268] sm:%s261]
            %271 = vst [vmem:[%s269] sm:%s261] %v270
          $region145: #{tpu_custom_call.1} parent=139 // loop_footer
            %s267 = sadd.s32 1, %s263
          $region146: #{tpu_custom_call.1} parent=139 // loop_footer_branch
            %262 = sbr.rel target = $region142
          $region147: #{tpu_custom_call.1} parent=139 // loop_exit
            _
        $region140: #{tpu_custom_call.1} parent=11 // pred_fallthru
          _
        // Predicated region
        $region159: #{tpu_custom_call.1} parent=11 // pred_check
          _
        $region160: #{tpu_custom_call.1} parent=11 // pred_check_branch
          %296 = sbr.rel (0) target = $region162
        $region161: #{tpu_custom_call.1} parent=11 // pred_region
          %297 = vsyncadd [#allocation4], 16
        $region162: #{tpu_custom_call.1} parent=11 // pred_fallthru
          _
        %s298 = sld [smem:[#allocation6 + $0x5]]
        %s299 = scalar_lea.vmem %s1, %s298
        %s300 = scalar_lea.vmem [#allocation2], 5
        %p302 = scmp.lt.u32.totalorder 1, 8
        %p303 = pneg %p302
        // Predicated region
        $region163: #{tpu_custom_call.1} parent=11 // pred_check
          _
        $region164: #{tpu_custom_call.1} parent=11 // pred_check_branch
          %305 = sbr.rel (%p302) target = $region166
        $region165: #{tpu_custom_call.1} parent=11 // pred_region
          %s321 = sand.u32 1, 7
          %p322 = scmp.eq.s32.totalorder %s321, 0
          %p323 = pneg %p322
          // Predicated region
          $region178: #{tpu_custom_call.1} parent=165 // pred_check
            _
          $region179: #{tpu_custom_call.1} parent=165 // pred_check_branch
            %325 = sbr.rel (%p322) target = $region181
          $region180: #{tpu_custom_call.1} parent=165 // pred_region
            %s326 = sand.u32 1, 7
            %s327 = ssub.s32 1, %s326
            %s328 = scalar_lea.vmem %s299, %s327
            %s329 = ssub.s32 1, %s326
            %s330 = scalar_lea.vmem %s300, %s329 [#allocation2]
            %s331 = sshll.u32 1, %s326
            %s332 = ssub.s32 %s331, 1
            loop: start=0, step=1, limit=1
            $region182: #{tpu_custom_call.1} parent=180 // loop_pre_header
              _
            $region183: #{tpu_custom_call.1} parent=180 // loop_header
              %s334 = sphi 0, %s338
              %p335 = scmp.ge.s32.totalorder %s334, 1
              %s339 = sphi %s328, %s328
              %s340 = sphi %s330, %s330
            $region184: #{tpu_custom_call.1} parent=180 // loop_header_branch
              %337 = sbr.rel (%p335) target = $region188
            $region185: #{tpu_custom_call.1} parent=180 // loop_body
              %v341 = vld [vmem:[%s339] sm:%s332]
              %342 = vst [vmem:[%s340] sm:%s332] %v341
            $region186: #{tpu_custom_call.1} parent=180 // loop_footer
              %s338 = sadd.s32 1, %s334
            $region187: #{tpu_custom_call.1} parent=180 // loop_footer_branch
              %333 = sbr.rel target = $region183
            $region188: #{tpu_custom_call.1} parent=180 // loop_exit
              _
          $region181: #{tpu_custom_call.1} parent=165 // pred_fallthru
            _
        $region166: #{tpu_custom_call.1} parent=11 // pred_fallthru
          _
        // Predicated region
        $region167: #{tpu_custom_call.1} parent=11 // pred_check
          %p306 = pneg %p302
        $region168: #{tpu_custom_call.1} parent=11 // pred_check_branch
          %308 = sbr.rel (%p306) target = $region170
        $region169: #{tpu_custom_call.1} parent=11 // pred_region
          %s309 = sshll.u32 1, 1
          %s310 = ssub.s32 %s309, 1
          loop: start=0, step=1, limit=1
          $region171: #{tpu_custom_call.1} parent=169 // loop_pre_header
            _
          $region172: #{tpu_custom_call.1} parent=169 // loop_header
            %s312 = sphi 0, %s316
            %p313 = scmp.ge.s32.totalorder %s312, 1
            %s317 = sphi %s299, %s299
            %s318 = sphi %s300, %s300
          $region173: #{tpu_custom_call.1} parent=169 // loop_header_branch
            %315 = sbr.rel (%p313) target = $region177
          $region174: #{tpu_custom_call.1} parent=169 // loop_body
            %v319 = vld [vmem:[%s317] sm:%s310]
            %320 = vst [vmem:[%s318] sm:%s310] %v319
          $region175: #{tpu_custom_call.1} parent=169 // loop_footer
            %s316 = sadd.s32 1, %s312
          $region176: #{tpu_custom_call.1} parent=169 // loop_footer_branch
            %311 = sbr.rel target = $region172
          $region177: #{tpu_custom_call.1} parent=169 // loop_exit
            _
        $region170: #{tpu_custom_call.1} parent=11 // pred_fallthru
          _
        // Predicated region
        $region189: #{tpu_custom_call.1} parent=11 // pred_check
          _
        $region190: #{tpu_custom_call.1} parent=11 // pred_check_branch
          %345 = sbr.rel (0) target = $region192
        $region191: #{tpu_custom_call.1} parent=11 // pred_region
          %346 = vsyncadd [#allocation4], 16
        $region192: #{tpu_custom_call.1} parent=11 // pred_fallthru
          _
        %s347 = sld [smem:[#allocation6 + $0x6]]
        %s348 = scalar_lea.vmem %s1, %s347
        %s349 = scalar_lea.vmem [#allocation2], 6
        %p351 = scmp.lt.u32.totalorder 1, 8
        %p352 = pneg %p351
        // Predicated region
        $region193: #{tpu_custom_call.1} parent=11 // pred_check
          _
        $region194: #{tpu_custom_call.1} parent=11 // pred_check_branch
          %354 = sbr.rel (%p351) target = $region196
        $region195: #{tpu_custom_call.1} parent=11 // pred_region
          %s370 = sand.u32 1, 7
          %p371 = scmp.eq.s32.totalorder %s370, 0
          %p372 = pneg %p371
          // Predicated region
          $region208: #{tpu_custom_call.1} parent=195 // pred_check
            _
          $region209: #{tpu_custom_call.1} parent=195 // pred_check_branch
            %374 = sbr.rel (%p371) target = $region211
          $region210: #{tpu_custom_call.1} parent=195 // pred_region
            %s375 = sand.u32 1, 7
            %s376 = ssub.s32 1, %s375
            %s377 = scalar_lea.vmem %s348, %s376
            %s378 = ssub.s32 1, %s375
            %s379 = scalar_lea.vmem %s349, %s378 [#allocation2]
            %s380 = sshll.u32 1, %s375
            %s381 = ssub.s32 %s380, 1
            loop: start=0, step=1, limit=1
            $region212: #{tpu_custom_call.1} parent=210 // loop_pre_header
              _
            $region213: #{tpu_custom_call.1} parent=210 // loop_header
              %s383 = sphi 0, %s387
              %p384 = scmp.ge.s32.totalorder %s383, 1
              %s388 = sphi %s377, %s377
              %s389 = sphi %s379, %s379
            $region214: #{tpu_custom_call.1} parent=210 // loop_header_branch
              %386 = sbr.rel (%p384) target = $region218
            $region215: #{tpu_custom_call.1} parent=210 // loop_body
              %v390 = vld [vmem:[%s388] sm:%s381]
              %391 = vst [vmem:[%s389] sm:%s381] %v390
            $region216: #{tpu_custom_call.1} parent=210 // loop_footer
              %s387 = sadd.s32 1, %s383
            $region217: #{tpu_custom_call.1} parent=210 // loop_footer_branch
              %382 = sbr.rel target = $region213
            $region218: #{tpu_custom_call.1} parent=210 // loop_exit
              _
          $region211: #{tpu_custom_call.1} parent=195 // pred_fallthru
            _
        $region196: #{tpu_custom_call.1} parent=11 // pred_fallthru
          _
        // Predicated region
        $region197: #{tpu_custom_call.1} parent=11 // pred_check
          %p355 = pneg %p351
        $region198: #{tpu_custom_call.1} parent=11 // pred_check_branch
          %357 = sbr.rel (%p355) target = $region200
        $region199: #{tpu_custom_call.1} parent=11 // pred_region
          %s358 = sshll.u32 1, 1
          %s359 = ssub.s32 %s358, 1
          loop: start=0, step=1, limit=1
          $region201: #{tpu_custom_call.1} parent=199 // loop_pre_header
            _
          $region202: #{tpu_custom_call.1} parent=199 // loop_header
            %s361 = sphi 0, %s365
            %p362 = scmp.ge.s32.totalorder %s361, 1
            %s366 = sphi %s348, %s348
            %s367 = sphi %s349, %s349
          $region203: #{tpu_custom_call.1} parent=199 // loop_header_branch
            %364 = sbr.rel (%p362) target = $region207
          $region204: #{tpu_custom_call.1} parent=199 // loop_body
            %v368 = vld [vmem:[%s366] sm:%s359]
            %369 = vst [vmem:[%s367] sm:%s359] %v368
          $region205: #{tpu_custom_call.1} parent=199 // loop_footer
            %s365 = sadd.s32 1, %s361
          $region206: #{tpu_custom_call.1} parent=199 // loop_footer_branch
            %360 = sbr.rel target = $region202
          $region207: #{tpu_custom_call.1} parent=199 // loop_exit
            _
        $region200: #{tpu_custom_call.1} parent=11 // pred_fallthru
          _
        // Predicated region
        $region219: #{tpu_custom_call.1} parent=11 // pred_check
          _
        $region220: #{tpu_custom_call.1} parent=11 // pred_check_branch
          %394 = sbr.rel (0) target = $region222
        $region221: #{tpu_custom_call.1} parent=11 // pred_region
          %395 = vsyncadd [#allocation4], 16
        $region222: #{tpu_custom_call.1} parent=11 // pred_fallthru
          _
        %s396 = sld [smem:[#allocation6 + $0x7]]
        %s397 = scalar_lea.vmem %s1, %s396
        %s398 = scalar_lea.vmem [#allocation2], 7
        %p400 = scmp.lt.u32.totalorder 1, 8
        %p401 = pneg %p400
        // Predicated region
        $region223: #{tpu_custom_call.1} parent=11 // pred_check
          _
        $region224: #{tpu_custom_call.1} parent=11 // pred_check_branch
          %403 = sbr.rel (%p400) target = $region226
        $region225: #{tpu_custom_call.1} parent=11 // pred_region
          %s419 = sand.u32 1, 7
          %p420 = scmp.eq.s32.totalorder %s419, 0
          %p421 = pneg %p420
          // Predicated region
          $region238: #{tpu_custom_call.1} parent=225 // pred_check
            _
          $region239: #{tpu_custom_call.1} parent=225 // pred_check_branch
            %423 = sbr.rel (%p420) target = $region241
          $region240: #{tpu_custom_call.1} parent=225 // pred_region
            %s424 = sand.u32 1, 7
            %s425 = ssub.s32 1, %s424
            %s426 = scalar_lea.vmem %s397, %s425
            %s427 = ssub.s32 1, %s424
            %s428 = scalar_lea.vmem %s398, %s427 [#allocation2]
            %s429 = sshll.u32 1, %s424
            %s430 = ssub.s32 %s429, 1
            loop: start=0, step=1, limit=1
            $region242: #{tpu_custom_call.1} parent=240 // loop_pre_header
              _
            $region243: #{tpu_custom_call.1} parent=240 // loop_header
              %s432 = sphi 0, %s436
              %p433 = scmp.ge.s32.totalorder %s432, 1
              %s437 = sphi %s426, %s426
              %s438 = sphi %s428, %s428
            $region244: #{tpu_custom_call.1} parent=240 // loop_header_branch
              %435 = sbr.rel (%p433) target = $region248
            $region245: #{tpu_custom_call.1} parent=240 // loop_body
              %v439 = vld [vmem:[%s437] sm:%s430]
              %440 = vst [vmem:[%s438] sm:%s430] %v439
            $region246: #{tpu_custom_call.1} parent=240 // loop_footer
              %s436 = sadd.s32 1, %s432
            $region247: #{tpu_custom_call.1} parent=240 // loop_footer_branch
              %431 = sbr.rel target = $region243
            $region248: #{tpu_custom_call.1} parent=240 // loop_exit
              _
          $region241: #{tpu_custom_call.1} parent=225 // pred_fallthru
            _
        $region226: #{tpu_custom_call.1} parent=11 // pred_fallthru
          _
        // Predicated region
        $region227: #{tpu_custom_call.1} parent=11 // pred_check
          %p404 = pneg %p400
        $region228: #{tpu_custom_call.1} parent=11 // pred_check_branch
          %406 = sbr.rel (%p404) target = $region230
        $region229: #{tpu_custom_call.1} parent=11 // pred_region
          %s407 = sshll.u32 1, 1
          %s408 = ssub.s32 %s407, 1
          loop: start=0, step=1, limit=1
          $region231: #{tpu_custom_call.1} parent=229 // loop_pre_header
            _
          $region232: #{tpu_custom_call.1} parent=229 // loop_header
            %s410 = sphi 0, %s414
            %p411 = scmp.ge.s32.totalorder %s410, 1
            %s415 = sphi %s397, %s397
            %s416 = sphi %s398, %s398
          $region233: #{tpu_custom_call.1} parent=229 // loop_header_branch
            %413 = sbr.rel (%p411) target = $region237
          $region234: #{tpu_custom_call.1} parent=229 // loop_body
            %v417 = vld [vmem:[%s415] sm:%s408]
            %418 = vst [vmem:[%s416] sm:%s408] %v417
          $region235: #{tpu_custom_call.1} parent=229 // loop_footer
            %s414 = sadd.s32 1, %s410
          $region236: #{tpu_custom_call.1} parent=229 // loop_footer_branch
            %409 = sbr.rel target = $region232
          $region237: #{tpu_custom_call.1} parent=229 // loop_exit
            _
        $region230: #{tpu_custom_call.1} parent=11 // pred_fallthru
          _
        // Predicated region
        $region249: #{tpu_custom_call.1} parent=11 // pred_check
          _
        $region250: #{tpu_custom_call.1} parent=11 // pred_check_branch
          %443 = sbr.rel (0) target = $region252
        $region251: #{tpu_custom_call.1} parent=11 // pred_region
          %444 = vsyncadd [#allocation4], 16
        $region252: #{tpu_custom_call.1} parent=11 // pred_fallthru
          _
        %s445 = smul.u32 %s17, 24
        %s446 = sadd.s32 %s445, 8
        %s447 = sld [smem:[#allocation6 + %s446]]
        %s448 = scalar_lea.vmem %s1, %s447
        %s449 = scalar_lea.sflag [#allocation4], 1
        %p451 = scmp.lt.u32.totalorder 1, 8
        %p452 = pneg %p451
        // Predicated region
        $region253: #{tpu_custom_call.1} parent=11 // pred_check
          _
        $region254: #{tpu_custom_call.1} parent=11 // pred_check_branch
          %454 = sbr.rel (%p451) target = $region256
        $region255: #{tpu_custom_call.1} parent=11 // pred_region
          %s470 = sand.u32 1, 7
          %p471 = scmp.eq.s32.totalorder %s470, 0
          %p472 = pneg %p471
          // Predicated region
          $region268: #{tpu_custom_call.1} parent=255 // pred_check
            _
          $region269: #{tpu_custom_call.1} parent=255 // pred_check_branch
            %474 = sbr.rel (%p471) target = $region271
          $region270: #{tpu_custom_call.1} parent=255 // pred_region
            %s475 = sand.u32 1, 7
            %s476 = ssub.s32 1, %s475
            %s477 = scalar_lea.vmem %s448, %s476
            %s478 = ssub.s32 1, %s475
            %s479 = scalar_lea.vmem [#allocation3], %s478
            %s480 = sshll.u32 1, %s475
            %s481 = ssub.s32 %s480, 1
            loop: start=0, step=1, limit=1
            $region272: #{tpu_custom_call.1} parent=270 // loop_pre_header
              _
            $region273: #{tpu_custom_call.1} parent=270 // loop_header
              %s483 = sphi 0, %s487
              %p484 = scmp.ge.s32.totalorder %s483, 1
              %s488 = sphi %s477, %s477
              %s489 = sphi %s479, %s479
            $region274: #{tpu_custom_call.1} parent=270 // loop_header_branch
              %486 = sbr.rel (%p484) target = $region278
            $region275: #{tpu_custom_call.1} parent=270 // loop_body
              %v490 = vld [vmem:[%s488] sm:%s481]
              %491 = vst [vmem:[%s489] sm:%s481] %v490
            $region276: #{tpu_custom_call.1} parent=270 // loop_footer
              %s487 = sadd.s32 1, %s483
            $region277: #{tpu_custom_call.1} parent=270 // loop_footer_branch
              %482 = sbr.rel target = $region273
            $region278: #{tpu_custom_call.1} parent=270 // loop_exit
              _
          $region271: #{tpu_custom_call.1} parent=255 // pred_fallthru
            _
        $region256: #{tpu_custom_call.1} parent=11 // pred_fallthru
          _
        // Predicated region
        $region257: #{tpu_custom_call.1} parent=11 // pred_check
          %p455 = pneg %p451
        $region258: #{tpu_custom_call.1} parent=11 // pred_check_branch
          %457 = sbr.rel (%p455) target = $region260
        $region259: #{tpu_custom_call.1} parent=11 // pred_region
          %s458 = sshll.u32 1, 1
          %s459 = ssub.s32 %s458, 1
          loop: start=0, step=1, limit=1
          $region261: #{tpu_custom_call.1} parent=259 // loop_pre_header
            _
          $region262: #{tpu_custom_call.1} parent=259 // loop_header
            %s461 = sphi 0, %s465
            %p462 = scmp.ge.s32.totalorder %s461, 1
            %s466 = sphi %s448, %s448
            %s467 = sphi [#allocation3], [#allocation3]
          $region263: #{tpu_custom_call.1} parent=259 // loop_header_branch
            %464 = sbr.rel (%p462) target = $region267
          $region264: #{tpu_custom_call.1} parent=259 // loop_body
            %v468 = vld [vmem:[%s466] sm:%s459]
            %469 = vst [vmem:[%s467] sm:%s459] %v468
          $region265: #{tpu_custom_call.1} parent=259 // loop_footer
            %s465 = sadd.s32 1, %s461
          $region266: #{tpu_custom_call.1} parent=259 // loop_footer_branch
            %460 = sbr.rel target = $region262
          $region267: #{tpu_custom_call.1} parent=259 // loop_exit
            _
        $region260: #{tpu_custom_call.1} parent=11 // pred_fallthru
          _
        // Predicated region
        $region279: #{tpu_custom_call.1} parent=11 // pred_check
          _
        $region280: #{tpu_custom_call.1} parent=11 // pred_check_branch
          %494 = sbr.rel (0) target = $region282
        $region281: #{tpu_custom_call.1} parent=11 // pred_region
          %495 = vsyncadd %s449, 16
        $region282: #{tpu_custom_call.1} parent=11 // pred_fallthru
          _
        %s496 = sadd.s32 %s445, 9
        %s497 = sld [smem:[#allocation6 + %s496]]
        %s498 = scalar_lea.vmem %s1, %s497
        %s499 = scalar_lea.vmem [#allocation3], 1
        %p501 = scmp.lt.u32.totalorder 1, 8
        %p502 = pneg %p501
        // Predicated region
        $region283: #{tpu_custom_call.1} parent=11 // pred_check
          _
        $region284: #{tpu_custom_call.1} parent=11 // pred_check_branch
          %504 = sbr.rel (%p501) target = $region286
        $region285: #{tpu_custom_call.1} parent=11 // pred_region
          %s520 = sand.u32 1, 7
          %p521 = scmp.eq.s32.totalorder %s520, 0
          %p522 = pneg %p521
          // Predicated region
          $region298: #{tpu_custom_call.1} parent=285 // pred_check
            _
          $region299: #{tpu_custom_call.1} parent=285 // pred_check_branch
            %524 = sbr.rel (%p521) target = $region301
          $region300: #{tpu_custom_call.1} parent=285 // pred_region
            %s525 = sand.u32 1, 7
            %s526 = ssub.s32 1, %s525
            %s527 = scalar_lea.vmem %s498, %s526
            %s528 = ssub.s32 1, %s525
            %s529 = scalar_lea.vmem %s499, %s528 [#allocation3]
            %s530 = sshll.u32 1, %s525
            %s531 = ssub.s32 %s530, 1
            loop: start=0, step=1, limit=1
            $region302: #{tpu_custom_call.1} parent=300 // loop_pre_header
              _
            $region303: #{tpu_custom_call.1} parent=300 // loop_header
              %s533 = sphi 0, %s537
              %p534 = scmp.ge.s32.totalorder %s533, 1
              %s538 = sphi %s527, %s527
              %s539 = sphi %s529, %s529
            $region304: #{tpu_custom_call.1} parent=300 // loop_header_branch
              %536 = sbr.rel (%p534) target = $region308
            $region305: #{tpu_custom_call.1} parent=300 // loop_body
              %v540 = vld [vmem:[%s538] sm:%s531]
              %541 = vst [vmem:[%s539] sm:%s531] %v540
            $region306: #{tpu_custom_call.1} parent=300 // loop_footer
              %s537 = sadd.s32 1, %s533
            $region307: #{tpu_custom_call.1} parent=300 // loop_footer_branch
              %532 = sbr.rel target = $region303
            $region308: #{tpu_custom_call.1} parent=300 // loop_exit
              _
          $region301: #{tpu_custom_call.1} parent=285 // pred_fallthru
            _
        $region286: #{tpu_custom_call.1} parent=11 // pred_fallthru
          _
        // Predicated region
        $region287: #{tpu_custom_call.1} parent=11 // pred_check
          %p505 = pneg %p501
        $region288: #{tpu_custom_call.1} parent=11 // pred_check_branch
          %507 = sbr.rel (%p505) target = $region290
        $region289: #{tpu_custom_call.1} parent=11 // pred_region
          %s508 = sshll.u32 1, 1
          %s509 = ssub.s32 %s508, 1
          loop: start=0, step=1, limit=1
          $region291: #{tpu_custom_call.1} parent=289 // loop_pre_header
            _
          $region292: #{tpu_custom_call.1} parent=289 // loop_header
            %s511 = sphi 0, %s515
            %p512 = scmp.ge.s32.totalorder %s511, 1
            %s516 = sphi %s498, %s498
            %s517 = sphi %s499, %s499
          $region293: #{tpu_custom_call.1} parent=289 // loop_header_branch
            %514 = sbr.rel (%p512) target = $region297
          $region294: #{tpu_custom_call.1} parent=289 // loop_body
            %v518 = vld [vmem:[%s516] sm:%s509]
            %519 = vst [vmem:[%s517] sm:%s509] %v518
          $region295: #{tpu_custom_call.1} parent=289 // loop_footer
            %s515 = sadd.s32 1, %s511
          $region296: #{tpu_custom_call.1} parent=289 // loop_footer_branch
            %510 = sbr.rel target = $region292
          $region297: #{tpu_custom_call.1} parent=289 // loop_exit
            _
        $region290: #{tpu_custom_call.1} parent=11 // pred_fallthru
          _
        // Predicated region
        $region309: #{tpu_custom_call.1} parent=11 // pred_check
          _
        $region310: #{tpu_custom_call.1} parent=11 // pred_check_branch
          %544 = sbr.rel (0) target = $region312
        $region311: #{tpu_custom_call.1} parent=11 // pred_region
          %545 = vsyncadd %s449, 16
        $region312: #{tpu_custom_call.1} parent=11 // pred_fallthru
          _
        %s546 = sadd.s32 %s445, 10
        %s547 = sld [smem:[#allocation6 + %s546]]
        %s548 = scalar_lea.vmem %s1, %s547
        %s549 = scalar_lea.vmem [#allocation3], 2
        %p551 = scmp.lt.u32.totalorder 1, 8
        %p552 = pneg %p551
        // Predicated region
        $region313: #{tpu_custom_call.1} parent=11 // pred_check
          _
        $region314: #{tpu_custom_call.1} parent=11 // pred_check_branch
          %554 = sbr.rel (%p551) target = $region316
        $region315: #{tpu_custom_call.1} parent=11 // pred_region
          %s570 = sand.u32 1, 7
          %p571 = scmp.eq.s32.totalorder %s570, 0
          %p572 = pneg %p571
          // Predicated region
          $region328: #{tpu_custom_call.1} parent=315 // pred_check
            _
          $region329: #{tpu_custom_call.1} parent=315 // pred_check_branch
            %574 = sbr.rel (%p571) target = $region331
          $region330: #{tpu_custom_call.1} parent=315 // pred_region
            %s575 = sand.u32 1, 7
            %s576 = ssub.s32 1, %s575
            %s577 = scalar_lea.vmem %s548, %s576
            %s578 = ssub.s32 1, %s575
            %s579 = scalar_lea.vmem %s549, %s578 [#allocation3]
            %s580 = sshll.u32 1, %s575
            %s581 = ssub.s32 %s580, 1
            loop: start=0, step=1, limit=1
            $region332: #{tpu_custom_call.1} parent=330 // loop_pre_header
              _
            $region333: #{tpu_custom_call.1} parent=330 // loop_header
              %s583 = sphi 0, %s587
              %p584 = scmp.ge.s32.totalorder %s583, 1
              %s588 = sphi %s577, %s577
              %s589 = sphi %s579, %s579
            $region334: #{tpu_custom_call.1} parent=330 // loop_header_branch
              %586 = sbr.rel (%p584) target = $region338
            $region335: #{tpu_custom_call.1} parent=330 // loop_body
              %v590 = vld [vmem:[%s588] sm:%s581]
              %591 = vst [vmem:[%s589] sm:%s581] %v590
            $region336: #{tpu_custom_call.1} parent=330 // loop_footer
              %s587 = sadd.s32 1, %s583
            $region337: #{tpu_custom_call.1} parent=330 // loop_footer_branch
              %582 = sbr.rel target = $region333
            $region338: #{tpu_custom_call.1} parent=330 // loop_exit
              _
          $region331: #{tpu_custom_call.1} parent=315 // pred_fallthru
            _
        $region316: #{tpu_custom_call.1} parent=11 // pred_fallthru
          _
        // Predicated region
        $region317: #{tpu_custom_call.1} parent=11 // pred_check
          %p555 = pneg %p551
        $region318: #{tpu_custom_call.1} parent=11 // pred_check_branch
          %557 = sbr.rel (%p555) target = $region320
        $region319: #{tpu_custom_call.1} parent=11 // pred_region
          %s558 = sshll.u32 1, 1
          %s559 = ssub.s32 %s558, 1
          loop: start=0, step=1, limit=1
          $region321: #{tpu_custom_call.1} parent=319 // loop_pre_header
            _
          $region322: #{tpu_custom_call.1} parent=319 // loop_header
            %s561 = sphi 0, %s565
            %p562 = scmp.ge.s32.totalorder %s561, 1
            %s566 = sphi %s548, %s548
            %s567 = sphi %s549, %s549
          $region323: #{tpu_custom_call.1} parent=319 // loop_header_branch
            %564 = sbr.rel (%p562) target = $region327
          $region324: #{tpu_custom_call.1} parent=319 // loop_body
            %v568 = vld [vmem:[%s566] sm:%s559]
            %569 = vst [vmem:[%s567] sm:%s559] %v568
          $region325: #{tpu_custom_call.1} parent=319 // loop_footer
            %s565 = sadd.s32 1, %s561
          $region326: #{tpu_custom_call.1} parent=319 // loop_footer_branch
            %560 = sbr.rel target = $region322
          $region327: #{tpu_custom_call.1} parent=319 // loop_exit
            _
        $region320: #{tpu_custom_call.1} parent=11 // pred_fallthru
          _
        // Predicated region
        $region339: #{tpu_custom_call.1} parent=11 // pred_check
          _
        $region340: #{tpu_custom_call.1} parent=11 // pred_check_branch
          %594 = sbr.rel (0) target = $region342
        $region341: #{tpu_custom_call.1} parent=11 // pred_region
          %595 = vsyncadd %s449, 16
        $region342: #{tpu_custom_call.1} parent=11 // pred_fallthru
          _
        %s596 = sadd.s32 %s445, 11
        %s597 = sld [smem:[#allocation6 + %s596]]
        %s598 = scalar_lea.vmem %s1, %s597
        %s599 = scalar_lea.vmem [#allocation3], 3
        %p601 = scmp.lt.u32.totalorder 1, 8
        %p602 = pneg %p601
        // Predicated region
        $region343: #{tpu_custom_call.1} parent=11 // pred_check
          _
        $region344: #{tpu_custom_call.1} parent=11 // pred_check_branch
          %604 = sbr.rel (%p601) target = $region346
        $region345: #{tpu_custom_call.1} parent=11 // pred_region
          %s620 = sand.u32 1, 7
          %p621 = scmp.eq.s32.totalorder %s620, 0
          %p622 = pneg %p621
          // Predicated region
          $region358: #{tpu_custom_call.1} parent=345 // pred_check
            _
          $region359: #{tpu_custom_call.1} parent=345 // pred_check_branch
            %624 = sbr.rel (%p621) target = $region361
          $region360: #{tpu_custom_call.1} parent=345 // pred_region
            %s625 = sand.u32 1, 7
            %s626 = ssub.s32 1, %s625
            %s627 = scalar_lea.vmem %s598, %s626
            %s628 = ssub.s32 1, %s625
            %s629 = scalar_lea.vmem %s599, %s628 [#allocation3]
            %s630 = sshll.u32 1, %s625
            %s631 = ssub.s32 %s630, 1
            loop: start=0, step=1, limit=1
            $region362: #{tpu_custom_call.1} parent=360 // loop_pre_header
              _
            $region363: #{tpu_custom_call.1} parent=360 // loop_header
              %s633 = sphi 0, %s637
              %p634 = scmp.ge.s32.totalorder %s633, 1
              %s638 = sphi %s627, %s627
              %s639 = sphi %s629, %s629
            $region364: #{tpu_custom_call.1} parent=360 // loop_header_branch
              %636 = sbr.rel (%p634) target = $region368
            $region365: #{tpu_custom_call.1} parent=360 // loop_body
              %v640 = vld [vmem:[%s638] sm:%s631]
              %641 = vst [vmem:[%s639] sm:%s631] %v640
            $region366: #{tpu_custom_call.1} parent=360 // loop_footer
              %s637 = sadd.s32 1, %s633
            $region367: #{tpu_custom_call.1} parent=360 // loop_footer_branch
              %632 = sbr.rel target = $region363
            $region368: #{tpu_custom_call.1} parent=360 // loop_exit
              _
          $region361: #{tpu_custom_call.1} parent=345 // pred_fallthru
            _
        $region346: #{tpu_custom_call.1} parent=11 // pred_fallthru
          _
        // Predicated region
        $region347: #{tpu_custom_call.1} parent=11 // pred_check
          %p605 = pneg %p601
        $region348: #{tpu_custom_call.1} parent=11 // pred_check_branch
          %607 = sbr.rel (%p605) target = $region350
        $region349: #{tpu_custom_call.1} parent=11 // pred_region
          %s608 = sshll.u32 1, 1
          %s609 = ssub.s32 %s608, 1
          loop: start=0, step=1, limit=1
          $region351: #{tpu_custom_call.1} parent=349 // loop_pre_header
            _
          $region352: #{tpu_custom_call.1} parent=349 // loop_header
            %s611 = sphi 0, %s615
            %p612 = scmp.ge.s32.totalorder %s611, 1
            %s616 = sphi %s598, %s598
            %s617 = sphi %s599, %s599
          $region353: #{tpu_custom_call.1} parent=349 // loop_header_branch
            %614 = sbr.rel (%p612) target = $region357
          $region354: #{tpu_custom_call.1} parent=349 // loop_body
            %v618 = vld [vmem:[%s616] sm:%s609]
            %619 = vst [vmem:[%s617] sm:%s609] %v618
          $region355: #{tpu_custom_call.1} parent=349 // loop_footer
            %s615 = sadd.s32 1, %s611
          $region356: #{tpu_custom_call.1} parent=349 // loop_footer_branch
            %610 = sbr.rel target = $region352
          $region357: #{tpu_custom_call.1} parent=349 // loop_exit
            _
        $region350: #{tpu_custom_call.1} parent=11 // pred_fallthru
          _
        // Predicated region
        $region369: #{tpu_custom_call.1} parent=11 // pred_check
          _
        $region370: #{tpu_custom_call.1} parent=11 // pred_check_branch
          %644 = sbr.rel (0) target = $region372
        $region371: #{tpu_custom_call.1} parent=11 // pred_region
          %645 = vsyncadd %s449, 16
        $region372: #{tpu_custom_call.1} parent=11 // pred_fallthru
          _
        %s646 = sadd.s32 %s445, 12
        %s647 = sld [smem:[#allocation6 + %s646]]
        %s648 = scalar_lea.vmem %s1, %s647
        %s649 = scalar_lea.vmem [#allocation3], 4
        %p651 = scmp.lt.u32.totalorder 1, 8
        %p652 = pneg %p651
        // Predicated region
        $region373: #{tpu_custom_call.1} parent=11 // pred_check
          _
        $region374: #{tpu_custom_call.1} parent=11 // pred_check_branch
          %654 = sbr.rel (%p651) target = $region376
        $region375: #{tpu_custom_call.1} parent=11 // pred_region
          %s670 = sand.u32 1, 7
          %p671 = scmp.eq.s32.totalorder %s670, 0
          %p672 = pneg %p671
          // Predicated region
          $region388: #{tpu_custom_call.1} parent=375 // pred_check
            _
          $region389: #{tpu_custom_call.1} parent=375 // pred_check_branch
            %674 = sbr.rel (%p671) target = $region391
          $region390: #{tpu_custom_call.1} parent=375 // pred_region
            %s675 = sand.u32 1, 7
            %s676 = ssub.s32 1, %s675
            %s677 = scalar_lea.vmem %s648, %s676
            %s678 = ssub.s32 1, %s675
            %s679 = scalar_lea.vmem %s649, %s678 [#allocation3]
            %s680 = sshll.u32 1, %s675
            %s681 = ssub.s32 %s680, 1
            loop: start=0, step=1, limit=1
            $region392: #{tpu_custom_call.1} parent=390 // loop_pre_header
              _
            $region393: #{tpu_custom_call.1} parent=390 // loop_header
              %s683 = sphi 0, %s687
              %p684 = scmp.ge.s32.totalorder %s683, 1
              %s688 = sphi %s677, %s677
              %s689 = sphi %s679, %s679
            $region394: #{tpu_custom_call.1} parent=390 // loop_header_branch
              %686 = sbr.rel (%p684) target = $region398
            $region395: #{tpu_custom_call.1} parent=390 // loop_body
              %v690 = vld [vmem:[%s688] sm:%s681]
              %691 = vst [vmem:[%s689] sm:%s681] %v690
            $region396: #{tpu_custom_call.1} parent=390 // loop_footer
              %s687 = sadd.s32 1, %s683
            $region397: #{tpu_custom_call.1} parent=390 // loop_footer_branch
              %682 = sbr.rel target = $region393
            $region398: #{tpu_custom_call.1} parent=390 // loop_exit
              _
          $region391: #{tpu_custom_call.1} parent=375 // pred_fallthru
            _
        $region376: #{tpu_custom_call.1} parent=11 // pred_fallthru
          _
        // Predicated region
        $region377: #{tpu_custom_call.1} parent=11 // pred_check
          %p655 = pneg %p651
        $region378: #{tpu_custom_call.1} parent=11 // pred_check_branch
          %657 = sbr.rel (%p655) target = $region380
        $region379: #{tpu_custom_call.1} parent=11 // pred_region
          %s658 = sshll.u32 1, 1
          %s659 = ssub.s32 %s658, 1
          loop: start=0, step=1, limit=1
          $region381: #{tpu_custom_call.1} parent=379 // loop_pre_header
            _
          $region382: #{tpu_custom_call.1} parent=379 // loop_header
            %s661 = sphi 0, %s665
            %p662 = scmp.ge.s32.totalorder %s661, 1
            %s666 = sphi %s648, %s648
            %s667 = sphi %s649, %s649
          $region383: #{tpu_custom_call.1} parent=379 // loop_header_branch
            %664 = sbr.rel (%p662) target = $region387
          $region384: #{tpu_custom_call.1} parent=379 // loop_body
            %v668 = vld [vmem:[%s666] sm:%s659]
            %669 = vst [vmem:[%s667] sm:%s659] %v668
          $region385: #{tpu_custom_call.1} parent=379 // loop_footer
            %s665 = sadd.s32 1, %s661
          $region386: #{tpu_custom_call.1} parent=379 // loop_footer_branch
            %660 = sbr.rel target = $region382
          $region387: #{tpu_custom_call.1} parent=379 // loop_exit
            _
        $region380: #{tpu_custom_call.1} parent=11 // pred_fallthru
          _
        // Predicated region
        $region399: #{tpu_custom_call.1} parent=11 // pred_check
          _
        $region400: #{tpu_custom_call.1} parent=11 // pred_check_branch
          %694 = sbr.rel (0) target = $region402
        $region401: #{tpu_custom_call.1} parent=11 // pred_region
          %695 = vsyncadd %s449, 16
        $region402: #{tpu_custom_call.1} parent=11 // pred_fallthru
          _
        %s696 = sadd.s32 %s445, 13
        %s697 = sld [smem:[#allocation6 + %s696]]
        %s698 = scalar_lea.vmem %s1, %s697
        %s699 = scalar_lea.vmem [#allocation3], 5
        %p701 = scmp.lt.u32.totalorder 1, 8
        %p702 = pneg %p701
        // Predicated region
        $region403: #{tpu_custom_call.1} parent=11 // pred_check
          _
        $region404: #{tpu_custom_call.1} parent=11 // pred_check_branch
          %704 = sbr.rel (%p701) target = $region406
        $region405: #{tpu_custom_call.1} parent=11 // pred_region
          %s720 = sand.u32 1, 7
          %p721 = scmp.eq.s32.totalorder %s720, 0
          %p722 = pneg %p721
          // Predicated region
          $region418: #{tpu_custom_call.1} parent=405 // pred_check
            _
          $region419: #{tpu_custom_call.1} parent=405 // pred_check_branch
            %724 = sbr.rel (%p721) target = $region421
          $region420: #{tpu_custom_call.1} parent=405 // pred_region
            %s725 = sand.u32 1, 7
            %s726 = ssub.s32 1, %s725
            %s727 = scalar_lea.vmem %s698, %s726
            %s728 = ssub.s32 1, %s725
            %s729 = scalar_lea.vmem %s699, %s728 [#allocation3]
            %s730 = sshll.u32 1, %s725
            %s731 = ssub.s32 %s730, 1
            loop: start=0, step=1, limit=1
            $region422: #{tpu_custom_call.1} parent=420 // loop_pre_header
              _
            $region423: #{tpu_custom_call.1} parent=420 // loop_header
              %s733 = sphi 0, %s737
              %p734 = scmp.ge.s32.totalorder %s733, 1
              %s738 = sphi %s727, %s727
              %s739 = sphi %s729, %s729
            $region424: #{tpu_custom_call.1} parent=420 // loop_header_branch
              %736 = sbr.rel (%p734) target = $region428
            $region425: #{tpu_custom_call.1} parent=420 // loop_body
              %v740 = vld [vmem:[%s738] sm:%s731]
              %741 = vst [vmem:[%s739] sm:%s731] %v740
            $region426: #{tpu_custom_call.1} parent=420 // loop_footer
              %s737 = sadd.s32 1, %s733
            $region427: #{tpu_custom_call.1} parent=420 // loop_footer_branch
              %732 = sbr.rel target = $region423
            $region428: #{tpu_custom_call.1} parent=420 // loop_exit
              _
          $region421: #{tpu_custom_call.1} parent=405 // pred_fallthru
            _
        $region406: #{tpu_custom_call.1} parent=11 // pred_fallthru
          _
        // Predicated region
        $region407: #{tpu_custom_call.1} parent=11 // pred_check
          %p705 = pneg %p701
        $region408: #{tpu_custom_call.1} parent=11 // pred_check_branch
          %707 = sbr.rel (%p705) target = $region410
        $region409: #{tpu_custom_call.1} parent=11 // pred_region
          %s708 = sshll.u32 1, 1
          %s709 = ssub.s32 %s708, 1
          loop: start=0, step=1, limit=1
          $region411: #{tpu_custom_call.1} parent=409 // loop_pre_header
            _
          $region412: #{tpu_custom_call.1} parent=409 // loop_header
            %s711 = sphi 0, %s715
            %p712 = scmp.ge.s32.totalorder %s711, 1
            %s716 = sphi %s698, %s698
            %s717 = sphi %s699, %s699
          $region413: #{tpu_custom_call.1} parent=409 // loop_header_branch
            %714 = sbr.rel (%p712) target = $region417
          $region414: #{tpu_custom_call.1} parent=409 // loop_body
            %v718 = vld [vmem:[%s716] sm:%s709]
            %719 = vst [vmem:[%s717] sm:%s709] %v718
          $region415: #{tpu_custom_call.1} parent=409 // loop_footer
            %s715 = sadd.s32 1, %s711
          $region416: #{tpu_custom_call.1} parent=409 // loop_footer_branch
            %710 = sbr.rel target = $region412
          $region417: #{tpu_custom_call.1} parent=409 // loop_exit
            _
        $region410: #{tpu_custom_call.1} parent=11 // pred_fallthru
          _
        // Predicated region
        $region429: #{tpu_custom_call.1} parent=11 // pred_check
          _
        $region430: #{tpu_custom_call.1} parent=11 // pred_check_branch
          %744 = sbr.rel (0) target = $region432
        $region431: #{tpu_custom_call.1} parent=11 // pred_region
          %745 = vsyncadd %s449, 16
        $region432: #{tpu_custom_call.1} parent=11 // pred_fallthru
          _
        %s746 = sadd.s32 %s445, 14
        %s747 = sld [smem:[#allocation6 + %s746]]
        %s748 = scalar_lea.vmem %s1, %s747
        %s749 = scalar_lea.vmem [#allocation3], 6
        %p751 = scmp.lt.u32.totalorder 1, 8
        %p752 = pneg %p751
        // Predicated region
        $region433: #{tpu_custom_call.1} parent=11 // pred_check
          _
        $region434: #{tpu_custom_call.1} parent=11 // pred_check_branch
          %754 = sbr.rel (%p751) target = $region436
        $region435: #{tpu_custom_call.1} parent=11 // pred_region
          %s770 = sand.u32 1, 7
          %p771 = scmp.eq.s32.totalorder %s770, 0
          %p772 = pneg %p771
          // Predicated region
          $region448: #{tpu_custom_call.1} parent=435 // pred_check
            _
          $region449: #{tpu_custom_call.1} parent=435 // pred_check_branch
            %774 = sbr.rel (%p771) target = $region451
          $region450: #{tpu_custom_call.1} parent=435 // pred_region
            %s775 = sand.u32 1, 7
            %s776 = ssub.s32 1, %s775
            %s777 = scalar_lea.vmem %s748, %s776
            %s778 = ssub.s32 1, %s775
            %s779 = scalar_lea.vmem %s749, %s778 [#allocation3]
            %s780 = sshll.u32 1, %s775
            %s781 = ssub.s32 %s780, 1
            loop: start=0, step=1, limit=1
            $region452: #{tpu_custom_call.1} parent=450 // loop_pre_header
              _
            $region453: #{tpu_custom_call.1} parent=450 // loop_header
              %s783 = sphi 0, %s787
              %p784 = scmp.ge.s32.totalorder %s783, 1
              %s788 = sphi %s777, %s777
              %s789 = sphi %s779, %s779
            $region454: #{tpu_custom_call.1} parent=450 // loop_header_branch
              %786 = sbr.rel (%p784) target = $region458
            $region455: #{tpu_custom_call.1} parent=450 // loop_body
              %v790 = vld [vmem:[%s788] sm:%s781]
              %791 = vst [vmem:[%s789] sm:%s781] %v790
            $region456: #{tpu_custom_call.1} parent=450 // loop_footer
              %s787 = sadd.s32 1, %s783
            $region457: #{tpu_custom_call.1} parent=450 // loop_footer_branch
              %782 = sbr.rel target = $region453
            $region458: #{tpu_custom_call.1} parent=450 // loop_exit
              _
          $region451: #{tpu_custom_call.1} parent=435 // pred_fallthru
            _
        $region436: #{tpu_custom_call.1} parent=11 // pred_fallthru
          _
        // Predicated region
        $region437: #{tpu_custom_call.1} parent=11 // pred_check
          %p755 = pneg %p751
        $region438: #{tpu_custom_call.1} parent=11 // pred_check_branch
          %757 = sbr.rel (%p755) target = $region440
        $region439: #{tpu_custom_call.1} parent=11 // pred_region
          %s758 = sshll.u32 1, 1
          %s759 = ssub.s32 %s758, 1
          loop: start=0, step=1, limit=1
          $region441: #{tpu_custom_call.1} parent=439 // loop_pre_header
            _
          $region442: #{tpu_custom_call.1} parent=439 // loop_header
            %s761 = sphi 0, %s765
            %p762 = scmp.ge.s32.totalorder %s761, 1
            %s766 = sphi %s748, %s748
            %s767 = sphi %s749, %s749
          $region443: #{tpu_custom_call.1} parent=439 // loop_header_branch
            %764 = sbr.rel (%p762) target = $region447
          $region444: #{tpu_custom_call.1} parent=439 // loop_body
            %v768 = vld [vmem:[%s766] sm:%s759]
            %769 = vst [vmem:[%s767] sm:%s759] %v768
          $region445: #{tpu_custom_call.1} parent=439 // loop_footer
            %s765 = sadd.s32 1, %s761
          $region446: #{tpu_custom_call.1} parent=439 // loop_footer_branch
            %760 = sbr.rel target = $region442
          $region447: #{tpu_custom_call.1} parent=439 // loop_exit
            _
        $region440: #{tpu_custom_call.1} parent=11 // pred_fallthru
          _
        // Predicated region
        $region459: #{tpu_custom_call.1} parent=11 // pred_check
          _
        $region460: #{tpu_custom_call.1} parent=11 // pred_check_branch
          %794 = sbr.rel (0) target = $region462
        $region461: #{tpu_custom_call.1} parent=11 // pred_region
          %795 = vsyncadd %s449, 16
        $region462: #{tpu_custom_call.1} parent=11 // pred_fallthru
          _
        %s796 = sadd.s32 %s445, 15
        %s797 = sld [smem:[#allocation6 + %s796]]
        %s798 = scalar_lea.vmem %s1, %s797
        %s799 = scalar_lea.vmem [#allocation3], 7
        %p801 = scmp.lt.u32.totalorder 1, 8
        %p802 = pneg %p801
        // Predicated region
        $region463: #{tpu_custom_call.1} parent=11 // pred_check
          _
        $region464: #{tpu_custom_call.1} parent=11 // pred_check_branch
          %804 = sbr.rel (%p801) target = $region466
        $region465: #{tpu_custom_call.1} parent=11 // pred_region
          %s820 = sand.u32 1, 7
          %p821 = scmp.eq.s32.totalorder %s820, 0
          %p822 = pneg %p821
          // Predicated region
          $region478: #{tpu_custom_call.1} parent=465 // pred_check
            _
          $region479: #{tpu_custom_call.1} parent=465 // pred_check_branch
            %824 = sbr.rel (%p821) target = $region481
          $region480: #{tpu_custom_call.1} parent=465 // pred_region
            %s825 = sand.u32 1, 7
            %s826 = ssub.s32 1, %s825
            %s827 = scalar_lea.vmem %s798, %s826
            %s828 = ssub.s32 1, %s825
            %s829 = scalar_lea.vmem %s799, %s828 [#allocation3]
            %s830 = sshll.u32 1, %s825
            %s831 = ssub.s32 %s830, 1
            loop: start=0, step=1, limit=1
            $region482: #{tpu_custom_call.1} parent=480 // loop_pre_header
              _
            $region483: #{tpu_custom_call.1} parent=480 // loop_header
              %s833 = sphi 0, %s837
              %p834 = scmp.ge.s32.totalorder %s833, 1
              %s838 = sphi %s827, %s827
              %s839 = sphi %s829, %s829
            $region484: #{tpu_custom_call.1} parent=480 // loop_header_branch
              %836 = sbr.rel (%p834) target = $region488
            $region485: #{tpu_custom_call.1} parent=480 // loop_body
              %v840 = vld [vmem:[%s838] sm:%s831]
              %841 = vst [vmem:[%s839] sm:%s831] %v840
            $region486: #{tpu_custom_call.1} parent=480 // loop_footer
              %s837 = sadd.s32 1, %s833
            $region487: #{tpu_custom_call.1} parent=480 // loop_footer_branch
              %832 = sbr.rel target = $region483
            $region488: #{tpu_custom_call.1} parent=480 // loop_exit
              _
          $region481: #{tpu_custom_call.1} parent=465 // pred_fallthru
            _
        $region466: #{tpu_custom_call.1} parent=11 // pred_fallthru
          _
        // Predicated region
        $region467: #{tpu_custom_call.1} parent=11 // pred_check
          %p805 = pneg %p801
        $region468: #{tpu_custom_call.1} parent=11 // pred_check_branch
          %807 = sbr.rel (%p805) target = $region470
        $region469: #{tpu_custom_call.1} parent=11 // pred_region
          %s808 = sshll.u32 1, 1
          %s809 = ssub.s32 %s808, 1
          loop: start=0, step=1, limit=1
          $region471: #{tpu_custom_call.1} parent=469 // loop_pre_header
            _
          $region472: #{tpu_custom_call.1} parent=469 // loop_header
            %s811 = sphi 0, %s815
            %p812 = scmp.ge.s32.totalorder %s811, 1
            %s816 = sphi %s798, %s798
            %s817 = sphi %s799, %s799
          $region473: #{tpu_custom_call.1} parent=469 // loop_header_branch
            %814 = sbr.rel (%p812) target = $region477
          $region474: #{tpu_custom_call.1} parent=469 // loop_body
            %v818 = vld [vmem:[%s816] sm:%s809]
            %819 = vst [vmem:[%s817] sm:%s809] %v818
          $region475: #{tpu_custom_call.1} parent=469 // loop_footer
            %s815 = sadd.s32 1, %s811
          $region476: #{tpu_custom_call.1} parent=469 // loop_footer_branch
            %810 = sbr.rel target = $region472
          $region477: #{tpu_custom_call.1} parent=469 // loop_exit
            _
        $region470: #{tpu_custom_call.1} parent=11 // pred_fallthru
          _
        // Predicated region
        $region489: #{tpu_custom_call.1} parent=11 // pred_check
          _
        $region490: #{tpu_custom_call.1} parent=11 // pred_check_branch
          %844 = sbr.rel (0) target = $region492
        $region491: #{tpu_custom_call.1} parent=11 // pred_region
          %845 = vsyncadd %s449, 16
        $region492: #{tpu_custom_call.1} parent=11 // pred_fallthru
          _
        %s846 = sadd.s32 %s445, 16
        %s847 = sld [smem:[#allocation6 + %s846]]
        %s848 = scalar_lea.vmem %s1, %s847
        %s849 = scalar_lea.vmem [#allocation3], 8
        %p851 = scmp.lt.u32.totalorder 1, 8
        %p852 = pneg %p851
        // Predicated region
        $region493: #{tpu_custom_call.1} parent=11 // pred_check
          _
        $region494: #{tpu_custom_call.1} parent=11 // pred_check_branch
          %854 = sbr.rel (%p851) target = $region496
        $region495: #{tpu_custom_call.1} parent=11 // pred_region
          %s870 = sand.u32 1, 7
          %p871 = scmp.eq.s32.totalorder %s870, 0
          %p872 = pneg %p871
          // Predicated region
          $region508: #{tpu_custom_call.1} parent=495 // pred_check
            _
          $region509: #{tpu_custom_call.1} parent=495 // pred_check_branch
            %874 = sbr.rel (%p871) target = $region511
          $region510: #{tpu_custom_call.1} parent=495 // pred_region
            %s875 = sand.u32 1, 7
            %s876 = ssub.s32 1, %s875
            %s877 = scalar_lea.vmem %s848, %s876
            %s878 = ssub.s32 1, %s875
            %s879 = scalar_lea.vmem %s849, %s878 [#allocation3]
            %s880 = sshll.u32 1, %s875
            %s881 = ssub.s32 %s880, 1
            loop: start=0, step=1, limit=1
            $region512: #{tpu_custom_call.1} parent=510 // loop_pre_header
              _
            $region513: #{tpu_custom_call.1} parent=510 // loop_header
              %s883 = sphi 0, %s887
              %p884 = scmp.ge.s32.totalorder %s883, 1
              %s888 = sphi %s877, %s877
              %s889 = sphi %s879, %s879
            $region514: #{tpu_custom_call.1} parent=510 // loop_header_branch
              %886 = sbr.rel (%p884) target = $region518
            $region515: #{tpu_custom_call.1} parent=510 // loop_body
              %v890 = vld [vmem:[%s888] sm:%s881]
              %891 = vst [vmem:[%s889] sm:%s881] %v890
            $region516: #{tpu_custom_call.1} parent=510 // loop_footer
              %s887 = sadd.s32 1, %s883
            $region517: #{tpu_custom_call.1} parent=510 // loop_footer_branch
              %882 = sbr.rel target = $region513
            $region518: #{tpu_custom_call.1} parent=510 // loop_exit
              _
          $region511: #{tpu_custom_call.1} parent=495 // pred_fallthru
            _
        $region496: #{tpu_custom_call.1} parent=11 // pred_fallthru
          _
        // Predicated region
        $region497: #{tpu_custom_call.1} parent=11 // pred_check
          %p855 = pneg %p851
        $region498: #{tpu_custom_call.1} parent=11 // pred_check_branch
          %857 = sbr.rel (%p855) target = $region500
        $region499: #{tpu_custom_call.1} parent=11 // pred_region
          %s858 = sshll.u32 1, 1
          %s859 = ssub.s32 %s858, 1
          loop: start=0, step=1, limit=1
          $region501: #{tpu_custom_call.1} parent=499 // loop_pre_header
            _
          $region502: #{tpu_custom_call.1} parent=499 // loop_header
            %s861 = sphi 0, %s865
            %p862 = scmp.ge.s32.totalorder %s861, 1
            %s866 = sphi %s848, %s848
            %s867 = sphi %s849, %s849
          $region503: #{tpu_custom_call.1} parent=499 // loop_header_branch
            %864 = sbr.rel (%p862) target = $region507
          $region504: #{tpu_custom_call.1} parent=499 // loop_body
            %v868 = vld [vmem:[%s866] sm:%s859]
            %869 = vst [vmem:[%s867] sm:%s859] %v868
          $region505: #{tpu_custom_call.1} parent=499 // loop_footer
            %s865 = sadd.s32 1, %s861
          $region506: #{tpu_custom_call.1} parent=499 // loop_footer_branch
            %860 = sbr.rel target = $region502
          $region507: #{tpu_custom_call.1} parent=499 // loop_exit
            _
        $region500: #{tpu_custom_call.1} parent=11 // pred_fallthru
          _
        // Predicated region
        $region519: #{tpu_custom_call.1} parent=11 // pred_check
          _
        $region520: #{tpu_custom_call.1} parent=11 // pred_check_branch
          %894 = sbr.rel (0) target = $region522
        $region521: #{tpu_custom_call.1} parent=11 // pred_region
          %895 = vsyncadd %s449, 16
        $region522: #{tpu_custom_call.1} parent=11 // pred_fallthru
          _
        %s896 = sadd.s32 %s445, 17
        %s897 = sld [smem:[#allocation6 + %s896]]
        %s898 = scalar_lea.vmem %s1, %s897
        %s899 = scalar_lea.vmem [#allocation3], 9
        %p901 = scmp.lt.u32.totalorder 1, 8
        %p902 = pneg %p901
        // Predicated region
        $region523: #{tpu_custom_call.1} parent=11 // pred_check
          _
        $region524: #{tpu_custom_call.1} parent=11 // pred_check_branch
          %904 = sbr.rel (%p901) target = $region526
        $region525: #{tpu_custom_call.1} parent=11 // pred_region
          %s920 = sand.u32 1, 7
          %p921 = scmp.eq.s32.totalorder %s920, 0
          %p922 = pneg %p921
          // Predicated region
          $region538: #{tpu_custom_call.1} parent=525 // pred_check
            _
          $region539: #{tpu_custom_call.1} parent=525 // pred_check_branch
            %924 = sbr.rel (%p921) target = $region541
          $region540: #{tpu_custom_call.1} parent=525 // pred_region
            %s925 = sand.u32 1, 7
            %s926 = ssub.s32 1, %s925
            %s927 = scalar_lea.vmem %s898, %s926
            %s928 = ssub.s32 1, %s925
            %s929 = scalar_lea.vmem %s899, %s928 [#allocation3]
            %s930 = sshll.u32 1, %s925
            %s931 = ssub.s32 %s930, 1
            loop: start=0, step=1, limit=1
            $region542: #{tpu_custom_call.1} parent=540 // loop_pre_header
              _
            $region543: #{tpu_custom_call.1} parent=540 // loop_header
              %s933 = sphi 0, %s937
              %p934 = scmp.ge.s32.totalorder %s933, 1
              %s938 = sphi %s927, %s927
              %s939 = sphi %s929, %s929
            $region544: #{tpu_custom_call.1} parent=540 // loop_header_branch
              %936 = sbr.rel (%p934) target = $region548
            $region545: #{tpu_custom_call.1} parent=540 // loop_body
              %v940 = vld [vmem:[%s938] sm:%s931]
              %941 = vst [vmem:[%s939] sm:%s931] %v940
            $region546: #{tpu_custom_call.1} parent=540 // loop_footer
              %s937 = sadd.s32 1, %s933
            $region547: #{tpu_custom_call.1} parent=540 // loop_footer_branch
              %932 = sbr.rel target = $region543
            $region548: #{tpu_custom_call.1} parent=540 // loop_exit
              _
          $region541: #{tpu_custom_call.1} parent=525 // pred_fallthru
            _
        $region526: #{tpu_custom_call.1} parent=11 // pred_fallthru
          _
        // Predicated region
        $region527: #{tpu_custom_call.1} parent=11 // pred_check
          %p905 = pneg %p901
        $region528: #{tpu_custom_call.1} parent=11 // pred_check_branch
          %907 = sbr.rel (%p905) target = $region530
        $region529: #{tpu_custom_call.1} parent=11 // pred_region
          %s908 = sshll.u32 1, 1
          %s909 = ssub.s32 %s908, 1
          loop: start=0, step=1, limit=1
          $region531: #{tpu_custom_call.1} parent=529 // loop_pre_header
            _
          $region532: #{tpu_custom_call.1} parent=529 // loop_header
            %s911 = sphi 0, %s915
            %p912 = scmp.ge.s32.totalorder %s911, 1
            %s916 = sphi %s898, %s898
            %s917 = sphi %s899, %s899
          $region533: #{tpu_custom_call.1} parent=529 // loop_header_branch
            %914 = sbr.rel (%p912) target = $region537
          $region534: #{tpu_custom_call.1} parent=529 // loop_body
            %v918 = vld [vmem:[%s916] sm:%s909]
            %919 = vst [vmem:[%s917] sm:%s909] %v918
          $region535: #{tpu_custom_call.1} parent=529 // loop_footer
            %s915 = sadd.s32 1, %s911
          $region536: #{tpu_custom_call.1} parent=529 // loop_footer_branch
            %910 = sbr.rel target = $region532
          $region537: #{tpu_custom_call.1} parent=529 // loop_exit
            _
        $region530: #{tpu_custom_call.1} parent=11 // pred_fallthru
          _
        // Predicated region
        $region549: #{tpu_custom_call.1} parent=11 // pred_check
          _
        $region550: #{tpu_custom_call.1} parent=11 // pred_check_branch
          %944 = sbr.rel (0) target = $region552
        $region551: #{tpu_custom_call.1} parent=11 // pred_region
          %945 = vsyncadd %s449, 16
        $region552: #{tpu_custom_call.1} parent=11 // pred_fallthru
          _
        %s946 = sadd.s32 %s445, 18
        %s947 = sld [smem:[#allocation6 + %s946]]
        %s948 = scalar_lea.vmem %s1, %s947
        %s949 = scalar_lea.vmem [#allocation3], 10
        %p951 = scmp.lt.u32.totalorder 1, 8
        %p952 = pneg %p951
        // Predicated region
        $region553: #{tpu_custom_call.1} parent=11 // pred_check
          _
        $region554: #{tpu_custom_call.1} parent=11 // pred_check_branch
          %954 = sbr.rel (%p951) target = $region556
        $region555: #{tpu_custom_call.1} parent=11 // pred_region
          %s970 = sand.u32 1, 7
          %p971 = scmp.eq.s32.totalorder %s970, 0
          %p972 = pneg %p971
          // Predicated region
          $region568: #{tpu_custom_call.1} parent=555 // pred_check
            _
          $region569: #{tpu_custom_call.1} parent=555 // pred_check_branch
            %974 = sbr.rel (%p971) target = $region571
          $region570: #{tpu_custom_call.1} parent=555 // pred_region
            %s975 = sand.u32 1, 7
            %s976 = ssub.s32 1, %s975
            %s977 = scalar_lea.vmem %s948, %s976
            %s978 = ssub.s32 1, %s975
            %s979 = scalar_lea.vmem %s949, %s978 [#allocation3]
            %s980 = sshll.u32 1, %s975
            %s981 = ssub.s32 %s980, 1
            loop: start=0, step=1, limit=1
            $region572: #{tpu_custom_call.1} parent=570 // loop_pre_header
              _
            $region573: #{tpu_custom_call.1} parent=570 // loop_header
              %s983 = sphi 0, %s987
              %p984 = scmp.ge.s32.totalorder %s983, 1
              %s988 = sphi %s977, %s977
              %s989 = sphi %s979, %s979
            $region574: #{tpu_custom_call.1} parent=570 // loop_header_branch
              %986 = sbr.rel (%p984) target = $region578
            $region575: #{tpu_custom_call.1} parent=570 // loop_body
              %v990 = vld [vmem:[%s988] sm:%s981]
              %991 = vst [vmem:[%s989] sm:%s981] %v990
            $region576: #{tpu_custom_call.1} parent=570 // loop_footer
              %s987 = sadd.s32 1, %s983
            $region577: #{tpu_custom_call.1} parent=570 // loop_footer_branch
              %982 = sbr.rel target = $region573
            $region578: #{tpu_custom_call.1} parent=570 // loop_exit
              _
          $region571: #{tpu_custom_call.1} parent=555 // pred_fallthru
            _
        $region556: #{tpu_custom_call.1} parent=11 // pred_fallthru
          _
        // Predicated region
        $region557: #{tpu_custom_call.1} parent=11 // pred_check
          %p955 = pneg %p951
        $region558: #{tpu_custom_call.1} parent=11 // pred_check_branch
          %957 = sbr.rel (%p955) target = $region560
        $region559: #{tpu_custom_call.1} parent=11 // pred_region
          %s958 = sshll.u32 1, 1
          %s959 = ssub.s32 %s958, 1
          loop: start=0, step=1, limit=1
          $region561: #{tpu_custom_call.1} parent=559 // loop_pre_header
            _
          $region562: #{tpu_custom_call.1} parent=559 // loop_header
            %s961 = sphi 0, %s965
            %p962 = scmp.ge.s32.totalorder %s961, 1
            %s966 = sphi %s948, %s948
            %s967 = sphi %s949, %s949
          $region563: #{tpu_custom_call.1} parent=559 // loop_header_branch
            %964 = sbr.rel (%p962) target = $region567
          $region564: #{tpu_custom_call.1} parent=559 // loop_body
            %v968 = vld [vmem:[%s966] sm:%s959]
            %969 = vst [vmem:[%s967] sm:%s959] %v968
          $region565: #{tpu_custom_call.1} parent=559 // loop_footer
            %s965 = sadd.s32 1, %s961
          $region566: #{tpu_custom_call.1} parent=559 // loop_footer_branch
            %960 = sbr.rel target = $region562
          $region567: #{tpu_custom_call.1} parent=559 // loop_exit
            _
        $region560: #{tpu_custom_call.1} parent=11 // pred_fallthru
          _
        // Predicated region
        $region579: #{tpu_custom_call.1} parent=11 // pred_check
          _
        $region580: #{tpu_custom_call.1} parent=11 // pred_check_branch
          %994 = sbr.rel (0) target = $region582
        $region581: #{tpu_custom_call.1} parent=11 // pred_region
          %995 = vsyncadd %s449, 16
        $region582: #{tpu_custom_call.1} parent=11 // pred_fallthru
          _
        %s996 = sadd.s32 %s445, 19
        %s997 = sld [smem:[#allocation6 + %s996]]
        %s998 = scalar_lea.vmem %s1, %s997
        %s999 = scalar_lea.vmem [#allocation3], 11
        %p1001 = scmp.lt.u32.totalorder 1, 8
        %p1002 = pneg %p1001
        // Predicated region
        $region583: #{tpu_custom_call.1} parent=11 // pred_check
          _
        $region584: #{tpu_custom_call.1} parent=11 // pred_check_branch
          %1004 = sbr.rel (%p1001) target = $region586
        $region585: #{tpu_custom_call.1} parent=11 // pred_region
          %s1020 = sand.u32 1, 7
          %p1021 = scmp.eq.s32.totalorder %s1020, 0
          %p1022 = pneg %p1021
          // Predicated region
          $region598: #{tpu_custom_call.1} parent=585 // pred_check
            _
          $region599: #{tpu_custom_call.1} parent=585 // pred_check_branch
            %1024 = sbr.rel (%p1021) target = $region601
          $region600: #{tpu_custom_call.1} parent=585 // pred_region
            %s1025 = sand.u32 1, 7
            %s1026 = ssub.s32 1, %s1025
            %s1027 = scalar_lea.vmem %s998, %s1026
            %s1028 = ssub.s32 1, %s1025
            %s1029 = scalar_lea.vmem %s999, %s1028 [#allocation3]
            %s1030 = sshll.u32 1, %s1025
            %s1031 = ssub.s32 %s1030, 1
            loop: start=0, step=1, limit=1
            $region602: #{tpu_custom_call.1} parent=600 // loop_pre_header
              _
            $region603: #{tpu_custom_call.1} parent=600 // loop_header
              %s1033 = sphi 0, %s1037
              %p1034 = scmp.ge.s32.totalorder %s1033, 1
              %s1038 = sphi %s1027, %s1027
              %s1039 = sphi %s1029, %s1029
            $region604: #{tpu_custom_call.1} parent=600 // loop_header_branch
              %1036 = sbr.rel (%p1034) target = $region608
            $region605: #{tpu_custom_call.1} parent=600 // loop_body
              %v1040 = vld [vmem:[%s1038] sm:%s1031]
              %1041 = vst [vmem:[%s1039] sm:%s1031] %v1040
            $region606: #{tpu_custom_call.1} parent=600 // loop_footer
              %s1037 = sadd.s32 1, %s1033
            $region607: #{tpu_custom_call.1} parent=600 // loop_footer_branch
              %1032 = sbr.rel target = $region603
            $region608: #{tpu_custom_call.1} parent=600 // loop_exit
              _
          $region601: #{tpu_custom_call.1} parent=585 // pred_fallthru
            _
        $region586: #{tpu_custom_call.1} parent=11 // pred_fallthru
          _
        // Predicated region
        $region587: #{tpu_custom_call.1} parent=11 // pred_check
          %p1005 = pneg %p1001
        $region588: #{tpu_custom_call.1} parent=11 // pred_check_branch
          %1007 = sbr.rel (%p1005) target = $region590
        $region589: #{tpu_custom_call.1} parent=11 // pred_region
          %s1008 = sshll.u32 1, 1
          %s1009 = ssub.s32 %s1008, 1
          loop: start=0, step=1, limit=1
          $region591: #{tpu_custom_call.1} parent=589 // loop_pre_header
            _
          $region592: #{tpu_custom_call.1} parent=589 // loop_header
            %s1011 = sphi 0, %s1015
            %p1012 = scmp.ge.s32.totalorder %s1011, 1
            %s1016 = sphi %s998, %s998
            %s1017 = sphi %s999, %s999
          $region593: #{tpu_custom_call.1} parent=589 // loop_header_branch
            %1014 = sbr.rel (%p1012) target = $region597
          $region594: #{tpu_custom_call.1} parent=589 // loop_body
            %v1018 = vld [vmem:[%s1016] sm:%s1009]
            %1019 = vst [vmem:[%s1017] sm:%s1009] %v1018
          $region595: #{tpu_custom_call.1} parent=589 // loop_footer
            %s1015 = sadd.s32 1, %s1011
          $region596: #{tpu_custom_call.1} parent=589 // loop_footer_branch
            %1010 = sbr.rel target = $region592
          $region597: #{tpu_custom_call.1} parent=589 // loop_exit
            _
        $region590: #{tpu_custom_call.1} parent=11 // pred_fallthru
          _
        // Predicated region
        $region609: #{tpu_custom_call.1} parent=11 // pred_check
          _
        $region610: #{tpu_custom_call.1} parent=11 // pred_check_branch
          %1044 = sbr.rel (0) target = $region612
        $region611: #{tpu_custom_call.1} parent=11 // pred_region
          %1045 = vsyncadd %s449, 16
        $region612: #{tpu_custom_call.1} parent=11 // pred_fallthru
          _
        %s1046 = sadd.s32 %s445, 20
        %s1047 = sld [smem:[#allocation6 + %s1046]]
        %s1048 = scalar_lea.vmem %s1, %s1047
        %s1049 = scalar_lea.vmem [#allocation3], 12
        %p1051 = scmp.lt.u32.totalorder 1, 8
        %p1052 = pneg %p1051
        // Predicated region
        $region613: #{tpu_custom_call.1} parent=11 // pred_check
          _
        $region614: #{tpu_custom_call.1} parent=11 // pred_check_branch
          %1054 = sbr.rel (%p1051) target = $region616
        $region615: #{tpu_custom_call.1} parent=11 // pred_region
          %s1070 = sand.u32 1, 7
          %p1071 = scmp.eq.s32.totalorder %s1070, 0
          %p1072 = pneg %p1071
          // Predicated region
          $region628: #{tpu_custom_call.1} parent=615 // pred_check
            _
          $region629: #{tpu_custom_call.1} parent=615 // pred_check_branch
            %1074 = sbr.rel (%p1071) target = $region631
          $region630: #{tpu_custom_call.1} parent=615 // pred_region
            %s1075 = sand.u32 1, 7
            %s1076 = ssub.s32 1, %s1075
            %s1077 = scalar_lea.vmem %s1048, %s1076
            %s1078 = ssub.s32 1, %s1075
            %s1079 = scalar_lea.vmem %s1049, %s1078 [#allocation3]
            %s1080 = sshll.u32 1, %s1075
            %s1081 = ssub.s32 %s1080, 1
            loop: start=0, step=1, limit=1
            $region632: #{tpu_custom_call.1} parent=630 // loop_pre_header
              _
            $region633: #{tpu_custom_call.1} parent=630 // loop_header
              %s1083 = sphi 0, %s1087
              %p1084 = scmp.ge.s32.totalorder %s1083, 1
              %s1088 = sphi %s1077, %s1077
              %s1089 = sphi %s1079, %s1079
            $region634: #{tpu_custom_call.1} parent=630 // loop_header_branch
              %1086 = sbr.rel (%p1084) target = $region638
            $region635: #{tpu_custom_call.1} parent=630 // loop_body
              %v1090 = vld [vmem:[%s1088] sm:%s1081]
              %1091 = vst [vmem:[%s1089] sm:%s1081] %v1090
            $region636: #{tpu_custom_call.1} parent=630 // loop_footer
              %s1087 = sadd.s32 1, %s1083
            $region637: #{tpu_custom_call.1} parent=630 // loop_footer_branch
              %1082 = sbr.rel target = $region633
            $region638: #{tpu_custom_call.1} parent=630 // loop_exit
              _
          $region631: #{tpu_custom_call.1} parent=615 // pred_fallthru
            _
        $region616: #{tpu_custom_call.1} parent=11 // pred_fallthru
          _
        // Predicated region
        $region617: #{tpu_custom_call.1} parent=11 // pred_check
          %p1055 = pneg %p1051
        $region618: #{tpu_custom_call.1} parent=11 // pred_check_branch
          %1057 = sbr.rel (%p1055) target = $region620
        $region619: #{tpu_custom_call.1} parent=11 // pred_region
          %s1058 = sshll.u32 1, 1
          %s1059 = ssub.s32 %s1058, 1
          loop: start=0, step=1, limit=1
          $region621: #{tpu_custom_call.1} parent=619 // loop_pre_header
            _
          $region622: #{tpu_custom_call.1} parent=619 // loop_header
            %s1061 = sphi 0, %s1065
            %p1062 = scmp.ge.s32.totalorder %s1061, 1
            %s1066 = sphi %s1048, %s1048
            %s1067 = sphi %s1049, %s1049
          $region623: #{tpu_custom_call.1} parent=619 // loop_header_branch
            %1064 = sbr.rel (%p1062) target = $region627
          $region624: #{tpu_custom_call.1} parent=619 // loop_body
            %v1068 = vld [vmem:[%s1066] sm:%s1059]
            %1069 = vst [vmem:[%s1067] sm:%s1059] %v1068
          $region625: #{tpu_custom_call.1} parent=619 // loop_footer
            %s1065 = sadd.s32 1, %s1061
          $region626: #{tpu_custom_call.1} parent=619 // loop_footer_branch
            %1060 = sbr.rel target = $region622
          $region627: #{tpu_custom_call.1} parent=619 // loop_exit
            _
        $region620: #{tpu_custom_call.1} parent=11 // pred_fallthru
          _
        // Predicated region
        $region639: #{tpu_custom_call.1} parent=11 // pred_check
          _
        $region640: #{tpu_custom_call.1} parent=11 // pred_check_branch
          %1094 = sbr.rel (0) target = $region642
        $region641: #{tpu_custom_call.1} parent=11 // pred_region
          %1095 = vsyncadd %s449, 16
        $region642: #{tpu_custom_call.1} parent=11 // pred_fallthru
          _
        %s1096 = sadd.s32 %s445, 21
        %s1097 = sld [smem:[#allocation6 + %s1096]]
        %s1098 = scalar_lea.vmem %s1, %s1097
        %s1099 = scalar_lea.vmem [#allocation3], 13
        %p1101 = scmp.lt.u32.totalorder 1, 8
        %p1102 = pneg %p1101
        // Predicated region
        $region643: #{tpu_custom_call.1} parent=11 // pred_check
          _
        $region644: #{tpu_custom_call.1} parent=11 // pred_check_branch
          %1104 = sbr.rel (%p1101) target = $region646
        $region645: #{tpu_custom_call.1} parent=11 // pred_region
          %s1120 = sand.u32 1, 7
          %p1121 = scmp.eq.s32.totalorder %s1120, 0
          %p1122 = pneg %p1121
          // Predicated region
          $region658: #{tpu_custom_call.1} parent=645 // pred_check
            _
          $region659: #{tpu_custom_call.1} parent=645 // pred_check_branch
            %1124 = sbr.rel (%p1121) target = $region661
          $region660: #{tpu_custom_call.1} parent=645 // pred_region
            %s1125 = sand.u32 1, 7
            %s1126 = ssub.s32 1, %s1125
            %s1127 = scalar_lea.vmem %s1098, %s1126
            %s1128 = ssub.s32 1, %s1125
            %s1129 = scalar_lea.vmem %s1099, %s1128 [#allocation3]
            %s1130 = sshll.u32 1, %s1125
            %s1131 = ssub.s32 %s1130, 1
            loop: start=0, step=1, limit=1
            $region662: #{tpu_custom_call.1} parent=660 // loop_pre_header
              _
            $region663: #{tpu_custom_call.1} parent=660 // loop_header
              %s1133 = sphi 0, %s1137
              %p1134 = scmp.ge.s32.totalorder %s1133, 1
              %s1138 = sphi %s1127, %s1127
              %s1139 = sphi %s1129, %s1129
            $region664: #{tpu_custom_call.1} parent=660 // loop_header_branch
              %1136 = sbr.rel (%p1134) target = $region668
            $region665: #{tpu_custom_call.1} parent=660 // loop_body
              %v1140 = vld [vmem:[%s1138] sm:%s1131]
              %1141 = vst [vmem:[%s1139] sm:%s1131] %v1140
            $region666: #{tpu_custom_call.1} parent=660 // loop_footer
              %s1137 = sadd.s32 1, %s1133
            $region667: #{tpu_custom_call.1} parent=660 // loop_footer_branch
              %1132 = sbr.rel target = $region663
            $region668: #{tpu_custom_call.1} parent=660 // loop_exit
              _
          $region661: #{tpu_custom_call.1} parent=645 // pred_fallthru
            _
        $region646: #{tpu_custom_call.1} parent=11 // pred_fallthru
          _
        // Predicated region
        $region647: #{tpu_custom_call.1} parent=11 // pred_check
          %p1105 = pneg %p1101
        $region648: #{tpu_custom_call.1} parent=11 // pred_check_branch
          %1107 = sbr.rel (%p1105) target = $region650
        $region649: #{tpu_custom_call.1} parent=11 // pred_region
          %s1108 = sshll.u32 1, 1
          %s1109 = ssub.s32 %s1108, 1
          loop: start=0, step=1, limit=1
          $region651: #{tpu_custom_call.1} parent=649 // loop_pre_header
            _
          $region652: #{tpu_custom_call.1} parent=649 // loop_header
            %s1111 = sphi 0, %s1115
            %p1112 = scmp.ge.s32.totalorder %s1111, 1
            %s1116 = sphi %s1098, %s1098
            %s1117 = sphi %s1099, %s1099
          $region653: #{tpu_custom_call.1} parent=649 // loop_header_branch
            %1114 = sbr.rel (%p1112) target = $region657
          $region654: #{tpu_custom_call.1} parent=649 // loop_body
            %v1118 = vld [vmem:[%s1116] sm:%s1109]
            %1119 = vst [vmem:[%s1117] sm:%s1109] %v1118
          $region655: #{tpu_custom_call.1} parent=649 // loop_footer
            %s1115 = sadd.s32 1, %s1111
          $region656: #{tpu_custom_call.1} parent=649 // loop_footer_branch
            %1110 = sbr.rel target = $region652
          $region657: #{tpu_custom_call.1} parent=649 // loop_exit
            _
        $region650: #{tpu_custom_call.1} parent=11 // pred_fallthru
          _
        // Predicated region
        $region669: #{tpu_custom_call.1} parent=11 // pred_check
          _
        $region670: #{tpu_custom_call.1} parent=11 // pred_check_branch
          %1144 = sbr.rel (0) target = $region672
        $region671: #{tpu_custom_call.1} parent=11 // pred_region
          %1145 = vsyncadd %s449, 16
        $region672: #{tpu_custom_call.1} parent=11 // pred_fallthru
          _
        %s1146 = sadd.s32 %s445, 22
        %s1147 = sld [smem:[#allocation6 + %s1146]]
        %s1148 = scalar_lea.vmem %s1, %s1147
        %s1149 = scalar_lea.vmem [#allocation3], 14
        %p1151 = scmp.lt.u32.totalorder 1, 8
        %p1152 = pneg %p1151
        // Predicated region
        $region673: #{tpu_custom_call.1} parent=11 // pred_check
          _
        $region674: #{tpu_custom_call.1} parent=11 // pred_check_branch
          %1154 = sbr.rel (%p1151) target = $region676
        $region675: #{tpu_custom_call.1} parent=11 // pred_region
          %s1170 = sand.u32 1, 7
          %p1171 = scmp.eq.s32.totalorder %s1170, 0
          %p1172 = pneg %p1171
          // Predicated region
          $region688: #{tpu_custom_call.1} parent=675 // pred_check
            _
          $region689: #{tpu_custom_call.1} parent=675 // pred_check_branch
            %1174 = sbr.rel (%p1171) target = $region691
          $region690: #{tpu_custom_call.1} parent=675 // pred_region
            %s1175 = sand.u32 1, 7
            %s1176 = ssub.s32 1, %s1175
            %s1177 = scalar_lea.vmem %s1148, %s1176
            %s1178 = ssub.s32 1, %s1175
            %s1179 = scalar_lea.vmem %s1149, %s1178 [#allocation3]
            %s1180 = sshll.u32 1, %s1175
            %s1181 = ssub.s32 %s1180, 1
            loop: start=0, step=1, limit=1
            $region692: #{tpu_custom_call.1} parent=690 // loop_pre_header
              _
            $region693: #{tpu_custom_call.1} parent=690 // loop_header
              %s1183 = sphi 0, %s1187
              %p1184 = scmp.ge.s32.totalorder %s1183, 1
              %s1188 = sphi %s1177, %s1177
              %s1189 = sphi %s1179, %s1179
            $region694: #{tpu_custom_call.1} parent=690 // loop_header_branch
              %1186 = sbr.rel (%p1184) target = $region698
            $region695: #{tpu_custom_call.1} parent=690 // loop_body
              %v1190 = vld [vmem:[%s1188] sm:%s1181]
              %1191 = vst [vmem:[%s1189] sm:%s1181] %v1190
            $region696: #{tpu_custom_call.1} parent=690 // loop_footer
              %s1187 = sadd.s32 1, %s1183
            $region697: #{tpu_custom_call.1} parent=690 // loop_footer_branch
              %1182 = sbr.rel target = $region693
            $region698: #{tpu_custom_call.1} parent=690 // loop_exit
              _
          $region691: #{tpu_custom_call.1} parent=675 // pred_fallthru
            _
        $region676: #{tpu_custom_call.1} parent=11 // pred_fallthru
          _
        // Predicated region
        $region677: #{tpu_custom_call.1} parent=11 // pred_check
          %p1155 = pneg %p1151
        $region678: #{tpu_custom_call.1} parent=11 // pred_check_branch
          %1157 = sbr.rel (%p1155) target = $region680
        $region679: #{tpu_custom_call.1} parent=11 // pred_region
          %s1158 = sshll.u32 1, 1
          %s1159 = ssub.s32 %s1158, 1
          loop: start=0, step=1, limit=1
          $region681: #{tpu_custom_call.1} parent=679 // loop_pre_header
            _
          $region682: #{tpu_custom_call.1} parent=679 // loop_header
            %s1161 = sphi 0, %s1165
            %p1162 = scmp.ge.s32.totalorder %s1161, 1
            %s1166 = sphi %s1148, %s1148
            %s1167 = sphi %s1149, %s1149
          $region683: #{tpu_custom_call.1} parent=679 // loop_header_branch
            %1164 = sbr.rel (%p1162) target = $region687
          $region684: #{tpu_custom_call.1} parent=679 // loop_body
            %v1168 = vld [vmem:[%s1166] sm:%s1159]
            %1169 = vst [vmem:[%s1167] sm:%s1159] %v1168
          $region685: #{tpu_custom_call.1} parent=679 // loop_footer
            %s1165 = sadd.s32 1, %s1161
          $region686: #{tpu_custom_call.1} parent=679 // loop_footer_branch
            %1160 = sbr.rel target = $region682
          $region687: #{tpu_custom_call.1} parent=679 // loop_exit
            _
        $region680: #{tpu_custom_call.1} parent=11 // pred_fallthru
          _
        // Predicated region
        $region699: #{tpu_custom_call.1} parent=11 // pred_check
          _
        $region700: #{tpu_custom_call.1} parent=11 // pred_check_branch
          %1194 = sbr.rel (0) target = $region702
        $region701: #{tpu_custom_call.1} parent=11 // pred_region
          %1195 = vsyncadd %s449, 16
        $region702: #{tpu_custom_call.1} parent=11 // pred_fallthru
          _
        %s1196 = sadd.s32 %s445, 23
        %s1197 = sld [smem:[#allocation6 + %s1196]]
        %s1198 = scalar_lea.vmem %s1, %s1197
        %s1199 = scalar_lea.vmem [#allocation3], 15
        %p1201 = scmp.lt.u32.totalorder 1, 8
        %p1202 = pneg %p1201
        // Predicated region
        $region703: #{tpu_custom_call.1} parent=11 // pred_check
          _
        $region704: #{tpu_custom_call.1} parent=11 // pred_check_branch
          %1204 = sbr.rel (%p1201) target = $region706
        $region705: #{tpu_custom_call.1} parent=11 // pred_region
          %s1220 = sand.u32 1, 7
          %p1221 = scmp.eq.s32.totalorder %s1220, 0
          %p1222 = pneg %p1221
          // Predicated region
          $region718: #{tpu_custom_call.1} parent=705 // pred_check
            _
          $region719: #{tpu_custom_call.1} parent=705 // pred_check_branch
            %1224 = sbr.rel (%p1221) target = $region721
          $region720: #{tpu_custom_call.1} parent=705 // pred_region
            %s1225 = sand.u32 1, 7
            %s1226 = ssub.s32 1, %s1225
            %s1227 = scalar_lea.vmem %s1198, %s1226
            %s1228 = ssub.s32 1, %s1225
            %s1229 = scalar_lea.vmem %s1199, %s1228 [#allocation3]
            %s1230 = sshll.u32 1, %s1225
            %s1231 = ssub.s32 %s1230, 1
            loop: start=0, step=1, limit=1
            $region722: #{tpu_custom_call.1} parent=720 // loop_pre_header
              _
            $region723: #{tpu_custom_call.1} parent=720 // loop_header
              %s1233 = sphi 0, %s1237
              %p1234 = scmp.ge.s32.totalorder %s1233, 1
              %s1238 = sphi %s1227, %s1227
              %s1239 = sphi %s1229, %s1229
            $region724: #{tpu_custom_call.1} parent=720 // loop_header_branch
              %1236 = sbr.rel (%p1234) target = $region728
            $region725: #{tpu_custom_call.1} parent=720 // loop_body
              %v1240 = vld [vmem:[%s1238] sm:%s1231]
              %1241 = vst [vmem:[%s1239] sm:%s1231] %v1240
            $region726: #{tpu_custom_call.1} parent=720 // loop_footer
              %s1237 = sadd.s32 1, %s1233
            $region727: #{tpu_custom_call.1} parent=720 // loop_footer_branch
              %1232 = sbr.rel target = $region723
            $region728: #{tpu_custom_call.1} parent=720 // loop_exit
              _
          $region721: #{tpu_custom_call.1} parent=705 // pred_fallthru
            _
        $region706: #{tpu_custom_call.1} parent=11 // pred_fallthru
          _
        // Predicated region
        $region707: #{tpu_custom_call.1} parent=11 // pred_check
          %p1205 = pneg %p1201
        $region708: #{tpu_custom_call.1} parent=11 // pred_check_branch
          %1207 = sbr.rel (%p1205) target = $region710
        $region709: #{tpu_custom_call.1} parent=11 // pred_region
          %s1208 = sshll.u32 1, 1
          %s1209 = ssub.s32 %s1208, 1
          loop: start=0, step=1, limit=1
          $region711: #{tpu_custom_call.1} parent=709 // loop_pre_header
            _
          $region712: #{tpu_custom_call.1} parent=709 // loop_header
            %s1211 = sphi 0, %s1215
            %p1212 = scmp.ge.s32.totalorder %s1211, 1
            %s1216 = sphi %s1198, %s1198
            %s1217 = sphi %s1199, %s1199
          $region713: #{tpu_custom_call.1} parent=709 // loop_header_branch
            %1214 = sbr.rel (%p1212) target = $region717
          $region714: #{tpu_custom_call.1} parent=709 // loop_body
            %v1218 = vld [vmem:[%s1216] sm:%s1209]
            %1219 = vst [vmem:[%s1217] sm:%s1209] %v1218
          $region715: #{tpu_custom_call.1} parent=709 // loop_footer
            %s1215 = sadd.s32 1, %s1211
          $region716: #{tpu_custom_call.1} parent=709 // loop_footer_branch
            %1210 = sbr.rel target = $region712
          $region717: #{tpu_custom_call.1} parent=709 // loop_exit
            _
        $region710: #{tpu_custom_call.1} parent=11 // pred_fallthru
          _
        // Predicated region
        $region729: #{tpu_custom_call.1} parent=11 // pred_check
          _
        $region730: #{tpu_custom_call.1} parent=11 // pred_check_branch
          %1244 = sbr.rel (0) target = $region732
        $region731: #{tpu_custom_call.1} parent=11 // pred_region
          %1245 = vsyncadd %s449, 16
        $region732: #{tpu_custom_call.1} parent=11 // pred_fallthru
          _
        %s1246 = sadd.s32 %s445, 24
        %s1247 = sld [smem:[#allocation6 + %s1246]]
        %s1248 = scalar_lea.vmem %s1, %s1247
        %s1249 = scalar_lea.vmem [#allocation3], 16
        %p1251 = scmp.lt.u32.totalorder 1, 8
        %p1252 = pneg %p1251
        // Predicated region
        $region733: #{tpu_custom_call.1} parent=11 // pred_check
          _
        $region734: #{tpu_custom_call.1} parent=11 // pred_check_branch
          %1254 = sbr.rel (%p1251) target = $region736
        $region735: #{tpu_custom_call.1} parent=11 // pred_region
          %s1270 = sand.u32 1, 7
          %p1271 = scmp.eq.s32.totalorder %s1270, 0
          %p1272 = pneg %p1271
          // Predicated region
          $region748: #{tpu_custom_call.1} parent=735 // pred_check
            _
          $region749: #{tpu_custom_call.1} parent=735 // pred_check_branch
            %1274 = sbr.rel (%p1271) target = $region751
          $region750: #{tpu_custom_call.1} parent=735 // pred_region
            %s1275 = sand.u32 1, 7
            %s1276 = ssub.s32 1, %s1275
            %s1277 = scalar_lea.vmem %s1248, %s1276
            %s1278 = ssub.s32 1, %s1275
            %s1279 = scalar_lea.vmem %s1249, %s1278 [#allocation3]
            %s1280 = sshll.u32 1, %s1275
            %s1281 = ssub.s32 %s1280, 1
            loop: start=0, step=1, limit=1
            $region752: #{tpu_custom_call.1} parent=750 // loop_pre_header
              _
            $region753: #{tpu_custom_call.1} parent=750 // loop_header
              %s1283 = sphi 0, %s1287
              %p1284 = scmp.ge.s32.totalorder %s1283, 1
              %s1288 = sphi %s1277, %s1277
              %s1289 = sphi %s1279, %s1279
            $region754: #{tpu_custom_call.1} parent=750 // loop_header_branch
              %1286 = sbr.rel (%p1284) target = $region758
            $region755: #{tpu_custom_call.1} parent=750 // loop_body
              %v1290 = vld [vmem:[%s1288] sm:%s1281]
              %1291 = vst [vmem:[%s1289] sm:%s1281] %v1290
            $region756: #{tpu_custom_call.1} parent=750 // loop_footer
              %s1287 = sadd.s32 1, %s1283
            $region757: #{tpu_custom_call.1} parent=750 // loop_footer_branch
              %1282 = sbr.rel target = $region753
            $region758: #{tpu_custom_call.1} parent=750 // loop_exit
              _
          $region751: #{tpu_custom_call.1} parent=735 // pred_fallthru
            _
        $region736: #{tpu_custom_call.1} parent=11 // pred_fallthru
          _
        // Predicated region
        $region737: #{tpu_custom_call.1} parent=11 // pred_check
          %p1255 = pneg %p1251
        $region738: #{tpu_custom_call.1} parent=11 // pred_check_branch
          %1257 = sbr.rel (%p1255) target = $region740
        $region739: #{tpu_custom_call.1} parent=11 // pred_region
          %s1258 = sshll.u32 1, 1
          %s1259 = ssub.s32 %s1258, 1
          loop: start=0, step=1, limit=1
          $region741: #{tpu_custom_call.1} parent=739 // loop_pre_header
            _
          $region742: #{tpu_custom_call.1} parent=739 // loop_header
            %s1261 = sphi 0, %s1265
            %p1262 = scmp.ge.s32.totalorder %s1261, 1
            %s1266 = sphi %s1248, %s1248
            %s1267 = sphi %s1249, %s1249
          $region743: #{tpu_custom_call.1} parent=739 // loop_header_branch
            %1264 = sbr.rel (%p1262) target = $region747
          $region744: #{tpu_custom_call.1} parent=739 // loop_body
            %v1268 = vld [vmem:[%s1266] sm:%s1259]
            %1269 = vst [vmem:[%s1267] sm:%s1259] %v1268
          $region745: #{tpu_custom_call.1} parent=739 // loop_footer
            %s1265 = sadd.s32 1, %s1261
          $region746: #{tpu_custom_call.1} parent=739 // loop_footer_branch
            %1260 = sbr.rel target = $region742
          $region747: #{tpu_custom_call.1} parent=739 // loop_exit
            _
        $region740: #{tpu_custom_call.1} parent=11 // pred_fallthru
          _
        // Predicated region
        $region759: #{tpu_custom_call.1} parent=11 // pred_check
          _
        $region760: #{tpu_custom_call.1} parent=11 // pred_check_branch
          %1294 = sbr.rel (0) target = $region762
        $region761: #{tpu_custom_call.1} parent=11 // pred_region
          %1295 = vsyncadd %s449, 16
        $region762: #{tpu_custom_call.1} parent=11 // pred_fallthru
          _
        %s1296 = sadd.s32 %s445, 25
        %s1297 = sld [smem:[#allocation6 + %s1296]]
        %s1298 = scalar_lea.vmem %s1, %s1297
        %s1299 = scalar_lea.vmem [#allocation3], 17
        %p1301 = scmp.lt.u32.totalorder 1, 8
        %p1302 = pneg %p1301
        // Predicated region
        $region763: #{tpu_custom_call.1} parent=11 // pred_check
          _
        $region764: #{tpu_custom_call.1} parent=11 // pred_check_branch
          %1304 = sbr.rel (%p1301) target = $region766
        $region765: #{tpu_custom_call.1} parent=11 // pred_region
          %s1320 = sand.u32 1, 7
          %p1321 = scmp.eq.s32.totalorder %s1320, 0
          %p1322 = pneg %p1321
          // Predicated region
          $region778: #{tpu_custom_call.1} parent=765 // pred_check
            _
          $region779: #{tpu_custom_call.1} parent=765 // pred_check_branch
            %1324 = sbr.rel (%p1321) target = $region781
          $region780: #{tpu_custom_call.1} parent=765 // pred_region
            %s1325 = sand.u32 1, 7
            %s1326 = ssub.s32 1, %s1325
            %s1327 = scalar_lea.vmem %s1298, %s1326
            %s1328 = ssub.s32 1, %s1325
            %s1329 = scalar_lea.vmem %s1299, %s1328 [#allocation3]
            %s1330 = sshll.u32 1, %s1325
            %s1331 = ssub.s32 %s1330, 1
            loop: start=0, step=1, limit=1
            $region782: #{tpu_custom_call.1} parent=780 // loop_pre_header
              _
            $region783: #{tpu_custom_call.1} parent=780 // loop_header
              %s1333 = sphi 0, %s1337
              %p1334 = scmp.ge.s32.totalorder %s1333, 1
              %s1338 = sphi %s1327, %s1327
              %s1339 = sphi %s1329, %s1329
            $region784: #{tpu_custom_call.1} parent=780 // loop_header_branch
              %1336 = sbr.rel (%p1334) target = $region788
            $region785: #{tpu_custom_call.1} parent=780 // loop_body
              %v1340 = vld [vmem:[%s1338] sm:%s1331]
              %1341 = vst [vmem:[%s1339] sm:%s1331] %v1340
            $region786: #{tpu_custom_call.1} parent=780 // loop_footer
              %s1337 = sadd.s32 1, %s1333
            $region787: #{tpu_custom_call.1} parent=780 // loop_footer_branch
              %1332 = sbr.rel target = $region783
            $region788: #{tpu_custom_call.1} parent=780 // loop_exit
              _
          $region781: #{tpu_custom_call.1} parent=765 // pred_fallthru
            _
        $region766: #{tpu_custom_call.1} parent=11 // pred_fallthru
          _
        // Predicated region
        $region767: #{tpu_custom_call.1} parent=11 // pred_check
          %p1305 = pneg %p1301
        $region768: #{tpu_custom_call.1} parent=11 // pred_check_branch
          %1307 = sbr.rel (%p1305) target = $region770
        $region769: #{tpu_custom_call.1} parent=11 // pred_region
          %s1308 = sshll.u32 1, 1
          %s1309 = ssub.s32 %s1308, 1
          loop: start=0, step=1, limit=1
          $region771: #{tpu_custom_call.1} parent=769 // loop_pre_header
            _
          $region772: #{tpu_custom_call.1} parent=769 // loop_header
            %s1311 = sphi 0, %s1315
            %p1312 = scmp.ge.s32.totalorder %s1311, 1
            %s1316 = sphi %s1298, %s1298
            %s1317 = sphi %s1299, %s1299
          $region773: #{tpu_custom_call.1} parent=769 // loop_header_branch
            %1314 = sbr.rel (%p1312) target = $region777
          $region774: #{tpu_custom_call.1} parent=769 // loop_body
            %v1318 = vld [vmem:[%s1316] sm:%s1309]
            %1319 = vst [vmem:[%s1317] sm:%s1309] %v1318
          $region775: #{tpu_custom_call.1} parent=769 // loop_footer
            %s1315 = sadd.s32 1, %s1311
          $region776: #{tpu_custom_call.1} parent=769 // loop_footer_branch
            %1310 = sbr.rel target = $region772
          $region777: #{tpu_custom_call.1} parent=769 // loop_exit
            _
        $region770: #{tpu_custom_call.1} parent=11 // pred_fallthru
          _
        // Predicated region
        $region789: #{tpu_custom_call.1} parent=11 // pred_check
          _
        $region790: #{tpu_custom_call.1} parent=11 // pred_check_branch
          %1344 = sbr.rel (0) target = $region792
        $region791: #{tpu_custom_call.1} parent=11 // pred_region
          %1345 = vsyncadd %s449, 16
        $region792: #{tpu_custom_call.1} parent=11 // pred_fallthru
          _
        %s1346 = sadd.s32 %s445, 26
        %s1347 = sld [smem:[#allocation6 + %s1346]]
        %s1348 = scalar_lea.vmem %s1, %s1347
        %s1349 = scalar_lea.vmem [#allocation3], 18
        %p1351 = scmp.lt.u32.totalorder 1, 8
        %p1352 = pneg %p1351
        // Predicated region
        $region793: #{tpu_custom_call.1} parent=11 // pred_check
          _
        $region794: #{tpu_custom_call.1} parent=11 // pred_check_branch
          %1354 = sbr.rel (%p1351) target = $region796
        $region795: #{tpu_custom_call.1} parent=11 // pred_region
          %s1370 = sand.u32 1, 7
          %p1371 = scmp.eq.s32.totalorder %s1370, 0
          %p1372 = pneg %p1371
          // Predicated region
          $region808: #{tpu_custom_call.1} parent=795 // pred_check
            _
          $region809: #{tpu_custom_call.1} parent=795 // pred_check_branch
            %1374 = sbr.rel (%p1371) target = $region811
          $region810: #{tpu_custom_call.1} parent=795 // pred_region
            %s1375 = sand.u32 1, 7
            %s1376 = ssub.s32 1, %s1375
            %s1377 = scalar_lea.vmem %s1348, %s1376
            %s1378 = ssub.s32 1, %s1375
            %s1379 = scalar_lea.vmem %s1349, %s1378 [#allocation3]
            %s1380 = sshll.u32 1, %s1375
            %s1381 = ssub.s32 %s1380, 1
            loop: start=0, step=1, limit=1
            $region812: #{tpu_custom_call.1} parent=810 // loop_pre_header
              _
            $region813: #{tpu_custom_call.1} parent=810 // loop_header
              %s1383 = sphi 0, %s1387
              %p1384 = scmp.ge.s32.totalorder %s1383, 1
              %s1388 = sphi %s1377, %s1377
              %s1389 = sphi %s1379, %s1379
            $region814: #{tpu_custom_call.1} parent=810 // loop_header_branch
              %1386 = sbr.rel (%p1384) target = $region818
            $region815: #{tpu_custom_call.1} parent=810 // loop_body
              %v1390 = vld [vmem:[%s1388] sm:%s1381]
              %1391 = vst [vmem:[%s1389] sm:%s1381] %v1390
            $region816: #{tpu_custom_call.1} parent=810 // loop_footer
              %s1387 = sadd.s32 1, %s1383
            $region817: #{tpu_custom_call.1} parent=810 // loop_footer_branch
              %1382 = sbr.rel target = $region813
            $region818: #{tpu_custom_call.1} parent=810 // loop_exit
              _
          $region811: #{tpu_custom_call.1} parent=795 // pred_fallthru
            _
        $region796: #{tpu_custom_call.1} parent=11 // pred_fallthru
          _
        // Predicated region
        $region797: #{tpu_custom_call.1} parent=11 // pred_check
          %p1355 = pneg %p1351
        $region798: #{tpu_custom_call.1} parent=11 // pred_check_branch
          %1357 = sbr.rel (%p1355) target = $region800
        $region799: #{tpu_custom_call.1} parent=11 // pred_region
          %s1358 = sshll.u32 1, 1
          %s1359 = ssub.s32 %s1358, 1
          loop: start=0, step=1, limit=1
          $region801: #{tpu_custom_call.1} parent=799 // loop_pre_header
            _
          $region802: #{tpu_custom_call.1} parent=799 // loop_header
            %s1361 = sphi 0, %s1365
            %p1362 = scmp.ge.s32.totalorder %s1361, 1
            %s1366 = sphi %s1348, %s1348
            %s1367 = sphi %s1349, %s1349
          $region803: #{tpu_custom_call.1} parent=799 // loop_header_branch
            %1364 = sbr.rel (%p1362) target = $region807
          $region804: #{tpu_custom_call.1} parent=799 // loop_body
            %v1368 = vld [vmem:[%s1366] sm:%s1359]
            %1369 = vst [vmem:[%s1367] sm:%s1359] %v1368
          $region805: #{tpu_custom_call.1} parent=799 // loop_footer
            %s1365 = sadd.s32 1, %s1361
          $region806: #{tpu_custom_call.1} parent=799 // loop_footer_branch
            %1360 = sbr.rel target = $region802
          $region807: #{tpu_custom_call.1} parent=799 // loop_exit
            _
        $region800: #{tpu_custom_call.1} parent=11 // pred_fallthru
          _
        // Predicated region
        $region819: #{tpu_custom_call.1} parent=11 // pred_check
          _
        $region820: #{tpu_custom_call.1} parent=11 // pred_check_branch
          %1394 = sbr.rel (0) target = $region822
        $region821: #{tpu_custom_call.1} parent=11 // pred_region
          %1395 = vsyncadd %s449, 16
        $region822: #{tpu_custom_call.1} parent=11 // pred_fallthru
          _
        %s1396 = sadd.s32 %s445, 27
        %s1397 = sld [smem:[#allocation6 + %s1396]]
        %s1398 = scalar_lea.vmem %s1, %s1397
        %s1399 = scalar_lea.vmem [#allocation3], 19
        %p1401 = scmp.lt.u32.totalorder 1, 8
        %p1402 = pneg %p1401
        // Predicated region
        $region823: #{tpu_custom_call.1} parent=11 // pred_check
          _
        $region824: #{tpu_custom_call.1} parent=11 // pred_check_branch
          %1404 = sbr.rel (%p1401) target = $region826
        $region825: #{tpu_custom_call.1} parent=11 // pred_region
          %s1420 = sand.u32 1, 7
          %p1421 = scmp.eq.s32.totalorder %s1420, 0
          %p1422 = pneg %p1421
          // Predicated region
          $region838: #{tpu_custom_call.1} parent=825 // pred_check
            _
          $region839: #{tpu_custom_call.1} parent=825 // pred_check_branch
            %1424 = sbr.rel (%p1421) target = $region841
          $region840: #{tpu_custom_call.1} parent=825 // pred_region
            %s1425 = sand.u32 1, 7
            %s1426 = ssub.s32 1, %s1425
            %s1427 = scalar_lea.vmem %s1398, %s1426
            %s1428 = ssub.s32 1, %s1425
            %s1429 = scalar_lea.vmem %s1399, %s1428 [#allocation3]
            %s1430 = sshll.u32 1, %s1425
            %s1431 = ssub.s32 %s1430, 1
            loop: start=0, step=1, limit=1
            $region842: #{tpu_custom_call.1} parent=840 // loop_pre_header
              _
            $region843: #{tpu_custom_call.1} parent=840 // loop_header
              %s1433 = sphi 0, %s1437
              %p1434 = scmp.ge.s32.totalorder %s1433, 1
              %s1438 = sphi %s1427, %s1427
              %s1439 = sphi %s1429, %s1429
            $region844: #{tpu_custom_call.1} parent=840 // loop_header_branch
              %1436 = sbr.rel (%p1434) target = $region848
            $region845: #{tpu_custom_call.1} parent=840 // loop_body
              %v1440 = vld [vmem:[%s1438] sm:%s1431]
              %1441 = vst [vmem:[%s1439] sm:%s1431] %v1440
            $region846: #{tpu_custom_call.1} parent=840 // loop_footer
              %s1437 = sadd.s32 1, %s1433
            $region847: #{tpu_custom_call.1} parent=840 // loop_footer_branch
              %1432 = sbr.rel target = $region843
            $region848: #{tpu_custom_call.1} parent=840 // loop_exit
              _
          $region841: #{tpu_custom_call.1} parent=825 // pred_fallthru
            _
        $region826: #{tpu_custom_call.1} parent=11 // pred_fallthru
          _
        // Predicated region
        $region827: #{tpu_custom_call.1} parent=11 // pred_check
          %p1405 = pneg %p1401
        $region828: #{tpu_custom_call.1} parent=11 // pred_check_branch
          %1407 = sbr.rel (%p1405) target = $region830
        $region829: #{tpu_custom_call.1} parent=11 // pred_region
          %s1408 = sshll.u32 1, 1
          %s1409 = ssub.s32 %s1408, 1
          loop: start=0, step=1, limit=1
          $region831: #{tpu_custom_call.1} parent=829 // loop_pre_header
            _
          $region832: #{tpu_custom_call.1} parent=829 // loop_header
            %s1411 = sphi 0, %s1415
            %p1412 = scmp.ge.s32.totalorder %s1411, 1
            %s1416 = sphi %s1398, %s1398
            %s1417 = sphi %s1399, %s1399
          $region833: #{tpu_custom_call.1} parent=829 // loop_header_branch
            %1414 = sbr.rel (%p1412) target = $region837
          $region834: #{tpu_custom_call.1} parent=829 // loop_body
            %v1418 = vld [vmem:[%s1416] sm:%s1409]
            %1419 = vst [vmem:[%s1417] sm:%s1409] %v1418
          $region835: #{tpu_custom_call.1} parent=829 // loop_footer
            %s1415 = sadd.s32 1, %s1411
          $region836: #{tpu_custom_call.1} parent=829 // loop_footer_branch
            %1410 = sbr.rel target = $region832
          $region837: #{tpu_custom_call.1} parent=829 // loop_exit
            _
        $region830: #{tpu_custom_call.1} parent=11 // pred_fallthru
          _
        // Predicated region
        $region849: #{tpu_custom_call.1} parent=11 // pred_check
          _
        $region850: #{tpu_custom_call.1} parent=11 // pred_check_branch
          %1444 = sbr.rel (0) target = $region852
        $region851: #{tpu_custom_call.1} parent=11 // pred_region
          %1445 = vsyncadd %s449, 16
        $region852: #{tpu_custom_call.1} parent=11 // pred_fallthru
          _
        %s1446 = sadd.s32 %s445, 28
        %s1447 = sld [smem:[#allocation6 + %s1446]]
        %s1448 = scalar_lea.vmem %s1, %s1447
        %s1449 = scalar_lea.vmem [#allocation3], 20
        %p1451 = scmp.lt.u32.totalorder 1, 8
        %p1452 = pneg %p1451
        // Predicated region
        $region853: #{tpu_custom_call.1} parent=11 // pred_check
          _
        $region854: #{tpu_custom_call.1} parent=11 // pred_check_branch
          %1454 = sbr.rel (%p1451) target = $region856
        $region855: #{tpu_custom_call.1} parent=11 // pred_region
          %s1470 = sand.u32 1, 7
          %p1471 = scmp.eq.s32.totalorder %s1470, 0
          %p1472 = pneg %p1471
          // Predicated region
          $region868: #{tpu_custom_call.1} parent=855 // pred_check
            _
          $region869: #{tpu_custom_call.1} parent=855 // pred_check_branch
            %1474 = sbr.rel (%p1471) target = $region871
          $region870: #{tpu_custom_call.1} parent=855 // pred_region
            %s1475 = sand.u32 1, 7
            %s1476 = ssub.s32 1, %s1475
            %s1477 = scalar_lea.vmem %s1448, %s1476
            %s1478 = ssub.s32 1, %s1475
            %s1479 = scalar_lea.vmem %s1449, %s1478 [#allocation3]
            %s1480 = sshll.u32 1, %s1475
            %s1481 = ssub.s32 %s1480, 1
            loop: start=0, step=1, limit=1
            $region872: #{tpu_custom_call.1} parent=870 // loop_pre_header
              _
            $region873: #{tpu_custom_call.1} parent=870 // loop_header
              %s1483 = sphi 0, %s1487
              %p1484 = scmp.ge.s32.totalorder %s1483, 1
              %s1488 = sphi %s1477, %s1477
              %s1489 = sphi %s1479, %s1479
            $region874: #{tpu_custom_call.1} parent=870 // loop_header_branch
              %1486 = sbr.rel (%p1484) target = $region878
            $region875: #{tpu_custom_call.1} parent=870 // loop_body
              %v1490 = vld [vmem:[%s1488] sm:%s1481]
              %1491 = vst [vmem:[%s1489] sm:%s1481] %v1490
            $region876: #{tpu_custom_call.1} parent=870 // loop_footer
              %s1487 = sadd.s32 1, %s1483
            $region877: #{tpu_custom_call.1} parent=870 // loop_footer_branch
              %1482 = sbr.rel target = $region873
            $region878: #{tpu_custom_call.1} parent=870 // loop_exit
              _
          $region871: #{tpu_custom_call.1} parent=855 // pred_fallthru
            _
        $region856: #{tpu_custom_call.1} parent=11 // pred_fallthru
          _
        // Predicated region
        $region857: #{tpu_custom_call.1} parent=11 // pred_check
          %p1455 = pneg %p1451
        $region858: #{tpu_custom_call.1} parent=11 // pred_check_branch
          %1457 = sbr.rel (%p1455) target = $region860
        $region859: #{tpu_custom_call.1} parent=11 // pred_region
          %s1458 = sshll.u32 1, 1
          %s1459 = ssub.s32 %s1458, 1
          loop: start=0, step=1, limit=1
          $region861: #{tpu_custom_call.1} parent=859 // loop_pre_header
            _
          $region862: #{tpu_custom_call.1} parent=859 // loop_header
            %s1461 = sphi 0, %s1465
            %p1462 = scmp.ge.s32.totalorder %s1461, 1
            %s1466 = sphi %s1448, %s1448
            %s1467 = sphi %s1449, %s1449
          $region863: #{tpu_custom_call.1} parent=859 // loop_header_branch
            %1464 = sbr.rel (%p1462) target = $region867
          $region864: #{tpu_custom_call.1} parent=859 // loop_body
            %v1468 = vld [vmem:[%s1466] sm:%s1459]
            %1469 = vst [vmem:[%s1467] sm:%s1459] %v1468
          $region865: #{tpu_custom_call.1} parent=859 // loop_footer
            %s1465 = sadd.s32 1, %s1461
          $region866: #{tpu_custom_call.1} parent=859 // loop_footer_branch
            %1460 = sbr.rel target = $region862
          $region867: #{tpu_custom_call.1} parent=859 // loop_exit
            _
        $region860: #{tpu_custom_call.1} parent=11 // pred_fallthru
          _
        // Predicated region
        $region879: #{tpu_custom_call.1} parent=11 // pred_check
          _
        $region880: #{tpu_custom_call.1} parent=11 // pred_check_branch
          %1494 = sbr.rel (0) target = $region882
        $region881: #{tpu_custom_call.1} parent=11 // pred_region
          %1495 = vsyncadd %s449, 16
        $region882: #{tpu_custom_call.1} parent=11 // pred_fallthru
          _
        %s1496 = sadd.s32 %s445, 29
        %s1497 = sld [smem:[#allocation6 + %s1496]]
        %s1498 = scalar_lea.vmem %s1, %s1497
        %s1499 = scalar_lea.vmem [#allocation3], 21
        %p1501 = scmp.lt.u32.totalorder 1, 8
        %p1502 = pneg %p1501
        // Predicated region
        $region883: #{tpu_custom_call.1} parent=11 // pred_check
          _
        $region884: #{tpu_custom_call.1} parent=11 // pred_check_branch
          %1504 = sbr.rel (%p1501) target = $region886
        $region885: #{tpu_custom_call.1} parent=11 // pred_region
          %s1520 = sand.u32 1, 7
          %p1521 = scmp.eq.s32.totalorder %s1520, 0
          %p1522 = pneg %p1521
          // Predicated region
          $region898: #{tpu_custom_call.1} parent=885 // pred_check
            _
          $region899: #{tpu_custom_call.1} parent=885 // pred_check_branch
            %1524 = sbr.rel (%p1521) target = $region901
          $region900: #{tpu_custom_call.1} parent=885 // pred_region
            %s1525 = sand.u32 1, 7
            %s1526 = ssub.s32 1, %s1525
            %s1527 = scalar_lea.vmem %s1498, %s1526
            %s1528 = ssub.s32 1, %s1525
            %s1529 = scalar_lea.vmem %s1499, %s1528 [#allocation3]
            %s1530 = sshll.u32 1, %s1525
            %s1531 = ssub.s32 %s1530, 1
            loop: start=0, step=1, limit=1
            $region902: #{tpu_custom_call.1} parent=900 // loop_pre_header
              _
            $region903: #{tpu_custom_call.1} parent=900 // loop_header
              %s1533 = sphi 0, %s1537
              %p1534 = scmp.ge.s32.totalorder %s1533, 1
              %s1538 = sphi %s1527, %s1527
              %s1539 = sphi %s1529, %s1529
            $region904: #{tpu_custom_call.1} parent=900 // loop_header_branch
              %1536 = sbr.rel (%p1534) target = $region908
            $region905: #{tpu_custom_call.1} parent=900 // loop_body
              %v1540 = vld [vmem:[%s1538] sm:%s1531]
              %1541 = vst [vmem:[%s1539] sm:%s1531] %v1540
            $region906: #{tpu_custom_call.1} parent=900 // loop_footer
              %s1537 = sadd.s32 1, %s1533
            $region907: #{tpu_custom_call.1} parent=900 // loop_footer_branch
              %1532 = sbr.rel target = $region903
            $region908: #{tpu_custom_call.1} parent=900 // loop_exit
              _
          $region901: #{tpu_custom_call.1} parent=885 // pred_fallthru
            _
        $region886: #{tpu_custom_call.1} parent=11 // pred_fallthru
          _
        // Predicated region
        $region887: #{tpu_custom_call.1} parent=11 // pred_check
          %p1505 = pneg %p1501
        $region888: #{tpu_custom_call.1} parent=11 // pred_check_branch
          %1507 = sbr.rel (%p1505) target = $region890
        $region889: #{tpu_custom_call.1} parent=11 // pred_region
          %s1508 = sshll.u32 1, 1
          %s1509 = ssub.s32 %s1508, 1
          loop: start=0, step=1, limit=1
          $region891: #{tpu_custom_call.1} parent=889 // loop_pre_header
            _
          $region892: #{tpu_custom_call.1} parent=889 // loop_header
            %s1511 = sphi 0, %s1515
            %p1512 = scmp.ge.s32.totalorder %s1511, 1
            %s1516 = sphi %s1498, %s1498
            %s1517 = sphi %s1499, %s1499
          $region893: #{tpu_custom_call.1} parent=889 // loop_header_branch
            %1514 = sbr.rel (%p1512) target = $region897
          $region894: #{tpu_custom_call.1} parent=889 // loop_body
            %v1518 = vld [vmem:[%s1516] sm:%s1509]
            %1519 = vst [vmem:[%s1517] sm:%s1509] %v1518
          $region895: #{tpu_custom_call.1} parent=889 // loop_footer
            %s1515 = sadd.s32 1, %s1511
          $region896: #{tpu_custom_call.1} parent=889 // loop_footer_branch
            %1510 = sbr.rel target = $region892
          $region897: #{tpu_custom_call.1} parent=889 // loop_exit
            _
        $region890: #{tpu_custom_call.1} parent=11 // pred_fallthru
          _
        // Predicated region
        $region909: #{tpu_custom_call.1} parent=11 // pred_check
          _
        $region910: #{tpu_custom_call.1} parent=11 // pred_check_branch
          %1544 = sbr.rel (0) target = $region912
        $region911: #{tpu_custom_call.1} parent=11 // pred_region
          %1545 = vsyncadd %s449, 16
        $region912: #{tpu_custom_call.1} parent=11 // pred_fallthru
          _
        %s1546 = sadd.s32 %s445, 30
        %s1547 = sld [smem:[#allocation6 + %s1546]]
        %s1548 = scalar_lea.vmem %s1, %s1547
        %s1549 = scalar_lea.vmem [#allocation3], 22
        %p1551 = scmp.lt.u32.totalorder 1, 8
        %p1552 = pneg %p1551
        // Predicated region
        $region913: #{tpu_custom_call.1} parent=11 // pred_check
          _
        $region914: #{tpu_custom_call.1} parent=11 // pred_check_branch
          %1554 = sbr.rel (%p1551) target = $region916
        $region915: #{tpu_custom_call.1} parent=11 // pred_region
          %s1570 = sand.u32 1, 7
          %p1571 = scmp.eq.s32.totalorder %s1570, 0
          %p1572 = pneg %p1571
          // Predicated region
          $region928: #{tpu_custom_call.1} parent=915 // pred_check
            _
          $region929: #{tpu_custom_call.1} parent=915 // pred_check_branch
            %1574 = sbr.rel (%p1571) target = $region931
          $region930: #{tpu_custom_call.1} parent=915 // pred_region
            %s1575 = sand.u32 1, 7
            %s1576 = ssub.s32 1, %s1575
            %s1577 = scalar_lea.vmem %s1548, %s1576
            %s1578 = ssub.s32 1, %s1575
            %s1579 = scalar_lea.vmem %s1549, %s1578 [#allocation3]
            %s1580 = sshll.u32 1, %s1575
            %s1581 = ssub.s32 %s1580, 1
            loop: start=0, step=1, limit=1
            $region932: #{tpu_custom_call.1} parent=930 // loop_pre_header
              _
            $region933: #{tpu_custom_call.1} parent=930 // loop_header
              %s1583 = sphi 0, %s1587
              %p1584 = scmp.ge.s32.totalorder %s1583, 1
              %s1588 = sphi %s1577, %s1577
              %s1589 = sphi %s1579, %s1579
            $region934: #{tpu_custom_call.1} parent=930 // loop_header_branch
              %1586 = sbr.rel (%p1584) target = $region938
            $region935: #{tpu_custom_call.1} parent=930 // loop_body
              %v1590 = vld [vmem:[%s1588] sm:%s1581]
              %1591 = vst [vmem:[%s1589] sm:%s1581] %v1590
            $region936: #{tpu_custom_call.1} parent=930 // loop_footer
              %s1587 = sadd.s32 1, %s1583
            $region937: #{tpu_custom_call.1} parent=930 // loop_footer_branch
              %1582 = sbr.rel target = $region933
            $region938: #{tpu_custom_call.1} parent=930 // loop_exit
              _
          $region931: #{tpu_custom_call.1} parent=915 // pred_fallthru
            _
        $region916: #{tpu_custom_call.1} parent=11 // pred_fallthru
          _
        // Predicated region
        $region917: #{tpu_custom_call.1} parent=11 // pred_check
          %p1555 = pneg %p1551
        $region918: #{tpu_custom_call.1} parent=11 // pred_check_branch
          %1557 = sbr.rel (%p1555) target = $region920
        $region919: #{tpu_custom_call.1} parent=11 // pred_region
          %s1558 = sshll.u32 1, 1
          %s1559 = ssub.s32 %s1558, 1
          loop: start=0, step=1, limit=1
          $region921: #{tpu_custom_call.1} parent=919 // loop_pre_header
            _
          $region922: #{tpu_custom_call.1} parent=919 // loop_header
            %s1561 = sphi 0, %s1565
            %p1562 = scmp.ge.s32.totalorder %s1561, 1
            %s1566 = sphi %s1548, %s1548
            %s1567 = sphi %s1549, %s1549
          $region923: #{tpu_custom_call.1} parent=919 // loop_header_branch
            %1564 = sbr.rel (%p1562) target = $region927
          $region924: #{tpu_custom_call.1} parent=919 // loop_body
            %v1568 = vld [vmem:[%s1566] sm:%s1559]
            %1569 = vst [vmem:[%s1567] sm:%s1559] %v1568
          $region925: #{tpu_custom_call.1} parent=919 // loop_footer
            %s1565 = sadd.s32 1, %s1561
          $region926: #{tpu_custom_call.1} parent=919 // loop_footer_branch
            %1560 = sbr.rel target = $region922
          $region927: #{tpu_custom_call.1} parent=919 // loop_exit
            _
        $region920: #{tpu_custom_call.1} parent=11 // pred_fallthru
          _
        // Predicated region
        $region939: #{tpu_custom_call.1} parent=11 // pred_check
          _
        $region940: #{tpu_custom_call.1} parent=11 // pred_check_branch
          %1594 = sbr.rel (0) target = $region942
        $region941: #{tpu_custom_call.1} parent=11 // pred_region
          %1595 = vsyncadd %s449, 16
        $region942: #{tpu_custom_call.1} parent=11 // pred_fallthru
          _
        %s1596 = sadd.s32 %s445, 31
        %s1597 = sld [smem:[#allocation6 + %s1596]]
        %s1598 = scalar_lea.vmem %s1, %s1597
        %s1599 = scalar_lea.vmem [#allocation3], 23
        %p1601 = scmp.lt.u32.totalorder 1, 8
        %p1602 = pneg %p1601
        // Predicated region
        $region943: #{tpu_custom_call.1} parent=11 // pred_check
          _
        $region944: #{tpu_custom_call.1} parent=11 // pred_check_branch
          %1604 = sbr.rel (%p1601) target = $region946
        $region945: #{tpu_custom_call.1} parent=11 // pred_region
          %s1620 = sand.u32 1, 7
          %p1621 = scmp.eq.s32.totalorder %s1620, 0
          %p1622 = pneg %p1621
          // Predicated region
          $region958: #{tpu_custom_call.1} parent=945 // pred_check
            _
          $region959: #{tpu_custom_call.1} parent=945 // pred_check_branch
            %1624 = sbr.rel (%p1621) target = $region961
          $region960: #{tpu_custom_call.1} parent=945 // pred_region
            %s1625 = sand.u32 1, 7
            %s1626 = ssub.s32 1, %s1625
            %s1627 = scalar_lea.vmem %s1598, %s1626
            %s1628 = ssub.s32 1, %s1625
            %s1629 = scalar_lea.vmem %s1599, %s1628 [#allocation3]
            %s1630 = sshll.u32 1, %s1625
            %s1631 = ssub.s32 %s1630, 1
            loop: start=0, step=1, limit=1
            $region962: #{tpu_custom_call.1} parent=960 // loop_pre_header
              _
            $region963: #{tpu_custom_call.1} parent=960 // loop_header
              %s1633 = sphi 0, %s1637
              %p1634 = scmp.ge.s32.totalorder %s1633, 1
              %s1638 = sphi %s1627, %s1627
              %s1639 = sphi %s1629, %s1629
            $region964: #{tpu_custom_call.1} parent=960 // loop_header_branch
              %1636 = sbr.rel (%p1634) target = $region968
            $region965: #{tpu_custom_call.1} parent=960 // loop_body
              %v1640 = vld [vmem:[%s1638] sm:%s1631]
              %1641 = vst [vmem:[%s1639] sm:%s1631] %v1640
            $region966: #{tpu_custom_call.1} parent=960 // loop_footer
              %s1637 = sadd.s32 1, %s1633
            $region967: #{tpu_custom_call.1} parent=960 // loop_footer_branch
              %1632 = sbr.rel target = $region963
            $region968: #{tpu_custom_call.1} parent=960 // loop_exit
              _
          $region961: #{tpu_custom_call.1} parent=945 // pred_fallthru
            _
        $region946: #{tpu_custom_call.1} parent=11 // pred_fallthru
          _
        // Predicated region
        $region947: #{tpu_custom_call.1} parent=11 // pred_check
          %p1605 = pneg %p1601
        $region948: #{tpu_custom_call.1} parent=11 // pred_check_branch
          %1607 = sbr.rel (%p1605) target = $region950
        $region949: #{tpu_custom_call.1} parent=11 // pred_region
          %s1608 = sshll.u32 1, 1
          %s1609 = ssub.s32 %s1608, 1
          loop: start=0, step=1, limit=1
          $region951: #{tpu_custom_call.1} parent=949 // loop_pre_header
            _
          $region952: #{tpu_custom_call.1} parent=949 // loop_header
            %s1611 = sphi 0, %s1615
            %p1612 = scmp.ge.s32.totalorder %s1611, 1
            %s1616 = sphi %s1598, %s1598
            %s1617 = sphi %s1599, %s1599
          $region953: #{tpu_custom_call.1} parent=949 // loop_header_branch
            %1614 = sbr.rel (%p1612) target = $region957
          $region954: #{tpu_custom_call.1} parent=949 // loop_body
            %v1618 = vld [vmem:[%s1616] sm:%s1609]
            %1619 = vst [vmem:[%s1617] sm:%s1609] %v1618
          $region955: #{tpu_custom_call.1} parent=949 // loop_footer
            %s1615 = sadd.s32 1, %s1611
          $region956: #{tpu_custom_call.1} parent=949 // loop_footer_branch
            %1610 = sbr.rel target = $region952
          $region957: #{tpu_custom_call.1} parent=949 // loop_exit
            _
        $region950: #{tpu_custom_call.1} parent=11 // pred_fallthru
          _
        // Predicated region
        $region969: #{tpu_custom_call.1} parent=11 // pred_check
          _
        $region970: #{tpu_custom_call.1} parent=11 // pred_check_branch
          %1644 = sbr.rel (0) target = $region972
        $region971: #{tpu_custom_call.1} parent=11 // pred_region
          %1645 = vsyncadd %s449, 16
        $region972: #{tpu_custom_call.1} parent=11 // pred_fallthru
          _
        %s1646 = smul.u32 1, 1
        %s1647 = sshll.u32 %s1646, 4
        %1648 = dma.done [#allocation4], %s1647
        %s1649 = sshll.u32 %s1646, 4
        %1650 = dma.done [#allocation4], %s1649
        %s1651 = sshll.u32 %s1646, 4
        %1652 = dma.done [#allocation4], %s1651
        %s1653 = sshll.u32 %s1646, 4
        %1654 = dma.done [#allocation4], %s1653
        %s1655 = sshll.u32 %s1646, 4
        %1656 = dma.done [#allocation4], %s1655
        %s1657 = sshll.u32 %s1646, 4
        %1658 = dma.done [#allocation4], %s1657
        %s1659 = sshll.u32 %s1646, 4
        %1660 = dma.done [#allocation4], %s1659
        %s1661 = sshll.u32 %s1646, 4
        %1662 = dma.done [#allocation4], %s1661
        %s1663 = sshll.u32 %s1646, 4
        %1664 = dma.done %s449, %s1663
        %s1665 = sshll.u32 %s1646, 4
        %1666 = dma.done %s449, %s1665
        %s1667 = sshll.u32 %s1646, 4
        %1668 = dma.done %s449, %s1667
        %s1669 = sshll.u32 %s1646, 4
        %1670 = dma.done %s449, %s1669
        %s1671 = sshll.u32 %s1646, 4
        %1672 = dma.done %s449, %s1671
        %s1673 = sshll.u32 %s1646, 4
        %1674 = dma.done %s449, %s1673
        %s1675 = sshll.u32 %s1646, 4
        %1676 = dma.done %s449, %s1675
        %s1677 = sshll.u32 %s1646, 4
        %1678 = dma.done %s449, %s1677
        %s1679 = sshll.u32 %s1646, 4
        %1680 = dma.done %s449, %s1679
        %s1681 = sshll.u32 %s1646, 4
        %1682 = dma.done %s449, %s1681
        %s1683 = sshll.u32 %s1646, 4
        %1684 = dma.done %s449, %s1683
        %s1685 = sshll.u32 %s1646, 4
        %1686 = dma.done %s449, %s1685
        %s1687 = sshll.u32 %s1646, 4
        %1688 = dma.done %s449, %s1687
        %s1689 = sshll.u32 %s1646, 4
        %1690 = dma.done %s449, %s1689
        %s1691 = sshll.u32 %s1646, 4
        %1692 = dma.done %s449, %s1691
        %s1693 = sshll.u32 %s1646, 4
        %1694 = dma.done %s449, %s1693
        %s1695 = sshll.u32 %s1646, 4
        %1696 = dma.done %s449, %s1695
        %s1697 = sshll.u32 %s1646, 4
        %1698 = dma.done %s449, %s1697
        %s1699 = sshll.u32 %s1646, 4
        %1700 = dma.done %s449, %s1699
        %s1701 = sshll.u32 %s1646, 4
        %1702 = dma.done %s449, %s1701
        %s1703 = sshll.u32 %s1646, 4
        %1704 = dma.done %s449, %s1703
        %s1705 = sshll.u32 %s1646, 4
        %1706 = dma.done %s449, %s1705
        %s1707 = sshll.u32 %s1646, 4
        %1708 = dma.done %s449, %s1707
        %s1709 = sshll.u32 %s1646, 4
        %1710 = dma.done %s449, %s1709
        %v1711 = vld [vmem:[#allocation2] sm:$0xff]
        %v1712 = vld [vmem:[#allocation3] sm:$0xff]
        %v1713 = vld [vmem:[#allocation3 + $0x8] sm:$0xff]
        %v1714 = vld [vmem:[#allocation3 + $0x10] sm:$0xff]
        %vm1715 = vcmask 261120
        %v1717 = vsel %vm1715, %v1711, 0
        %v1720 = vsel %vm1715, %v1712, 0
        %v1723 = vsel %vm1715, %v1713, 0
        %v1726 = vsel %vm1715, %v1714, 0
        %1728 = vmatprep.subr.mxu0 0.0
        %1729 = vmatpush1.xpose.msra.mxu0 0.0
        %1730 = vmatprep.subr.mxu0 0.0
        %1731 = vmatpush1.xpose.msra.mxu0 0.0
        %1732 = vmatprep.subr.mxu0 0.0
        %1733 = vmatpush1.xpose.msra.mxu0 0.0
        %1734 = vmatprep.subr.mxu0 0.0
        %1735 = vmatpush1.xpose.msra.mxu0 0.0
        %1736 = vmatprep.subr.mxu0 0.0
        %1737 = vmatpush1.xpose.msra.mxu0 0.0
        %1738 = vmatprep.subr.mxu0 0.0
        %1739 = vmatpush1.xpose.msra.mxu0 0.0
        %1740 = vmatprep.subr.mxu0 0.0
        %1741 = vmatpush1.xpose.msra.mxu0 0.0
        %1742 = vmatprep.subr.mxu0 0.0
        %1743 = vmatpush1.xpose.msra.mxu0 0.0
        %1744 = vmatprep.subr.mxu0 0.0
        %1745 = vmatpush1.xpose.msra.mxu0 0.0
        %1746 = vmatprep.subr.mxu0 0.0
        %1747 = vmatpush1.xpose.msra.mxu0 0.0
        %1748 = vmatprep.subr.mxu0 0.0
        %1749 = vmatpush1.xpose.msra.mxu0 0.0
        %1750 = vmatprep.subr.mxu0 0.0
        %1751 = vmatpush1.xpose.msra.mxu0 0.0
        %1752 = vmatprep.subr.mxu0 0.0
        %1753 = vmatpush1.xpose.msra.mxu0 0.0
        %1754 = vmatprep.subr.mxu0 0.0
        %1755 = vmatpush1.xpose.msra.mxu0 %v1726
        %1756 = vmatprep.subr.mxu0 0.0
        %1757 = vmatpush1.xpose.msra.mxu0 %v1723
        %1758 = vmatprep.subr.mxu0 0.0
        %1759 = vmatpush1.xpose.msra.mxu0 %v1720
        %1760 = vmatprep.subr.mxu0 0.0
        %1761 = vmatpush2.xpose.msra.mxu0 0.0
        %1762 = vmatprep.subr.mxu0 0.0
        %1763 = vmatpush2.xpose.msra.mxu0 0.0
        %1764 = vmatprep.subr.mxu0 0.0
        %1765 = vmatpush2.xpose.msra.mxu0 0.0
        %1766 = vmatprep.subr.mxu0 0.0
        %1767 = vmatpush2.xpose.msra.mxu0 0.0
        %1768 = vmatprep.subr.mxu0 0.0
        %1769 = vmatpush2.xpose.msra.mxu0 0.0
        %1770 = vmatprep.subr.mxu0 0.0
        %1771 = vmatpush2.xpose.msra.mxu0 0.0
        %1772 = vmatprep.subr.mxu0 0.0
        %1773 = vmatpush2.xpose.msra.mxu0 0.0
        %1774 = vmatprep.subr.mxu0 0.0
        %1775 = vmatpush2.xpose.msra.mxu0 0.0
        %1776 = vmatprep.subr.mxu0 0.0
        %1777 = vmatpush2.xpose.msra.mxu0 0.0
        %1778 = vmatprep.subr.mxu0 0.0
        %1779 = vmatpush2.xpose.msra.mxu0 0.0
        %1780 = vmatprep.subr.mxu0 0.0
        %1781 = vmatpush2.xpose.msra.mxu0 0.0
        %1782 = vmatprep.subr.mxu0 0.0
        %1783 = vmatpush2.xpose.msra.mxu0 0.0
        %1784 = vmatprep.subr.mxu0 0.0
        %1785 = vmatpush2.xpose.msra.mxu0 0.0
        %1786 = vmatprep.subr.mxu0 0.0
        %1787 = vmatpush2.xpose.msra.mxu0 0.0
        %1788 = vmatprep.subr.mxu0 0.0
        %1789 = vmatpush2.xpose.msra.mxu0 0.0
        %1790 = vmatprep.subr.mxu0 0.0
        %1791 = vmatpush2.xpose.msra.mxu0 0.0
        %1792 = vmatprep.mubr.f32.mxu0 0.0
        %1793 = vmatmul.mubr.f32.gmra.mxu0 %v1717
        %v1794 = vpop.f32.mrf.mxu0
        %v1795 = vadd.f32 0.0, %v1794
        %v1796 = vpop.f32.mrf.mxu0
        %1797 = vdwg.mxu0
        %v1798 = vlaneseq
        %v1799 = vand.u32 %v1798, 127
        %v1800 = vstv %s445
        %v1801 = vadd.s32 %v1800, %v1799
        %vm1802 = vcmp.lt.s32.totalorder %v1801, 8
        %vm1803 = vcmp.lt.s32.totalorder %v1801, 40
        %v1804 = vsub.f32 0.0, %v1795
        %v1805 = vsel %vm1802, %v1804, %v1795
        %v1806 = vmax.f32 %v1805, 0.0
        %v1807 = vand.u32 2147483647, %v1805
        %v1808 = vsub.f32 0.0, %v1807
        %v1809 = vmul.f32 %v1808, 1.442695
        %v1810 = vpow.pop %v1809
        %v1811 = vadd.f32 %v1810, 1.0
        %v1812 = vlog2.pop %v1811
        %v1813 = vmul.f32 %v1812, 0.6931472
        %v1814 = vmul.f32 -0.5, %v1810
        %v1815 = vadd.f32 %v1814, 1.0
        %v1816 = vmul.f32 %v1815, %v1810
        %v1817 = vand.u32 2147483647, %v1810
        %vm1818 = vcmp.lt.f32.partialorder %v1817, 0.0004427343
        %v1819 = vsel %vm1818, %v1816, %v1813
        %v1820 = vadd.f32 %v1806, %v1819
        %v1821 = vsel %vm1802, %v1820, 0.0
        %vm1822 = vcmask 195584
        %v1823 = vsel %vm1822, %v1821, 0.0
        %1824 = vadd.xlane.f32.xlu0 %v1823
        %v1825 = vpop.xlane.xlu0 %1824
        %v1826 = vrot.slane %v1825, 4
        %v1827 = vadd.f32 %v1825, %v1826
        %v1828 = vrot.slane %v1827, 2
        %v1829 = vadd.f32 %v1827, %v1828
        %v1830 = vrot.slane %v1829, 1
        %v1831 = vadd.f32 %v1829, %v1830
        %s1832 = vtos %v1831
        %vm1833 = vmxor %vm1802, 1
        %vm1834 = vmand %vm1803, %vm1833
        %v1835 = vsel %vm1834, %v1820, 0.0
        %v1836 = vsel %vm1822, %v1835, 0.0
        %1837 = vadd.xlane.f32.xlu0 %v1836
        %v1838 = vpop.xlane.xlu0 %1837
        %v1839 = vrot.slane %v1838, 4
        %v1840 = vadd.f32 %v1838, %v1839
        %v1841 = vrot.slane %v1840, 2
        %v1842 = vadd.f32 %v1840, %v1841
        %v1843 = vrot.slane %v1842, 1
        %v1844 = vadd.f32 %v1842, %v1843
        %s1845 = vtos %v1844
        %v1846 = vlaneseq
        %v1847 = vshrl.u32 %v1846, 7
        %vm1848 = vcmp.eq.s32.totalorder %v1847, 0
        %vm1849 = vcmp.eq.s32.totalorder %v1799, 0
        %vm1850 = vmand %vm1848, %vm1849
        %vm1851 = vcmp.eq.s32.totalorder %v1799, 1
        %vm1852 = vmand %vm1848, %vm1851
        %v1853 = vstv %s1845
        %v1854 = vsel %vm1852, %v1853, 0.0
        %v1855 = vstv %s1832
        %v1856 = vsel %vm1850, %v1855, %v1854
        %1857 = vst [vmem:[%s53] sm:$0xff] %v1856
        %s1858 = sand.u32 %s26, 1
        %s1859 = scalar_lea.sflag [#allocation8], %s1858
        %s1860 = sand.u32 %s26, 1
        %s1861 = smul.addr %s1860, 8
        %s1862 = scalar_lea.vmem [#allocation7], %s1861
        // Predicated region
        $region973: #{tpu_custom_call.1} parent=11 // pred_check
          %p1863 = pneg %p32
        $region974: #{tpu_custom_call.1} parent=11 // pred_check_branch
          %1865 = sbr.rel (%p1863) target = $region976
        $region975: #{tpu_custom_call.1} parent=11 // pred_region
          %s1867 = ssub.s32 128, 128
          %1868 = vsyncadd %s1859, %s1867
          %s1869 = smul.addr %s17, 128
          %s1870 = scalar_lea.hbm %s2, %s1869
          %s1872 = sshll.u32 %s1862, 4
          %s1873 = int_to_ptr.vmem [resolvable:$true] %s1872
          %1875 = dma.vmem_to_hbm [thread:$0]  %s1873, 128, %s1870, %s1859
        $region976: #{tpu_custom_call.1} parent=11 // pred_fallthru
          _
      $region12: #{tpu_custom_call.1} parent=5 // pred_fallthru
        _
      %p1876 = scmp.le.s32.totalorder 1, %s17
      // Predicated region
      $region977: #{tpu_custom_call.1} parent=5 // pred_check
        %p1877 = pneg %p1876
      $region978: #{tpu_custom_call.1} parent=5 // pred_check_branch
        %1879 = sbr.rel (%p1877) target = $region980
      $region979: #{tpu_custom_call.1} parent=5 // pred_region
        %s1880 = ssub.s32 %s17, 1
        // Predicated region
        $region981: #{tpu_custom_call.1} parent=979 // pred_check
          %p1881 = pneg %p38
        $region982: #{tpu_custom_call.1} parent=979 // pred_check_branch
          %1883 = sbr.rel (%p1881) target = $region984
        $region983: #{tpu_custom_call.1} parent=979 // pred_region
          %s1884 = sand.u32 %s29, 1
          %s1885 = scalar_lea.sflag [#allocation8], %s1884
          %s1886 = sand.u32 %s29, 1
          %s1887 = smul.addr %s1886, 8
          %s1888 = scalar_lea.vmem [#allocation7], %s1887
          %1889 = dma.done %s1885, 128
        $region984: #{tpu_custom_call.1} parent=979 // pred_fallthru
          _
      $region980: #{tpu_custom_call.1} parent=5 // pred_fallthru
        _
    $region6: #{tpu_custom_call.1} parent=1 // loop_footer
      %s21 = sadd.s32 1, %s17
    $region7: #{tpu_custom_call.1} parent=1 // loop_footer_branch
      %16 = sbr.rel target = $region3
    $region8: #{tpu_custom_call.1} parent=1 // loop_exit
      _
    %1890 = vsyncpa [#allocation8], 1
    %s1891 = scalar_lea.sflag [#allocation8], 1
    %1892 = vsyncpa %s1891, 1
  %1893 = vsyncmov [#allocation4]
  %s1894 = vpop.sfrf %1893
  %p1895 = scmp.eq.s32.totalorder %s1894, 0
  %p1896 = pneg %p1895
  %1898 = shalt.err (%p1896)
  %s1899 = scalar_lea.sflag [#allocation4], 1
  %1900 = vsyncmov %s1899
  %s1901 = vpop.sfrf %1900
  %p1902 = scmp.eq.s32.totalorder %s1901, 0
  %p1903 = pneg %p1902
  %1905 = shalt.err (%p1903)

</llo_original>
